<compile_context>
chip_gen: v7x
topology: tpu7x:2x2x1
jax: 0.10.0
libtpu: 0.0.40
codegen_flags: <defaults>
</compile_context>

<pallas_src>
import jax
import jax.numpy as jnp
from jax.experimental import pallas as pl
from jax.experimental.pallas import tpu as pltpu

N_TRACK = 10
N_WAYPOINTS = 3
D_MODEL = 64
HEADS = 4
LAYERS = 2
D_FF = 4 * D_MODEL
HEAD_DIM = D_MODEL // HEADS
LN_EPS = 1e-5
DEFAULT_TB = 16  # samples per grid step -> 160 MXU rows; multiple of 8 for tiling

PARAM_ORDER = (
    "win", "bin",
    "wqkv", "bqkv", "wo", "bo",
    "ln1g", "ln1b", "ln2g", "ln2b",
    "w1", "b1", "w2", "b2",
)


def _layer_norm(x, gamma, beta):
    mu = jnp.mean(x, axis=-1, keepdims=True)
    var = jnp.mean((x - mu) ** 2, axis=-1, keepdims=True)
    inv = jax.lax.rsqrt(var + LN_EPS)
    return (x - mu) * inv * gamma + beta


def planner_kernel(x_ref, bias_ref, pool_ref,
                   win_ref, bin_ref,
                   wqkv_ref, bqkv_ref, wo_ref, bo_ref,
                   ln1g_ref, ln1b_ref, ln2g_ref, ln2b_ref,
                   w1_ref, b1_ref, w2_ref, b2_ref,
                   pooled_ref):
    # x_ref: (TB * N_TRACK, 4) -- TB samples flattened along the row (sublane) dim.
    x = x_ref[...]
    attn_bias = bias_ref[...]          # (R, R) block-diagonal additive mask
    scale = jnp.float32(1.0 / (HEAD_DIM ** 0.5))

    # input projection: Linear(4 -> d_model), all TB*N rows in one MXU matmul
    h = jnp.dot(x, win_ref[...], preferred_element_type=jnp.float32) + bin_ref[...]

    for l in range(LAYERS):                                   # unrolled at trace time
        # ---- multi-head self-attention (post-LN encoder layer) ----
        # fused Q/K/V projection: one (R,64)@(64,192) matmul + one bias add
        qkv = jnp.dot(h, wqkv_ref[l], preferred_element_type=jnp.float32) + bqkv_ref[l]
        q = qkv[:, 0:D_MODEL] * scale                         # pre-scale q by 1/sqrt(hd)
        k = qkv[:, D_MODEL:2 * D_MODEL]
        v = qkv[:, 2 * D_MODEL:3 * D_MODEL]

        ctx_parts = []
        for hh in range(HEADS):                               # unrolled; batched over TB samples
            sl = slice(hh * HEAD_DIM, (hh + 1) * HEAD_DIM)
            s = jax.lax.dot_general(
                q[:, sl], k[:, sl], (((1,), (1,)), ((), ())),
                preferred_element_type=jnp.float32)           # (R, R)
            s = s + attn_bias                                 # mask cross-sample scores
            s = s - jnp.max(s, axis=-1, keepdims=True)
            e = jnp.exp(s)
            p = e * pl.reciprocal(jnp.sum(e, axis=-1, keepdims=True), approx=True)
            ctx_parts.append(
                jnp.dot(p, v[:, sl], preferred_element_type=jnp.float32))  # (R, head_dim)
        ctx = jnp.concatenate(ctx_parts, axis=-1)             # (R, D)

        attn_out = jnp.dot(ctx, wo_ref[l],
                           preferred_element_type=jnp.float32) + bo_ref[l]
        h = _layer_norm(h + attn_out, ln1g_ref[l], ln1b_ref[l])

        # ---- feed-forward (Linear -> ReLU -> Linear) ----
        ff = jnp.dot(h, w1_ref[l], preferred_element_type=jnp.float32) + b1_ref[l]
        ff = jnp.maximum(ff, 0.0)
        ff = jnp.dot(ff, w2_ref[l], preferred_element_type=jnp.float32) + b2_ref[l]
        h = _layer_norm(h + ff, ln2g_ref[l], ln2b_ref[l])

    # per-sample mean pool as an MXU matmul against a constant averaging matrix
    pooled_ref[...] = jnp.dot(pool_ref[...], h, preferred_element_type=jnp.float32)


def init_params(key):
    keys = iter(jax.random.split(key, 16))

    def nrm(shape, s=0.1):
        return jax.random.normal(next(keys), shape, jnp.float32) * s

    params = {
        "win": nrm((4, D_MODEL)),
        "bin": nrm((1, D_MODEL)),
        # fused Q|K|V weights/biases (input-major): (d_model, 3*d_model)
        "wqkv": nrm((LAYERS, D_MODEL, 3 * D_MODEL)),
        "bqkv": nrm((LAYERS, 1, 3 * D_MODEL)),
        "wo": nrm((LAYERS, D_MODEL, D_MODEL)),
        "bo": nrm((LAYERS, 1, D_MODEL)),
        "ln1g": jnp.ones((LAYERS, 1, D_MODEL), jnp.float32),
        "ln1b": jnp.zeros((LAYERS, 1, D_MODEL), jnp.float32),
        "ln2g": jnp.ones((LAYERS, 1, D_MODEL), jnp.float32),
        "ln2b": jnp.zeros((LAYERS, 1, D_MODEL), jnp.float32),
        "w1": nrm((LAYERS, D_MODEL, D_FF)),
        "b1": nrm((LAYERS, 1, D_FF)),
        "w2": nrm((LAYERS, D_FF, D_MODEL)),
        "b2": nrm((LAYERS, 1, D_MODEL)),
        # output projection applied in the XLA wrapper (lane-dense kernel output)
        "wout": nrm((D_MODEL, 2 * N_WAYPOINTS)),
        "bout": nrm((1, 2 * N_WAYPOINTS)),
    }
    return params


def transformer_planner_forward(track_left, track_right, params, tb=DEFAULT_TB):
    b = track_left.shape[0]
    x = jnp.concatenate([track_left, track_right], axis=-1).astype(jnp.float32)  # (b, N, 4)

    # samples per grid step: whole batch if small, else 16 (multiple of 8 so
    # non-final-grid blocks satisfy the sublane constraint).
    tb_eff = b if b <= tb else tb
    b_pad = pl.cdiv(b, tb_eff) * tb_eff
    if b_pad != b:
        # padded samples are fully independent (block-diag attention, per-sample
        # pooling) -- their garbage outputs are sliced off below.
        x = jnp.pad(x, ((0, b_pad - b), (0, 0), (0, 0)))
    r = tb_eff * N_TRACK
    x_flat = x.reshape(b_pad * N_TRACK, 4)

    # block-diagonal additive attention bias: rows of sample t only attend to
    # their own N_TRACK columns (keeps per-sample attention exact after flattening).
    blk = jnp.arange(r, dtype=jnp.int32) // N_TRACK
    attn_bias = jnp.where(blk[:, None] == blk[None, :], 0.0, -1e30).astype(jnp.float32)
    # constant per-sample averaging matrix: pooled = pool @ h (runs on the MXU)
    pool = jnp.where(
        jnp.arange(tb_eff, dtype=jnp.int32)[:, None] == blk[None, :],
        jnp.float32(1.0 / N_TRACK), jnp.float32(0.0))

    param_list = [params[k] for k in PARAM_ORDER]

    def full_spec(shape):
        return pl.BlockSpec(shape, lambda i, _n=len(shape): (0,) * _n)

    in_specs = [pl.BlockSpec((r, 4), lambda i: (i, 0)),
                full_spec(attn_bias.shape),
                full_spec(pool.shape)] + [full_spec(p.shape) for p in param_list]

    pooled = pl.pallas_call(
        planner_kernel,
        out_shape=jax.ShapeDtypeStruct((b_pad, D_MODEL), jnp.float32),
        grid=(b_pad // tb_eff,),
        in_specs=in_specs,
        out_specs=pl.BlockSpec((tb_eff, D_MODEL), lambda i: (i, 0)),
        compiler_params=pltpu.CompilerParams(dimension_semantics=("parallel",)),
    )(x_flat, attn_bias, pool, *param_list)

    pooled = pooled[:b]                                   # drop padded samples
    # tiny 64->6 projection + reshape stay in XLA so the kernel store is 64-lane dense
    out = jnp.dot(pooled, params["wout"]) + params["bout"]
    return out.reshape(b, N_WAYPOINTS, 2)


if __name__ == "__main__":
    key = jax.random.PRNGKey(0)
    k_params, k_left, k_right = jax.random.split(key, 3)

    params = init_params(k_params)

    batch = 2
    track_left = jax.random.normal(k_left, (batch, N_TRACK, 2), jnp.float32)
    track_right = jax.random.normal(k_right, (batch, N_TRACK, 2), jnp.float32)

    waypoints = transformer_planner_forward(track_left, track_right, params)
    waypoints = jax.block_until_ready(waypoints)

    assert waypoints.shape == (batch, N_WAYPOINTS, 2), waypoints.shape
    assert bool(jnp.all(jnp.isfinite(waypoints)))
    print("KERNEL_OK")
</pallas_src>

<mosaic_0001>
module attributes {stable_mosaic.version = 11 : i64} {
  func.func @planner_kernel(%arg0: i32, %arg1: memref<20x4xf32, #tpu.memory_space<vmem>>, %arg2: memref<20x20xf32, #tpu.memory_space<vmem>>, %arg3: memref<2x20xf32, #tpu.memory_space<vmem>>, %arg4: memref<4x64xf32, #tpu.memory_space<vmem>>, %arg5: memref<1x64xf32, #tpu.memory_space<vmem>>, %arg6: memref<2x64x192xf32, #tpu.memory_space<vmem>>, %arg7: memref<2x1x192xf32, #tpu.memory_space<vmem>>, %arg8: memref<2x64x64xf32, #tpu.memory_space<vmem>>, %arg9: memref<2x1x64xf32, #tpu.memory_space<vmem>>, %arg10: memref<2x1x64xf32, #tpu.memory_space<vmem>>, %arg11: memref<2x1x64xf32, #tpu.memory_space<vmem>>, %arg12: memref<2x1x64xf32, #tpu.memory_space<vmem>>, %arg13: memref<2x1x64xf32, #tpu.memory_space<vmem>>, %arg14: memref<2x64x256xf32, #tpu.memory_space<vmem>>, %arg15: memref<2x1x256xf32, #tpu.memory_space<vmem>>, %arg16: memref<2x256x64xf32, #tpu.memory_space<vmem>>, %arg17: memref<2x1x64xf32, #tpu.memory_space<vmem>>, %arg18: memref<2x64xf32, #tpu.memory_space<vmem>>) attributes {dimension_semantics = [#tpu.dimension_semantics<parallel>], iteration_bounds = array<i64: 1>, scalar_prefetch = 0 : i64, scratch_operands = 0 : i64, tpu.core_type = #tpu.core_type<tc>, window_params = [{transform_indices = @transform_0, window_bounds = array<i64: 20, 4>}, {pipeline_mode = #tpu.pipeline_mode<synchronous>, transform_indices = @transform_1, window_bounds = array<i64: 20, 20>}, {pipeline_mode = #tpu.pipeline_mode<synchronous>, transform_indices = @transform_2, window_bounds = array<i64: 2, 20>}, {pipeline_mode = #tpu.pipeline_mode<synchronous>, transform_indices = @transform_3, window_bounds = array<i64: 4, 64>}, {pipeline_mode = #tpu.pipeline_mode<synchronous>, transform_indices = @transform_4, window_bounds = array<i64: 1, 64>}, {pipeline_mode = #tpu.pipeline_mode<synchronous>, transform_indices = @transform_5, window_bounds = array<i64: 2, 64, 192>}, {pipeline_mode = #tpu.pipeline_mode<synchronous>, transform_indices = @transform_6, window_bounds = array<i64: 2, 1, 192>}, {pipeline_mode = #tpu.pipeline_mode<synchronous>, transform_indices = @transform_7, window_bounds = array<i64: 2, 64, 64>}, {pipeline_mode = #tpu.pipeline_mode<synchronous>, transform_indices = @transform_8, window_bounds = array<i64: 2, 1, 64>}, {pipeline_mode = #tpu.pipeline_mode<synchronous>, transform_indices = @transform_9, window_bounds = array<i64: 2, 1, 64>}, {pipeline_mode = #tpu.pipeline_mode<synchronous>, transform_indices = @transform_10, window_bounds = array<i64: 2, 1, 64>}, {pipeline_mode = #tpu.pipeline_mode<synchronous>, transform_indices = @transform_11, window_bounds = array<i64: 2, 1, 64>}, {pipeline_mode = #tpu.pipeline_mode<synchronous>, transform_indices = @transform_12, window_bounds = array<i64: 2, 1, 64>}, {pipeline_mode = #tpu.pipeline_mode<synchronous>, transform_indices = @transform_13, window_bounds = array<i64: 2, 64, 256>}, {pipeline_mode = #tpu.pipeline_mode<synchronous>, transform_indices = @transform_14, window_bounds = array<i64: 2, 1, 256>}, {pipeline_mode = #tpu.pipeline_mode<synchronous>, transform_indices = @transform_15, window_bounds = array<i64: 2, 256, 64>}, {pipeline_mode = #tpu.pipeline_mode<synchronous>, transform_indices = @transform_16, window_bounds = array<i64: 2, 1, 64>}, {transform_indices = @transform_17, window_bounds = array<i64: 2, 64>}]} {
    %c0 = arith.constant 0 : index
    %c0_0 = arith.constant 0 : index
    %0 = vector.load %arg1[%c0, %c0_0] : memref<20x4xf32, #tpu.memory_space<vmem>>, vector<20x4xf32>
    %c0_1 = arith.constant 0 : index
    %c0_2 = arith.constant 0 : index
    %1 = vector.load %arg2[%c0_1, %c0_2] : memref<20x20xf32, #tpu.memory_space<vmem>>, vector<20x20xf32>
    %c0_3 = arith.constant 0 : index
    %c0_4 = arith.constant 0 : index
    %2 = vector.load %arg4[%c0_3, %c0_4] : memref<4x64xf32, #tpu.memory_space<vmem>>, vector<4x64xf32>
    %cst = arith.constant dense<0.000000e+00> : vector<20x64xf32>
    %3 = tpu.matmul %0, %2, %cst {dimension_numbers = #tpu.dot_dimension_numbers<[1], [0], [0], [1], [0, 0, 1, 1], [], []>} : vector<20x4xf32>, vector<4x64xf32>, vector<20x64xf32> -> vector<20x64xf32>
    %c0_5 = arith.constant 0 : index
    %c0_6 = arith.constant 0 : index
    %4 = vector.load %arg5[%c0_5, %c0_6] : memref<1x64xf32, #tpu.memory_space<vmem>>, vector<1x64xf32>
    %5 = vector.broadcast %4 : vector<1x64xf32> to vector<20x64xf32>
    %6 = arith.addf %3, %5 : vector<20x64xf32>
    %c0_7 = arith.constant 0 : index
    %c0_8 = arith.constant 0 : index
    %c0_9 = arith.constant 0 : index
    %7 = vector.load %arg6[%c0_7, %c0_8, %c0_9] : memref<2x64x192xf32, #tpu.memory_space<vmem>>, vector<1x64x192xf32>
    %8 = vector.shape_cast %7 : vector<1x64x192xf32> to vector<64x192xf32>
    %cst_10 = arith.constant dense<0.000000e+00> : vector<20x192xf32>
    %9 = tpu.matmul %6, %8, %cst_10 {dimension_numbers = #tpu.dot_dimension_numbers<[1], [0], [0], [1], [0, 0, 1, 1], [], []>} : vector<20x64xf32>, vector<64x192xf32>, vector<20x192xf32> -> vector<20x192xf32>
    %c0_11 = arith.constant 0 : index
    %c0_12 = arith.constant 0 : index
    %c0_13 = arith.constant 0 : index
    %10 = vector.load %arg7[%c0_11, %c0_12, %c0_13] : memref<2x1x192xf32, #tpu.memory_space<vmem>>, vector<1x1x192xf32>
    %11 = vector.shape_cast %10 : vector<1x1x192xf32> to vector<1x192xf32>
    %12 = vector.broadcast %11 : vector<1x192xf32> to vector<20x192xf32>
    %13 = arith.addf %9, %12 : vector<20x192xf32>
    %14 = vector.extract_strided_slice %13 {offsets = [0, 0], sizes = [20, 64], strides = [1, 1]} : vector<20x192xf32> to vector<20x64xf32>
    %cst_14 = arith.constant 2.500000e-01 : f32
    %15 = vector.broadcast %cst_14 : f32 to vector<20x64xf32>
    %16 = arith.mulf %14, %15 : vector<20x64xf32>
    %17 = vector.extract_strided_slice %13 {offsets = [0, 64], sizes = [20, 64], strides = [1, 1]} : vector<20x192xf32> to vector<20x64xf32>
    %18 = vector.extract_strided_slice %13 {offsets = [0, 128], sizes = [20, 64], strides = [1, 1]} : vector<20x192xf32> to vector<20x64xf32>
    %19 = vector.extract_strided_slice %16 {offsets = [0, 0], sizes = [20, 16], strides = [1, 1]} : vector<20x64xf32> to vector<20x16xf32>
    %20 = vector.extract_strided_slice %17 {offsets = [0, 0], sizes = [20, 16], strides = [1, 1]} : vector<20x64xf32> to vector<20x16xf32>
    %cst_15 = arith.constant dense<0.000000e+00> : vector<20x20xf32>
    %21 = tpu.matmul %19, %20, %cst_15 {dimension_numbers = #tpu.dot_dimension_numbers<[1], [1], [0], [0], [0, 0, 1, 0], [], []>} : vector<20x16xf32>, vector<20x16xf32>, vector<20x20xf32> -> vector<20x20xf32>
    %22 = arith.addf %21, %1 : vector<20x20xf32>
    %cst_16 = arith.constant dense<0xFF800000> : vector<20xf32>
    %23 = vector.multi_reduction <maximumf>, %22, %cst_16 [1] : vector<20x20xf32> to vector<20xf32>
    %24 = vector.shape_cast %23 : vector<20xf32> to vector<20x1xf32>
    %25 = vector.broadcast %24 : vector<20x1xf32> to vector<20x20xf32>
    %26 = arith.subf %22, %25 : vector<20x20xf32>
    %27 = math.exp %26 : vector<20x20xf32>
    %cst_17 = arith.constant dense<0.000000e+00> : vector<20xf32>
    %28 = vector.multi_reduction <add>, %27, %cst_17 [1] : vector<20x20xf32> to vector<20xf32>
    %29 = vector.shape_cast %28 : vector<20xf32> to vector<20x1xf32>
    %30 = tpu.reciprocal %29 {approx = true} : vector<20x1xf32> -> vector<20x1xf32>
    %31 = vector.broadcast %30 : vector<20x1xf32> to vector<20x20xf32>
    %32 = arith.mulf %27, %31 : vector<20x20xf32>
    %33 = vector.extract_strided_slice %18 {offsets = [0, 0], sizes = [20, 16], strides = [1, 1]} : vector<20x64xf32> to vector<20x16xf32>
    %cst_18 = arith.constant dense<0.000000e+00> : vector<20x16xf32>
    %34 = tpu.matmul %32, %33, %cst_18 {dimension_numbers = #tpu.dot_dimension_numbers<[1], [0], [0], [1], [0, 0, 1, 1], [], []>} : vector<20x20xf32>, vector<20x16xf32>, vector<20x16xf32> -> vector<20x16xf32>
    %35 = vector.extract_strided_slice %16 {offsets = [0, 16], sizes = [20, 16], strides = [1, 1]} : vector<20x64xf32> to vector<20x16xf32>
    %36 = vector.extract_strided_slice %17 {offsets = [0, 16], sizes = [20, 16], strides = [1, 1]} : vector<20x64xf32> to vector<20x16xf32>
    %cst_19 = arith.constant dense<0.000000e+00> : vector<20x20xf32>
    %37 = tpu.matmul %35, %36, %cst_19 {dimension_numbers = #tpu.dot_dimension_numbers<[1], [1], [0], [0], [0, 0, 1, 0], [], []>} : vector<20x16xf32>, vector<20x16xf32>, vector<20x20xf32> -> vector<20x20xf32>
    %38 = arith.addf %37, %1 : vector<20x20xf32>
    %cst_20 = arith.constant dense<0xFF800000> : vector<20xf32>
    %39 = vector.multi_reduction <maximumf>, %38, %cst_20 [1] : vector<20x20xf32> to vector<20xf32>
    %40 = vector.shape_cast %39 : vector<20xf32> to vector<20x1xf32>
    %41 = vector.broadcast %40 : vector<20x1xf32> to vector<20x20xf32>
    %42 = arith.subf %38, %41 : vector<20x20xf32>
    %43 = math.exp %42 : vector<20x20xf32>
    %cst_21 = arith.constant dense<0.000000e+00> : vector<20xf32>
    %44 = vector.multi_reduction <add>, %43, %cst_21 [1] : vector<20x20xf32> to vector<20xf32>
    %45 = vector.shape_cast %44 : vector<20xf32> to vector<20x1xf32>
    %46 = tpu.reciprocal %45 {approx = true} : vector<20x1xf32> -> vector<20x1xf32>
    %47 = vector.broadcast %46 : vector<20x1xf32> to vector<20x20xf32>
    %48 = arith.mulf %43, %47 : vector<20x20xf32>
    %49 = vector.extract_strided_slice %18 {offsets = [0, 16], sizes = [20, 16], strides = [1, 1]} : vector<20x64xf32> to vector<20x16xf32>
    %cst_22 = arith.constant dense<0.000000e+00> : vector<20x16xf32>
    %50 = tpu.matmul %48, %49, %cst_22 {dimension_numbers = #tpu.dot_dimension_numbers<[1], [0], [0], [1], [0, 0, 1, 1], [], []>} : vector<20x20xf32>, vector<20x16xf32>, vector<20x16xf32> -> vector<20x16xf32>
    %51 = vector.extract_strided_slice %16 {offsets = [0, 32], sizes = [20, 16], strides = [1, 1]} : vector<20x64xf32> to vector<20x16xf32>
    %52 = vector.extract_strided_slice %17 {offsets = [0, 32], sizes = [20, 16], strides = [1, 1]} : vector<20x64xf32> to vector<20x16xf32>
    %cst_23 = arith.constant dense<0.000000e+00> : vector<20x20xf32>
    %53 = tpu.matmul %51, %52, %cst_23 {dimension_numbers = #tpu.dot_dimension_numbers<[1], [1], [0], [0], [0, 0, 1, 0], [], []>} : vector<20x16xf32>, vector<20x16xf32>, vector<20x20xf32> -> vector<20x20xf32>
    %54 = arith.addf %53, %1 : vector<20x20xf32>
    %cst_24 = arith.constant dense<0xFF800000> : vector<20xf32>
    %55 = vector.multi_reduction <maximumf>, %54, %cst_24 [1] : vector<20x20xf32> to vector<20xf32>
    %56 = vector.shape_cast %55 : vector<20xf32> to vector<20x1xf32>
    %57 = vector.broadcast %56 : vector<20x1xf32> to vector<20x20xf32>
    %58 = arith.subf %54, %57 : vector<20x20xf32>
    %59 = math.exp %58 : vector<20x20xf32>
    %cst_25 = arith.constant dense<0.000000e+00> : vector<20xf32>
    %60 = vector.multi_reduction <add>, %59, %cst_25 [1] : vector<20x20xf32> to vector<20xf32>
    %61 = vector.shape_cast %60 : vector<20xf32> to vector<20x1xf32>
    %62 = tpu.reciprocal %61 {approx = true} : vector<20x1xf32> -> vector<20x1xf32>
    %63 = vector.broadcast %62 : vector<20x1xf32> to vector<20x20xf32>
    %64 = arith.mulf %59, %63 : vector<20x20xf32>
    %65 = vector.extract_strided_slice %18 {offsets = [0, 32], sizes = [20, 16], strides = [1, 1]} : vector<20x64xf32> to vector<20x16xf32>
    %cst_26 = arith.constant dense<0.000000e+00> : vector<20x16xf32>
    %66 = tpu.matmul %64, %65, %cst_26 {dimension_numbers = #tpu.dot_dimension_numbers<[1], [0], [0], [1], [0, 0, 1, 1], [], []>} : vector<20x20xf32>, vector<20x16xf32>, vector<20x16xf32> -> vector<20x16xf32>
    %67 = vector.extract_strided_slice %16 {offsets = [0, 48], sizes = [20, 16], strides = [1, 1]} : vector<20x64xf32> to vector<20x16xf32>
    %68 = vector.extract_strided_slice %17 {offsets = [0, 48], sizes = [20, 16], strides = [1, 1]} : vector<20x64xf32> to vector<20x16xf32>
    %cst_27 = arith.constant dense<0.000000e+00> : vector<20x20xf32>
    %69 = tpu.matmul %67, %68, %cst_27 {dimension_numbers = #tpu.dot_dimension_numbers<[1], [1], [0], [0], [0, 0, 1, 0], [], []>} : vector<20x16xf32>, vector<20x16xf32>, vector<20x20xf32> -> vector<20x20xf32>
    %70 = arith.addf %69, %1 : vector<20x20xf32>
    %cst_28 = arith.constant dense<0xFF800000> : vector<20xf32>
    %71 = vector.multi_reduction <maximumf>, %70, %cst_28 [1] : vector<20x20xf32> to vector<20xf32>
    %72 = vector.shape_cast %71 : vector<20xf32> to vector<20x1xf32>
    %73 = vector.broadcast %72 : vector<20x1xf32> to vector<20x20xf32>
    %74 = arith.subf %70, %73 : vector<20x20xf32>
    %75 = math.exp %74 : vector<20x20xf32>
    %cst_29 = arith.constant dense<0.000000e+00> : vector<20xf32>
    %76 = vector.multi_reduction <add>, %75, %cst_29 [1] : vector<20x20xf32> to vector<20xf32>
    %77 = vector.shape_cast %76 : vector<20xf32> to vector<20x1xf32>
    %78 = tpu.reciprocal %77 {approx = true} : vector<20x1xf32> -> vector<20x1xf32>
    %79 = vector.broadcast %78 : vector<20x1xf32> to vector<20x20xf32>
    %80 = arith.mulf %75, %79 : vector<20x20xf32>
    %81 = vector.extract_strided_slice %18 {offsets = [0, 48], sizes = [20, 16], strides = [1, 1]} : vector<20x64xf32> to vector<20x16xf32>
    %cst_30 = arith.constant dense<0.000000e+00> : vector<20x16xf32>
    %82 = tpu.matmul %80, %81, %cst_30 {dimension_numbers = #tpu.dot_dimension_numbers<[1], [0], [0], [1], [0, 0, 1, 1], [], []>} : vector<20x20xf32>, vector<20x16xf32>, vector<20x16xf32> -> vector<20x16xf32>
    %83 = tpu.concatenate %34, %50, %66, %82 in 1 : vector<20x16xf32>, vector<20x16xf32>, vector<20x16xf32>, vector<20x16xf32> -> vector<20x64xf32>
    %c0_31 = arith.constant 0 : index
    %c0_32 = arith.constant 0 : index
    %c0_33 = arith.constant 0 : index
    %84 = vector.load %arg8[%c0_31, %c0_32, %c0_33] : memref<2x64x64xf32, #tpu.memory_space<vmem>>, vector<1x64x64xf32>
    %85 = vector.shape_cast %84 : vector<1x64x64xf32> to vector<64x64xf32>
    %cst_34 = arith.constant dense<0.000000e+00> : vector<20x64xf32>
    %86 = tpu.matmul %83, %85, %cst_34 {dimension_numbers = #tpu.dot_dimension_numbers<[1], [0], [0], [1], [0, 0, 1, 1], [], []>} : vector<20x64xf32>, vector<64x64xf32>, vector<20x64xf32> -> vector<20x64xf32>
    %c0_35 = arith.constant 0 : index
    %c0_36 = arith.constant 0 : index
    %c0_37 = arith.constant 0 : index
    %87 = vector.load %arg9[%c0_35, %c0_36, %c0_37] : memref<2x1x64xf32, #tpu.memory_space<vmem>>, vector<1x1x64xf32>
    %88 = vector.shape_cast %87 : vector<1x1x64xf32> to vector<1x64xf32>
    %89 = vector.broadcast %88 : vector<1x64xf32> to vector<20x64xf32>
    %90 = arith.addf %86, %89 : vector<20x64xf32>
    %91 = arith.addf %6, %90 : vector<20x64xf32>
    %c0_38 = arith.constant 0 : index
    %c0_39 = arith.constant 0 : index
    %c0_40 = arith.constant 0 : index
    %92 = vector.load %arg10[%c0_38, %c0_39, %c0_40] : memref<2x1x64xf32, #tpu.memory_space<vmem>>, vector<1x1x64xf32>
    %93 = vector.shape_cast %92 : vector<1x1x64xf32> to vector<1x64xf32>
    %c0_41 = arith.constant 0 : index
    %c0_42 = arith.constant 0 : index
    %c0_43 = arith.constant 0 : index
    %94 = vector.load %arg11[%c0_41, %c0_42, %c0_43] : memref<2x1x64xf32, #tpu.memory_space<vmem>>, vector<1x1x64xf32>
    %95 = vector.shape_cast %94 : vector<1x1x64xf32> to vector<1x64xf32>
    %cst_44 = arith.constant dense<0.000000e+00> : vector<20xf32>
    %96 = vector.multi_reduction <add>, %91, %cst_44 [1] : vector<20x64xf32> to vector<20xf32>
    %97 = vector.shape_cast %96 : vector<20xf32> to vector<20x1xf32>
    %cst_45 = arith.constant 6.400000e+01 : f32
    %98 = vector.broadcast %cst_45 : f32 to vector<20x1xf32>
    %99 = arith.divf %97, %98 : vector<20x1xf32>
    %100 = vector.broadcast %99 : vector<20x1xf32> to vector<20x64xf32>
    %101 = arith.subf %91, %100 : vector<20x64xf32>
    %102 = arith.mulf %101, %101 : vector<20x64xf32>
    %cst_46 = arith.constant dense<0.000000e+00> : vector<20xf32>
    %103 = vector.multi_reduction <add>, %102, %cst_46 [1] : vector<20x64xf32> to vector<20xf32>
    %104 = vector.shape_cast %103 : vector<20xf32> to vector<20x1xf32>
    %cst_47 = arith.constant 6.400000e+01 : f32
    %105 = vector.broadcast %cst_47 : f32 to vector<20x1xf32>
    %106 = arith.divf %104, %105 : vector<20x1xf32>
    %cst_48 = arith.constant 9.99999974E-6 : f32
    %107 = vector.broadcast %cst_48 : f32 to vector<20x1xf32>
    %108 = arith.addf %106, %107 : vector<20x1xf32>
    %109 = math.rsqrt %108 : vector<20x1xf32>
    %110 = vector.broadcast %99 : vector<20x1xf32> to vector<20x64xf32>
    %111 = arith.subf %91, %110 : vector<20x64xf32>
    %112 = vector.broadcast %109 : vector<20x1xf32> to vector<20x64xf32>
    %113 = arith.mulf %111, %112 : vector<20x64xf32>
    %114 = vector.broadcast %93 : vector<1x64xf32> to vector<20x64xf32>
    %115 = arith.mulf %113, %114 : vector<20x64xf32>
    %116 = vector.broadcast %95 : vector<1x64xf32> to vector<20x64xf32>
    %117 = arith.addf %115, %116 : vector<20x64xf32>
    %c0_49 = arith.constant 0 : index
    %c0_50 = arith.constant 0 : index
    %c0_51 = arith.constant 0 : index
    %118 = vector.load %arg14[%c0_49, %c0_50, %c0_51] : memref<2x64x256xf32, #tpu.memory_space<vmem>>, vector<1x64x256xf32>
    %119 = vector.shape_cast %118 : vector<1x64x256xf32> to vector<64x256xf32>
    %cst_52 = arith.constant dense<0.000000e+00> : vector<20x256xf32>
    %120 = tpu.matmul %117, %119, %cst_52 {dimension_numbers = #tpu.dot_dimension_numbers<[1], [0], [0], [1], [0, 0, 1, 1], [], []>} : vector<20x64xf32>, vector<64x256xf32>, vector<20x256xf32> -> vector<20x256xf32>
    %c0_53 = arith.constant 0 : index
    %c0_54 = arith.constant 0 : index
    %c0_55 = arith.constant 0 : index
    %121 = vector.load %arg15[%c0_53, %c0_54, %c0_55] : memref<2x1x256xf32, #tpu.memory_space<vmem>>, vector<1x1x256xf32>
    %122 = vector.shape_cast %121 : vector<1x1x256xf32> to vector<1x256xf32>
    %123 = vector.broadcast %122 : vector<1x256xf32> to vector<20x256xf32>
    %124 = arith.addf %120, %123 : vector<20x256xf32>
    %cst_56 = arith.constant 0.000000e+00 : f32
    %125 = vector.broadcast %cst_56 : f32 to vector<20x256xf32>
    %126 = arith.maximumf %124, %125 : vector<20x256xf32>
    %c0_57 = arith.constant 0 : index
    %c0_58 = arith.constant 0 : index
    %c0_59 = arith.constant 0 : index
    %127 = vector.load %arg16[%c0_57, %c0_58, %c0_59] : memref<2x256x64xf32, #tpu.memory_space<vmem>>, vector<1x256x64xf32>
    %128 = vector.shape_cast %127 : vector<1x256x64xf32> to vector<256x64xf32>
    %cst_60 = arith.constant dense<0.000000e+00> : vector<20x64xf32>
    %129 = tpu.matmul %126, %128, %cst_60 {dimension_numbers = #tpu.dot_dimension_numbers<[1], [0], [0], [1], [0, 0, 1, 1], [], []>} : vector<20x256xf32>, vector<256x64xf32>, vector<20x64xf32> -> vector<20x64xf32>
    %c0_61 = arith.constant 0 : index
    %c0_62 = arith.constant 0 : index
    %c0_63 = arith.constant 0 : index
    %130 = vector.load %arg17[%c0_61, %c0_62, %c0_63] : memref<2x1x64xf32, #tpu.memory_space<vmem>>, vector<1x1x64xf32>
    %131 = vector.shape_cast %130 : vector<1x1x64xf32> to vector<1x64xf32>
    %132 = vector.broadcast %131 : vector<1x64xf32> to vector<20x64xf32>
    %133 = arith.addf %129, %132 : vector<20x64xf32>
    %134 = arith.addf %117, %133 : vector<20x64xf32>
    %c0_64 = arith.constant 0 : index
    %c0_65 = arith.constant 0 : index
    %c0_66 = arith.constant 0 : index
    %135 = vector.load %arg12[%c0_64, %c0_65, %c0_66] : memref<2x1x64xf32, #tpu.memory_space<vmem>>, vector<1x1x64xf32>
    %136 = vector.shape_cast %135 : vector<1x1x64xf32> to vector<1x64xf32>
    %c0_67 = arith.constant 0 : index
    %c0_68 = arith.constant 0 : index
    %c0_69 = arith.constant 0 : index
    %137 = vector.load %arg13[%c0_67, %c0_68, %c0_69] : memref<2x1x64xf32, #tpu.memory_space<vmem>>, vector<1x1x64xf32>
    %138 = vector.shape_cast %137 : vector<1x1x64xf32> to vector<1x64xf32>
    %cst_70 = arith.constant dense<0.000000e+00> : vector<20xf32>
    %139 = vector.multi_reduction <add>, %134, %cst_70 [1] : vector<20x64xf32> to vector<20xf32>
    %140 = vector.shape_cast %139 : vector<20xf32> to vector<20x1xf32>
    %cst_71 = arith.constant 6.400000e+01 : f32
    %141 = vector.broadcast %cst_71 : f32 to vector<20x1xf32>
    %142 = arith.divf %140, %141 : vector<20x1xf32>
    %143 = vector.broadcast %142 : vector<20x1xf32> to vector<20x64xf32>
    %144 = arith.subf %134, %143 : vector<20x64xf32>
    %145 = arith.mulf %144, %144 : vector<20x64xf32>
    %cst_72 = arith.constant dense<0.000000e+00> : vector<20xf32>
    %146 = vector.multi_reduction <add>, %145, %cst_72 [1] : vector<20x64xf32> to vector<20xf32>
    %147 = vector.shape_cast %146 : vector<20xf32> to vector<20x1xf32>
    %cst_73 = arith.constant 6.400000e+01 : f32
    %148 = vector.broadcast %cst_73 : f32 to vector<20x1xf32>
    %149 = arith.divf %147, %148 : vector<20x1xf32>
    %cst_74 = arith.constant 9.99999974E-6 : f32
    %150 = vector.broadcast %cst_74 : f32 to vector<20x1xf32>
    %151 = arith.addf %149, %150 : vector<20x1xf32>
    %152 = math.rsqrt %151 : vector<20x1xf32>
    %153 = vector.broadcast %142 : vector<20x1xf32> to vector<20x64xf32>
    %154 = arith.subf %134, %153 : vector<20x64xf32>
    %155 = vector.broadcast %152 : vector<20x1xf32> to vector<20x64xf32>
    %156 = arith.mulf %154, %155 : vector<20x64xf32>
    %157 = vector.broadcast %136 : vector<1x64xf32> to vector<20x64xf32>
    %158 = arith.mulf %156, %157 : vector<20x64xf32>
    %159 = vector.broadcast %138 : vector<1x64xf32> to vector<20x64xf32>
    %160 = arith.addf %158, %159 : vector<20x64xf32>
    %c1 = arith.constant 1 : index
    %c0_75 = arith.constant 0 : index
    %c0_76 = arith.constant 0 : index
    %161 = vector.load %arg6[%c1, %c0_75, %c0_76] : memref<2x64x192xf32, #tpu.memory_space<vmem>>, vector<1x64x192xf32>
    %162 = vector.shape_cast %161 : vector<1x64x192xf32> to vector<64x192xf32>
    %cst_77 = arith.constant dense<0.000000e+00> : vector<20x192xf32>
    %163 = tpu.matmul %160, %162, %cst_77 {dimension_numbers = #tpu.dot_dimension_numbers<[1], [0], [0], [1], [0, 0, 1, 1], [], []>} : vector<20x64xf32>, vector<64x192xf32>, vector<20x192xf32> -> vector<20x192xf32>
    %c1_78 = arith.constant 1 : index
    %c0_79 = arith.constant 0 : index
    %c0_80 = arith.constant 0 : index
    %164 = vector.load %arg7[%c1_78, %c0_79, %c0_80] : memref<2x1x192xf32, #tpu.memory_space<vmem>>, vector<1x1x192xf32>
    %165 = vector.shape_cast %164 : vector<1x1x192xf32> to vector<1x192xf32>
    %166 = vector.broadcast %165 : vector<1x192xf32> to vector<20x192xf32>
    %167 = arith.addf %163, %166 : vector<20x192xf32>
    %168 = vector.extract_strided_slice %167 {offsets = [0, 0], sizes = [20, 64], strides = [1, 1]} : vector<20x192xf32> to vector<20x64xf32>
    %cst_81 = arith.constant 2.500000e-01 : f32
    %169 = vector.broadcast %cst_81 : f32 to vector<20x64xf32>
    %170 = arith.mulf %168, %169 : vector<20x64xf32>
    %171 = vector.extract_strided_slice %167 {offsets = [0, 64], sizes = [20, 64], strides = [1, 1]} : vector<20x192xf32> to vector<20x64xf32>
    %172 = vector.extract_strided_slice %167 {offsets = [0, 128], sizes = [20, 64], strides = [1, 1]} : vector<20x192xf32> to vector<20x64xf32>
    %173 = vector.extract_strided_slice %170 {offsets = [0, 0], sizes = [20, 16], strides = [1, 1]} : vector<20x64xf32> to vector<20x16xf32>
    %174 = vector.extract_strided_slice %171 {offsets = [0, 0], sizes = [20, 16], strides = [1, 1]} : vector<20x64xf32> to vector<20x16xf32>
    %cst_82 = arith.constant dense<0.000000e+00> : vector<20x20xf32>
    %175 = tpu.matmul %173, %174, %cst_82 {dimension_numbers = #tpu.dot_dimension_numbers<[1], [1], [0], [0], [0, 0, 1, 0], [], []>} : vector<20x16xf32>, vector<20x16xf32>, vector<20x20xf32> -> vector<20x20xf32>
    %176 = arith.addf %175, %1 : vector<20x20xf32>
    %cst_83 = arith.constant dense<0xFF800000> : vector<20xf32>
    %177 = vector.multi_reduction <maximumf>, %176, %cst_83 [1] : vector<20x20xf32> to vector<20xf32>
    %178 = vector.shape_cast %177 : vector<20xf32> to vector<20x1xf32>
    %179 = vector.broadcast %178 : vector<20x1xf32> to vector<20x20xf32>
    %180 = arith.subf %176, %179 : vector<20x20xf32>
    %181 = math.exp %180 : vector<20x20xf32>
    %cst_84 = arith.constant dense<0.000000e+00> : vector<20xf32>
    %182 = vector.multi_reduction <add>, %181, %cst_84 [1] : vector<20x20xf32> to vector<20xf32>
    %183 = vector.shape_cast %182 : vector<20xf32> to vector<20x1xf32>
    %184 = tpu.reciprocal %183 {approx = true} : vector<20x1xf32> -> vector<20x1xf32>
    %185 = vector.broadcast %184 : vector<20x1xf32> to vector<20x20xf32>
    %186 = arith.mulf %181, %185 : vector<20x20xf32>
    %187 = vector.extract_strided_slice %172 {offsets = [0, 0], sizes = [20, 16], strides = [1, 1]} : vector<20x64xf32> to vector<20x16xf32>
    %cst_85 = arith.constant dense<0.000000e+00> : vector<20x16xf32>
    %188 = tpu.matmul %186, %187, %cst_85 {dimension_numbers = #tpu.dot_dimension_numbers<[1], [0], [0], [1], [0, 0, 1, 1], [], []>} : vector<20x20xf32>, vector<20x16xf32>, vector<20x16xf32> -> vector<20x16xf32>
    %189 = vector.extract_strided_slice %170 {offsets = [0, 16], sizes = [20, 16], strides = [1, 1]} : vector<20x64xf32> to vector<20x16xf32>
    %190 = vector.extract_strided_slice %171 {offsets = [0, 16], sizes = [20, 16], strides = [1, 1]} : vector<20x64xf32> to vector<20x16xf32>
    %cst_86 = arith.constant dense<0.000000e+00> : vector<20x20xf32>
    %191 = tpu.matmul %189, %190, %cst_86 {dimension_numbers = #tpu.dot_dimension_numbers<[1], [1], [0], [0], [0, 0, 1, 0], [], []>} : vector<20x16xf32>, vector<20x16xf32>, vector<20x20xf32> -> vector<20x20xf32>
    %192 = arith.addf %191, %1 : vector<20x20xf32>
    %cst_87 = arith.constant dense<0xFF800000> : vector<20xf32>
    %193 = vector.multi_reduction <maximumf>, %192, %cst_87 [1] : vector<20x20xf32> to vector<20xf32>
    %194 = vector.shape_cast %193 : vector<20xf32> to vector<20x1xf32>
    %195 = vector.broadcast %194 : vector<20x1xf32> to vector<20x20xf32>
    %196 = arith.subf %192, %195 : vector<20x20xf32>
    %197 = math.exp %196 : vector<20x20xf32>
    %cst_88 = arith.constant dense<0.000000e+00> : vector<20xf32>
    %198 = vector.multi_reduction <add>, %197, %cst_88 [1] : vector<20x20xf32> to vector<20xf32>
    %199 = vector.shape_cast %198 : vector<20xf32> to vector<20x1xf32>
    %200 = tpu.reciprocal %199 {approx = true} : vector<20x1xf32> -> vector<20x1xf32>
    %201 = vector.broadcast %200 : vector<20x1xf32> to vector<20x20xf32>
    %202 = arith.mulf %197, %201 : vector<20x20xf32>
    %203 = vector.extract_strided_slice %172 {offsets = [0, 16], sizes = [20, 16], strides = [1, 1]} : vector<20x64xf32> to vector<20x16xf32>
    %cst_89 = arith.constant dense<0.000000e+00> : vector<20x16xf32>
    %204 = tpu.matmul %202, %203, %cst_89 {dimension_numbers = #tpu.dot_dimension_numbers<[1], [0], [0], [1], [0, 0, 1, 1], [], []>} : vector<20x20xf32>, vector<20x16xf32>, vector<20x16xf32> -> vector<20x16xf32>
    %205 = vector.extract_strided_slice %170 {offsets = [0, 32], sizes = [20, 16], strides = [1, 1]} : vector<20x64xf32> to vector<20x16xf32>
    %206 = vector.extract_strided_slice %171 {offsets = [0, 32], sizes = [20, 16], strides = [1, 1]} : vector<20x64xf32> to vector<20x16xf32>
    %cst_90 = arith.constant dense<0.000000e+00> : vector<20x20xf32>
    %207 = tpu.matmul %205, %206, %cst_90 {dimension_numbers = #tpu.dot_dimension_numbers<[1], [1], [0], [0], [0, 0, 1, 0], [], []>} : vector<20x16xf32>, vector<20x16xf32>, vector<20x20xf32> -> vector<20x20xf32>
    %208 = arith.addf %207, %1 : vector<20x20xf32>
    %cst_91 = arith.constant dense<0xFF800000> : vector<20xf32>
    %209 = vector.multi_reduction <maximumf>, %208, %cst_91 [1] : vector<20x20xf32> to vector<20xf32>
    %210 = vector.shape_cast %209 : vector<20xf32> to vector<20x1xf32>
    %211 = vector.broadcast %210 : vector<20x1xf32> to vector<20x20xf32>
    %212 = arith.subf %208, %211 : vector<20x20xf32>
    %213 = math.exp %212 : vector<20x20xf32>
    %cst_92 = arith.constant dense<0.000000e+00> : vector<20xf32>
    %214 = vector.multi_reduction <add>, %213, %cst_92 [1] : vector<20x20xf32> to vector<20xf32>
    %215 = vector.shape_cast %214 : vector<20xf32> to vector<20x1xf32>
    %216 = tpu.reciprocal %215 {approx = true} : vector<20x1xf32> -> vector<20x1xf32>
    %217 = vector.broadcast %216 : vector<20x1xf32> to vector<20x20xf32>
    %218 = arith.mulf %213, %217 : vector<20x20xf32>
    %219 = vector.extract_strided_slice %172 {offsets = [0, 32], sizes = [20, 16], strides = [1, 1]} : vector<20x64xf32> to vector<20x16xf32>
    %cst_93 = arith.constant dense<0.000000e+00> : vector<20x16xf32>
    %220 = tpu.matmul %218, %219, %cst_93 {dimension_numbers = #tpu.dot_dimension_numbers<[1], [0], [0], [1], [0, 0, 1, 1], [], []>} : vector<20x20xf32>, vector<20x16xf32>, vector<20x16xf32> -> vector<20x16xf32>
    %221 = vector.extract_strided_slice %170 {offsets = [0, 48], sizes = [20, 16], strides = [1, 1]} : vector<20x64xf32> to vector<20x16xf32>
    %222 = vector.extract_strided_slice %171 {offsets = [0, 48], sizes = [20, 16], strides = [1, 1]} : vector<20x64xf32> to vector<20x16xf32>
    %cst_94 = arith.constant dense<0.000000e+00> : vector<20x20xf32>
    %223 = tpu.matmul %221, %222, %cst_94 {dimension_numbers = #tpu.dot_dimension_numbers<[1], [1], [0], [0], [0, 0, 1, 0], [], []>} : vector<20x16xf32>, vector<20x16xf32>, vector<20x20xf32> -> vector<20x20xf32>
    %224 = arith.addf %223, %1 : vector<20x20xf32>
    %cst_95 = arith.constant dense<0xFF800000> : vector<20xf32>
    %225 = vector.multi_reduction <maximumf>, %224, %cst_95 [1] : vector<20x20xf32> to vector<20xf32>
    %226 = vector.shape_cast %225 : vector<20xf32> to vector<20x1xf32>
    %227 = vector.broadcast %226 : vector<20x1xf32> to vector<20x20xf32>
    %228 = arith.subf %224, %227 : vector<20x20xf32>
    %229 = math.exp %228 : vector<20x20xf32>
    %cst_96 = arith.constant dense<0.000000e+00> : vector<20xf32>
    %230 = vector.multi_reduction <add>, %229, %cst_96 [1] : vector<20x20xf32> to vector<20xf32>
    %231 = vector.shape_cast %230 : vector<20xf32> to vector<20x1xf32>
    %232 = tpu.reciprocal %231 {approx = true} : vector<20x1xf32> -> vector<20x1xf32>
    %233 = vector.broadcast %232 : vector<20x1xf32> to vector<20x20xf32>
    %234 = arith.mulf %229, %233 : vector<20x20xf32>
    %235 = vector.extract_strided_slice %172 {offsets = [0, 48], sizes = [20, 16], strides = [1, 1]} : vector<20x64xf32> to vector<20x16xf32>
    %cst_97 = arith.constant dense<0.000000e+00> : vector<20x16xf32>
    %236 = tpu.matmul %234, %235, %cst_97 {dimension_numbers = #tpu.dot_dimension_numbers<[1], [0], [0], [1], [0, 0, 1, 1], [], []>} : vector<20x20xf32>, vector<20x16xf32>, vector<20x16xf32> -> vector<20x16xf32>
    %237 = tpu.concatenate %188, %204, %220, %236 in 1 : vector<20x16xf32>, vector<20x16xf32>, vector<20x16xf32>, vector<20x16xf32> -> vector<20x64xf32>
    %c1_98 = arith.constant 1 : index
    %c0_99 = arith.constant 0 : index
    %c0_100 = arith.constant 0 : index
    %238 = vector.load %arg8[%c1_98, %c0_99, %c0_100] : memref<2x64x64xf32, #tpu.memory_space<vmem>>, vector<1x64x64xf32>
    %239 = vector.shape_cast %238 : vector<1x64x64xf32> to vector<64x64xf32>
    %cst_101 = arith.constant dense<0.000000e+00> : vector<20x64xf32>
    %240 = tpu.matmul %237, %239, %cst_101 {dimension_numbers = #tpu.dot_dimension_numbers<[1], [0], [0], [1], [0, 0, 1, 1], [], []>} : vector<20x64xf32>, vector<64x64xf32>, vector<20x64xf32> -> vector<20x64xf32>
    %c1_102 = arith.constant 1 : index
    %c0_103 = arith.constant 0 : index
    %c0_104 = arith.constant 0 : index
    %241 = vector.load %arg9[%c1_102, %c0_103, %c0_104] : memref<2x1x64xf32, #tpu.memory_space<vmem>>, vector<1x1x64xf32>
    %242 = vector.shape_cast %241 : vector<1x1x64xf32> to vector<1x64xf32>
    %243 = vector.broadcast %242 : vector<1x64xf32> to vector<20x64xf32>
    %244 = arith.addf %240, %243 : vector<20x64xf32>
    %245 = arith.addf %160, %244 : vector<20x64xf32>
    %c1_105 = arith.constant 1 : index
    %c0_106 = arith.constant 0 : index
    %c0_107 = arith.constant 0 : index
    %246 = vector.load %arg10[%c1_105, %c0_106, %c0_107] : memref<2x1x64xf32, #tpu.memory_space<vmem>>, vector<1x1x64xf32>
    %247 = vector.shape_cast %246 : vector<1x1x64xf32> to vector<1x64xf32>
    %c1_108 = arith.constant 1 : index
    %c0_109 = arith.constant 0 : index
    %c0_110 = arith.constant 0 : index
    %248 = vector.load %arg11[%c1_108, %c0_109, %c0_110] : memref<2x1x64xf32, #tpu.memory_space<vmem>>, vector<1x1x64xf32>
    %249 = vector.shape_cast %248 : vector<1x1x64xf32> to vector<1x64xf32>
    %cst_111 = arith.constant dense<0.000000e+00> : vector<20xf32>
    %250 = vector.multi_reduction <add>, %245, %cst_111 [1] : vector<20x64xf32> to vector<20xf32>
    %251 = vector.shape_cast %250 : vector<20xf32> to vector<20x1xf32>
    %cst_112 = arith.constant 6.400000e+01 : f32
    %252 = vector.broadcast %cst_112 : f32 to vector<20x1xf32>
    %253 = arith.divf %251, %252 : vector<20x1xf32>
    %254 = vector.broadcast %253 : vector<20x1xf32> to vector<20x64xf32>
    %255 = arith.subf %245, %254 : vector<20x64xf32>
    %256 = arith.mulf %255, %255 : vector<20x64xf32>
    %cst_113 = arith.constant dense<0.000000e+00> : vector<20xf32>
    %257 = vector.multi_reduction <add>, %256, %cst_113 [1] : vector<20x64xf32> to vector<20xf32>
    %258 = vector.shape_cast %257 : vector<20xf32> to vector<20x1xf32>
    %cst_114 = arith.constant 6.400000e+01 : f32
    %259 = vector.broadcast %cst_114 : f32 to vector<20x1xf32>
    %260 = arith.divf %258, %259 : vector<20x1xf32>
    %cst_115 = arith.constant 9.99999974E-6 : f32
    %261 = vector.broadcast %cst_115 : f32 to vector<20x1xf32>
    %262 = arith.addf %260, %261 : vector<20x1xf32>
    %263 = math.rsqrt %262 : vector<20x1xf32>
    %264 = vector.broadcast %253 : vector<20x1xf32> to vector<20x64xf32>
    %265 = arith.subf %245, %264 : vector<20x64xf32>
    %266 = vector.broadcast %263 : vector<20x1xf32> to vector<20x64xf32>
    %267 = arith.mulf %265, %266 : vector<20x64xf32>
    %268 = vector.broadcast %247 : vector<1x64xf32> to vector<20x64xf32>
    %269 = arith.mulf %267, %268 : vector<20x64xf32>
    %270 = vector.broadcast %249 : vector<1x64xf32> to vector<20x64xf32>
    %271 = arith.addf %269, %270 : vector<20x64xf32>
    %c1_116 = arith.constant 1 : index
    %c0_117 = arith.constant 0 : index
    %c0_118 = arith.constant 0 : index
    %272 = vector.load %arg14[%c1_116, %c0_117, %c0_118] : memref<2x64x256xf32, #tpu.memory_space<vmem>>, vector<1x64x256xf32>
    %273 = vector.shape_cast %272 : vector<1x64x256xf32> to vector<64x256xf32>
    %cst_119 = arith.constant dense<0.000000e+00> : vector<20x256xf32>
    %274 = tpu.matmul %271, %273, %cst_119 {dimension_numbers = #tpu.dot_dimension_numbers<[1], [0], [0], [1], [0, 0, 1, 1], [], []>} : vector<20x64xf32>, vector<64x256xf32>, vector<20x256xf32> -> vector<20x256xf32>
    %c1_120 = arith.constant 1 : index
    %c0_121 = arith.constant 0 : index
    %c0_122 = arith.constant 0 : index
    %275 = vector.load %arg15[%c1_120, %c0_121, %c0_122] : memref<2x1x256xf32, #tpu.memory_space<vmem>>, vector<1x1x256xf32>
    %276 = vector.shape_cast %275 : vector<1x1x256xf32> to vector<1x256xf32>
    %277 = vector.broadcast %276 : vector<1x256xf32> to vector<20x256xf32>
    %278 = arith.addf %274, %277 : vector<20x256xf32>
    %cst_123 = arith.constant 0.000000e+00 : f32
    %279 = vector.broadcast %cst_123 : f32 to vector<20x256xf32>
    %280 = arith.maximumf %278, %279 : vector<20x256xf32>
    %c1_124 = arith.constant 1 : index
    %c0_125 = arith.constant 0 : index
    %c0_126 = arith.constant 0 : index
    %281 = vector.load %arg16[%c1_124, %c0_125, %c0_126] : memref<2x256x64xf32, #tpu.memory_space<vmem>>, vector<1x256x64xf32>
    %282 = vector.shape_cast %281 : vector<1x256x64xf32> to vector<256x64xf32>
    %cst_127 = arith.constant dense<0.000000e+00> : vector<20x64xf32>
    %283 = tpu.matmul %280, %282, %cst_127 {dimension_numbers = #tpu.dot_dimension_numbers<[1], [0], [0], [1], [0, 0, 1, 1], [], []>} : vector<20x256xf32>, vector<256x64xf32>, vector<20x64xf32> -> vector<20x64xf32>
    %c1_128 = arith.constant 1 : index
    %c0_129 = arith.constant 0 : index
    %c0_130 = arith.constant 0 : index
    %284 = vector.load %arg17[%c1_128, %c0_129, %c0_130] : memref<2x1x64xf32, #tpu.memory_space<vmem>>, vector<1x1x64xf32>
    %285 = vector.shape_cast %284 : vector<1x1x64xf32> to vector<1x64xf32>
    %286 = vector.broadcast %285 : vector<1x64xf32> to vector<20x64xf32>
    %287 = arith.addf %283, %286 : vector<20x64xf32>
    %288 = arith.addf %271, %287 : vector<20x64xf32>
    %c1_131 = arith.constant 1 : index
    %c0_132 = arith.constant 0 : index
    %c0_133 = arith.constant 0 : index
    %289 = vector.load %arg12[%c1_131, %c0_132, %c0_133] : memref<2x1x64xf32, #tpu.memory_space<vmem>>, vector<1x1x64xf32>
    %290 = vector.shape_cast %289 : vector<1x1x64xf32> to vector<1x64xf32>
    %c1_134 = arith.constant 1 : index
    %c0_135 = arith.constant 0 : index
    %c0_136 = arith.constant 0 : index
    %291 = vector.load %arg13[%c1_134, %c0_135, %c0_136] : memref<2x1x64xf32, #tpu.memory_space<vmem>>, vector<1x1x64xf32>
    %292 = vector.shape_cast %291 : vector<1x1x64xf32> to vector<1x64xf32>
    %cst_137 = arith.constant dense<0.000000e+00> : vector<20xf32>
    %293 = vector.multi_reduction <add>, %288, %cst_137 [1] : vector<20x64xf32> to vector<20xf32>
    %294 = vector.shape_cast %293 : vector<20xf32> to vector<20x1xf32>
    %cst_138 = arith.constant 6.400000e+01 : f32
    %295 = vector.broadcast %cst_138 : f32 to vector<20x1xf32>
    %296 = arith.divf %294, %295 : vector<20x1xf32>
    %297 = vector.broadcast %296 : vector<20x1xf32> to vector<20x64xf32>
    %298 = arith.subf %288, %297 : vector<20x64xf32>
    %299 = arith.mulf %298, %298 : vector<20x64xf32>
    %cst_139 = arith.constant dense<0.000000e+00> : vector<20xf32>
    %300 = vector.multi_reduction <add>, %299, %cst_139 [1] : vector<20x64xf32> to vector<20xf32>
    %301 = vector.shape_cast %300 : vector<20xf32> to vector<20x1xf32>
    %cst_140 = arith.constant 6.400000e+01 : f32
    %302 = vector.broadcast %cst_140 : f32 to vector<20x1xf32>
    %303 = arith.divf %301, %302 : vector<20x1xf32>
    %cst_141 = arith.constant 9.99999974E-6 : f32
    %304 = vector.broadcast %cst_141 : f32 to vector<20x1xf32>
    %305 = arith.addf %303, %304 : vector<20x1xf32>
    %306 = math.rsqrt %305 : vector<20x1xf32>
    %307 = vector.broadcast %296 : vector<20x1xf32> to vector<20x64xf32>
    %308 = arith.subf %288, %307 : vector<20x64xf32>
    %309 = vector.broadcast %306 : vector<20x1xf32> to vector<20x64xf32>
    %310 = arith.mulf %308, %309 : vector<20x64xf32>
    %311 = vector.broadcast %290 : vector<1x64xf32> to vector<20x64xf32>
    %312 = arith.mulf %310, %311 : vector<20x64xf32>
    %313 = vector.broadcast %292 : vector<1x64xf32> to vector<20x64xf32>
    %314 = arith.addf %312, %313 : vector<20x64xf32>
    %c0_142 = arith.constant 0 : index
    %c0_143 = arith.constant 0 : index
    %315 = vector.load %arg3[%c0_142, %c0_143] : memref<2x20xf32, #tpu.memory_space<vmem>>, vector<2x20xf32>
    %cst_144 = arith.constant dense<0.000000e+00> : vector<2x64xf32>
    %316 = tpu.matmul %315, %314, %cst_144 {dimension_numbers = #tpu.dot_dimension_numbers<[1], [0], [0], [1], [0, 0, 1, 1], [], []>} : vector<2x20xf32>, vector<20x64xf32>, vector<2x64xf32> -> vector<2x64xf32>
    %c0_145 = arith.constant 0 : index
    %c0_146 = arith.constant 0 : index
    %317 = vector.load %arg18[%c0_145, %c0_146] : memref<2x64xf32, #tpu.memory_space<vmem>>, vector<2x64xf32>
    tpu.vector_store %arg18[%c0_145, %c0_146], %316 {strides = array<i32>} : memref<2x64xf32, #tpu.memory_space<vmem>>, vector<2x64xf32>,
    return
  }
  func.func @transform_0(%arg0: i32) -> (i32, i32) {
    %c0_i32 = arith.constant 0 : i32
    %c0_i32_0 = arith.constant 0 : i32
    return %arg0, %c0_i32 : i32, i32
  }
  func.func @transform_1(%arg0: i32) -> (i32, i32) {
    %c0_i32 = arith.constant 0 : i32
    %c0_i32_0 = arith.constant 0 : i32
    %c0_i32_1 = arith.constant 0 : i32
    return %c0_i32, %c0_i32_0 : i32, i32
  }
  func.func @transform_2(%arg0: i32) -> (i32, i32) {
    %c0_i32 = arith.constant 0 : i32
    %c0_i32_0 = arith.constant 0 : i32
    %c0_i32_1 = arith.constant 0 : i32
    return %c0_i32, %c0_i32_0 : i32, i32
  }
  func.func @transform_3(%arg0: i32) -> (i32, i32) {
    %c0_i32 = arith.constant 0 : i32
    %c0_i32_0 = arith.constant 0 : i32
    %c0_i32_1 = arith.constant 0 : i32
    return %c0_i32, %c0_i32_0 : i32, i32
  }
  func.func @transform_4(%arg0: i32) -> (i32, i32) {
    %c0_i32 = arith.constant 0 : i32
    %c0_i32_0 = arith.constant 0 : i32
    %c0_i32_1 = arith.constant 0 : i32
    return %c0_i32, %c0_i32_0 : i32, i32
  }
  func.func @transform_5(%arg0: i32) -> (i32, i32, i32) {
    %c0_i32 = arith.constant 0 : i32
    %c0_i32_0 = arith.constant 0 : i32
    %c0_i32_1 = arith.constant 0 : i32
    %c0_i32_2 = arith.constant 0 : i32
    return %c0_i32, %c0_i32_0, %c0_i32_1 : i32, i32, i32
  }
  func.func @transform_6(%arg0: i32) -> (i32, i32, i32) {
    %c0_i32 = arith.constant 0 : i32
    %c0_i32_0 = arith.constant 0 : i32
    %c0_i32_1 = arith.constant 0 : i32
    %c0_i32_2 = arith.constant 0 : i32
    return %c0_i32, %c0_i32_0, %c0_i32_1 : i32, i32, i32
  }
  func.func @transform_7(%arg0: i32) -> (i32, i32, i32) {
    %c0_i32 = arith.constant 0 : i32
    %c0_i32_0 = arith.constant 0 : i32
    %c0_i32_1 = arith.constant 0 : i32
    %c0_i32_2 = arith.constant 0 : i32
    return %c0_i32, %c0_i32_0, %c0_i32_1 : i32, i32, i32
  }
  func.func @transform_8(%arg0: i32) -> (i32, i32, i32) {
    %c0_i32 = arith.constant 0 : i32
    %c0_i32_0 = arith.constant 0 : i32
    %c0_i32_1 = arith.constant 0 : i32
    %c0_i32_2 = arith.constant 0 : i32
    return %c0_i32, %c0_i32_0, %c0_i32_1 : i32, i32, i32
  }
  func.func @transform_9(%arg0: i32) -> (i32, i32, i32) {
    %c0_i32 = arith.constant 0 : i32
    %c0_i32_0 = arith.constant 0 : i32
    %c0_i32_1 = arith.constant 0 : i32
    %c0_i32_2 = arith.constant 0 : i32
    return %c0_i32, %c0_i32_0, %c0_i32_1 : i32, i32, i32
  }
  func.func @transform_10(%arg0: i32) -> (i32, i32, i32) {
    %c0_i32 = arith.constant 0 : i32
    %c0_i32_0 = arith.constant 0 : i32
    %c0_i32_1 = arith.constant 0 : i32
    %c0_i32_2 = arith.constant 0 : i32
    return %c0_i32, %c0_i32_0, %c0_i32_1 : i32, i32, i32
  }
  func.func @transform_11(%arg0: i32) -> (i32, i32, i32) {
    %c0_i32 = arith.constant 0 : i32
    %c0_i32_0 = arith.constant 0 : i32
    %c0_i32_1 = arith.constant 0 : i32
    %c0_i32_2 = arith.constant 0 : i32
    return %c0_i32, %c0_i32_0, %c0_i32_1 : i32, i32, i32
  }
  func.func @transform_12(%arg0: i32) -> (i32, i32, i32) {
    %c0_i32 = arith.constant 0 : i32
    %c0_i32_0 = arith.constant 0 : i32
    %c0_i32_1 = arith.constant 0 : i32
    %c0_i32_2 = arith.constant 0 : i32
    return %c0_i32, %c0_i32_0, %c0_i32_1 : i32, i32, i32
  }
  func.func @transform_13(%arg0: i32) -> (i32, i32, i32) {
    %c0_i32 = arith.constant 0 : i32
    %c0_i32_0 = arith.constant 0 : i32
    %c0_i32_1 = arith.constant 0 : i32
    %c0_i32_2 = arith.constant 0 : i32
    return %c0_i32, %c0_i32_0, %c0_i32_1 : i32, i32, i32
  }
  func.func @transform_14(%arg0: i32) -> (i32, i32, i32) {
    %c0_i32 = arith.constant 0 : i32
    %c0_i32_0 = arith.constant 0 : i32
    %c0_i32_1 = arith.constant 0 : i32
    %c0_i32_2 = arith.constant 0 : i32
    return %c0_i32, %c0_i32_0, %c0_i32_1 : i32, i32, i32
  }
  func.func @transform_15(%arg0: i32) -> (i32, i32, i32) {
    %c0_i32 = arith.constant 0 : i32
    %c0_i32_0 = arith.constant 0 : i32
    %c0_i32_1 = arith.constant 0 : i32
    %c0_i32_2 = arith.constant 0 : i32
    return %c0_i32, %c0_i32_0, %c0_i32_1 : i32, i32, i32
  }
  func.func @transform_16(%arg0: i32) -> (i32, i32, i32) {
    %c0_i32 = arith.constant 0 : i32
    %c0_i32_0 = arith.constant 0 : i32
    %c0_i32_1 = arith.constant 0 : i32
    %c0_i32_2 = arith.constant 0 : i32
    return %c0_i32, %c0_i32_0, %c0_i32_1 : i32, i32, i32
  }
  func.func @transform_17(%arg0: i32) -> (i32, i32) {
    %c0_i32 = arith.constant 0 : i32
    %c0_i32_0 = arith.constant 0 : i32
    return %arg0, %c0_i32 : i32, i32
  }
}

</mosaic_0001>

<llo_original>
// kernel: tpu_custom_call.1
$region0: #{tpu_custom_call.1}
  #allocation0 [shape = 'u32[]', space=smem, size = 0x4, offset = 0x4, fixed_abs, tag = 'smem constant byte address 0x4 - core index']
  #allocation1 [shape = 'u32[144,128]{1,0:T(1,128)}', space=vmem, size = 0x12000, scoped, tag = 'internal scratch']
  %s0 = inlined_call_operand.vmem [shape: f32[20,4], index: 0, kind: input, shape index: {}]
  %s1 = inlined_call_operand.vmem [shape: f32[20,20], index: 1, kind: input, shape index: {}]
  %s2 = inlined_call_operand.vmem [shape: f32[2,20], index: 2, kind: input, shape index: {}]
  %s3 = inlined_call_operand.vmem [shape: f32[4,64], index: 3, kind: input, shape index: {}]
  %s4 = inlined_call_operand.vmem [shape: f32[1,64], index: 4, kind: input, shape index: {}]
  %s5 = inlined_call_operand.vmem [shape: f32[2,64,192], index: 5, kind: input, shape index: {}]
  %s6 = inlined_call_operand.vmem [shape: f32[2,1,192], index: 6, kind: input, shape index: {}]
  %s7 = inlined_call_operand.vmem [shape: f32[2,64,64], index: 7, kind: input, shape index: {}]
  %s8 = inlined_call_operand.vmem [shape: f32[2,1,64], index: 8, kind: input, shape index: {}]
  %s9 = inlined_call_operand.vmem [shape: f32[2,1,64], index: 9, kind: input, shape index: {}]
  %s10 = inlined_call_operand.vmem [shape: f32[2,1,64], index: 10, kind: input, shape index: {}]
  %s11 = inlined_call_operand.vmem [shape: f32[2,1,64], index: 11, kind: input, shape index: {}]
  %s12 = inlined_call_operand.vmem [shape: f32[2,1,64], index: 12, kind: input, shape index: {}]
  %s13 = inlined_call_operand.vmem [shape: f32[2,64,256], index: 13, kind: input, shape index: {}]
  %s14 = inlined_call_operand.vmem [shape: f32[2,1,256], index: 14, kind: input, shape index: {}]
  %s15 = inlined_call_operand.vmem [shape: f32[2,256,64], index: 15, kind: input, shape index: {}]
  %s16 = inlined_call_operand.vmem [shape: f32[2,1,64], index: 16, kind: input, shape index: {}]
  %s17 = inlined_call_operand.hbm [shape: f32[2,64], index: 17, kind: output, shape index: {}]
  %s18 = sld [smem:[#allocation0]]
  $region78: #{tpu_custom_call.1} parent=0
    _
  %s20 = ssub.s32 1, %s18
  %s21 = scalar_select 0, %s20, %s18
  $region1: #{tpu_custom_call.1} parent=0
    #allocation2 [shape = 'u8[1024]{0}', space=vmem, size = 0x400, scoped, tag = 'output window, operand 0, single buffered']
    #allocation3 [shape = 's32[1]{0}', space=sflag, size = 0x4, scoped, tag = 'scoped memory for tpu_custom_call.1']
    %22 = vsyncpa [#allocation3], 0
    // Predicated region
    $region2: #{tpu_custom_call.1} parent=1 // pred_check
      _
    $region3: #{tpu_custom_call.1} parent=1 // pred_check_branch
      %24 = sbr.rel (0) target = $region5
    $region4: #{tpu_custom_call.1} parent=1 // pred_region
      _
    $region5: #{tpu_custom_call.1} parent=1 // pred_fallthru
      _
    // Predicated region
    $region6: #{tpu_custom_call.1} parent=1 // pred_check
      _
    $region7: #{tpu_custom_call.1} parent=1 // pred_check_branch
      %26 = sbr.rel (0) target = $region9
    $region8: #{tpu_custom_call.1} parent=1 // pred_region
      _
    $region9: #{tpu_custom_call.1} parent=1 // pred_fallthru
      _
    // Predicated region
    $region10: #{tpu_custom_call.1} parent=1 // pred_check
      _
    $region11: #{tpu_custom_call.1} parent=1 // pred_check_branch
      %28 = sbr.rel (0) target = $region13
    $region12: #{tpu_custom_call.1} parent=1 // pred_region
      _
    $region13: #{tpu_custom_call.1} parent=1 // pred_fallthru
      _
    // Predicated region
    $region14: #{tpu_custom_call.1} parent=1 // pred_check
      _
    $region15: #{tpu_custom_call.1} parent=1 // pred_check_branch
      %30 = sbr.rel (0) target = $region17
    $region16: #{tpu_custom_call.1} parent=1 // pred_region
      _
    $region17: #{tpu_custom_call.1} parent=1 // pred_fallthru
      _
    // Predicated region
    $region18: #{tpu_custom_call.1} parent=1 // pred_check
      _
    $region19: #{tpu_custom_call.1} parent=1 // pred_check_branch
      %32 = sbr.rel (0) target = $region21
    $region20: #{tpu_custom_call.1} parent=1 // pred_region
      _
    $region21: #{tpu_custom_call.1} parent=1 // pred_fallthru
      _
    // Predicated region
    $region22: #{tpu_custom_call.1} parent=1 // pred_check
      _
    $region23: #{tpu_custom_call.1} parent=1 // pred_check_branch
      %34 = sbr.rel (0) target = $region25
    $region24: #{tpu_custom_call.1} parent=1 // pred_region
      _
    $region25: #{tpu_custom_call.1} parent=1 // pred_fallthru
      _
    // Predicated region
    $region26: #{tpu_custom_call.1} parent=1 // pred_check
      _
    $region27: #{tpu_custom_call.1} parent=1 // pred_check_branch
      %36 = sbr.rel (0) target = $region29
    $region28: #{tpu_custom_call.1} parent=1 // pred_region
      _
    $region29: #{tpu_custom_call.1} parent=1 // pred_fallthru
      _
    // Predicated region
    $region30: #{tpu_custom_call.1} parent=1 // pred_check
      _
    $region31: #{tpu_custom_call.1} parent=1 // pred_check_branch
      %38 = sbr.rel (0) target = $region33
    $region32: #{tpu_custom_call.1} parent=1 // pred_region
      _
    $region33: #{tpu_custom_call.1} parent=1 // pred_fallthru
      _
    // Predicated region
    $region34: #{tpu_custom_call.1} parent=1 // pred_check
      _
    $region35: #{tpu_custom_call.1} parent=1 // pred_check_branch
      %40 = sbr.rel (0) target = $region37
    $region36: #{tpu_custom_call.1} parent=1 // pred_region
      _
    $region37: #{tpu_custom_call.1} parent=1 // pred_fallthru
      _
    // Predicated region
    $region38: #{tpu_custom_call.1} parent=1 // pred_check
      _
    $region39: #{tpu_custom_call.1} parent=1 // pred_check_branch
      %42 = sbr.rel (0) target = $region41
    $region40: #{tpu_custom_call.1} parent=1 // pred_region
      _
    $region41: #{tpu_custom_call.1} parent=1 // pred_fallthru
      _
    // Predicated region
    $region42: #{tpu_custom_call.1} parent=1 // pred_check
      _
    $region43: #{tpu_custom_call.1} parent=1 // pred_check_branch
      %44 = sbr.rel (0) target = $region45
    $region44: #{tpu_custom_call.1} parent=1 // pred_region
      _
    $region45: #{tpu_custom_call.1} parent=1 // pred_fallthru
      _
    // Predicated region
    $region46: #{tpu_custom_call.1} parent=1 // pred_check
      _
    $region47: #{tpu_custom_call.1} parent=1 // pred_check_branch
      %46 = sbr.rel (0) target = $region49
    $region48: #{tpu_custom_call.1} parent=1 // pred_region
      _
    $region49: #{tpu_custom_call.1} parent=1 // pred_fallthru
      _
    // Predicated region
    $region50: #{tpu_custom_call.1} parent=1 // pred_check
      _
    $region51: #{tpu_custom_call.1} parent=1 // pred_check_branch
      %48 = sbr.rel (0) target = $region53
    $region52: #{tpu_custom_call.1} parent=1 // pred_region
      _
    $region53: #{tpu_custom_call.1} parent=1 // pred_fallthru
      _
    // Predicated region
    $region54: #{tpu_custom_call.1} parent=1 // pred_check
      _
    $region55: #{tpu_custom_call.1} parent=1 // pred_check_branch
      %50 = sbr.rel (0) target = $region57
    $region56: #{tpu_custom_call.1} parent=1 // pred_region
      _
    $region57: #{tpu_custom_call.1} parent=1 // pred_fallthru
      _
    // Predicated region
    $region58: #{tpu_custom_call.1} parent=1 // pred_check
      _
    $region59: #{tpu_custom_call.1} parent=1 // pred_check_branch
      %52 = sbr.rel (0) target = $region61
    $region60: #{tpu_custom_call.1} parent=1 // pred_region
      _
    $region61: #{tpu_custom_call.1} parent=1 // pred_fallthru
      _
    // Predicated region
    $region62: #{tpu_custom_call.1} parent=1 // pred_check
      _
    $region63: #{tpu_custom_call.1} parent=1 // pred_check_branch
      %54 = sbr.rel (0) target = $region65
    $region64: #{tpu_custom_call.1} parent=1 // pred_region
      _
    $region65: #{tpu_custom_call.1} parent=1 // pred_fallthru
      _
    // Predicated region
    $region66: #{tpu_custom_call.1} parent=1 // pred_check
      _
    $region67: #{tpu_custom_call.1} parent=1 // pred_check_branch
      %56 = sbr.rel (0) target = $region69
    $region68: #{tpu_custom_call.1} parent=1 // pred_region
      _
    $region69: #{tpu_custom_call.1} parent=1 // pred_fallthru
      _
    %v57 = vld [vmem:[%s0] sm:$0xff]
    %v58 = vld [vmem:[%s0 + $0x8] sm:$0xff]
    %v59 = vld [vmem:[%s0 + $0x10] sm:$0xf]
    %v60 = vld [vmem:[%s1] sm:$0xff]
    %v61 = vld [vmem:[%s1 + $0x8] sm:$0xff]
    %v62 = vld [vmem:[%s1 + $0x10] sm:$0xf]
    %v63 = vld [vmem:[%s3] sm:$0xf]
    %v64 = vld [vmem:[%s4] sm:$0x1]
    %v66 = vlaneseq
    %v67 = vshrl.u32 %v66, 7
    %v68 = vsub.s32 0, %v67
    %v69 = vrot.slane %v64, %v68
    %vm71 = vcmask 31744
    %v73 = vsel %vm71, %v57, 0
    %v76 = vsel %vm71, %v58, 0
    %v79 = vsel %vm71, %v59, 0
    %vm81 = vcmask 1043456
    %v83 = vsel %vm81, %v63, 0
    %85 = vmatprep.subr.mxu0 0.0
    %86 = vmatpush1.msra.mxu0 %v83
    %87 = vmatprep.subr.mxu0 0.0
    %88 = vmatpush1.msra.mxu0 0.0
    %89 = vmatprep.subr.mxu0 0.0
    %90 = vmatpush1.msra.mxu0 0.0
    %91 = vmatprep.subr.mxu0 0.0
    %92 = vmatpush1.msra.mxu0 0.0
    %93 = vmatprep.subr.mxu0 0.0
    %94 = vmatpush1.msra.mxu0 0.0
    %95 = vmatprep.subr.mxu0 0.0
    %96 = vmatpush1.msra.mxu0 0.0
    %97 = vmatprep.subr.mxu0 0.0
    %98 = vmatpush1.msra.mxu0 0.0
    %99 = vmatprep.subr.mxu0 0.0
    %100 = vmatpush1.msra.mxu0 0.0
    %101 = vmatprep.subr.mxu0 0.0
    %102 = vmatpush1.msra.mxu0 0.0
    %103 = vmatprep.subr.mxu0 0.0
    %104 = vmatpush1.msra.mxu0 0.0
    %105 = vmatprep.subr.mxu0 0.0
    %106 = vmatpush1.msra.mxu0 0.0
    %107 = vmatprep.subr.mxu0 0.0
    %108 = vmatpush1.msra.mxu0 0.0
    %109 = vmatprep.subr.mxu0 0.0
    %110 = vmatpush1.msra.mxu0 0.0
    %111 = vmatprep.subr.mxu0 0.0
    %112 = vmatpush1.msra.mxu0 0.0
    %113 = vmatprep.subr.mxu0 0.0
    %114 = vmatpush1.msra.mxu0 0.0
    %115 = vmatprep.subr.mxu0 0.0
    %116 = vmatpush1.msra.mxu0 0.0
    %117 = vmatprep.subr.mxu0 0.0
    %118 = vmatpush1.msra.mxu0 0.0
    %119 = vmatprep.subr.mxu0 0.0
    %120 = vmatpush1.msra.mxu0 0.0
    %121 = vmatprep.subr.mxu0 0.0
    %122 = vmatpush1.msra.mxu0 0.0
    %123 = vmatprep.subr.mxu0 0.0
    %124 = vmatpush1.msra.mxu0 0.0
    %125 = vmatprep.subr.mxu0 0.0
    %126 = vmatpush1.msra.mxu0 0.0
    %127 = vmatprep.subr.mxu0 0.0
    %128 = vmatpush1.msra.mxu0 0.0
    %129 = vmatprep.subr.mxu0 0.0
    %130 = vmatpush1.msra.mxu0 0.0
    %131 = vmatprep.subr.mxu0 0.0
    %132 = vmatpush1.msra.mxu0 0.0
    %133 = vmatprep.subr.mxu0 0.0
    %134 = vmatpush1.msra.mxu0 0.0
    %135 = vmatprep.subr.mxu0 0.0
    %136 = vmatpush1.msra.mxu0 0.0
    %137 = vmatprep.subr.mxu0 0.0
    %138 = vmatpush1.msra.mxu0 0.0
    %139 = vmatprep.subr.mxu0 0.0
    %140 = vmatpush1.msra.mxu0 0.0
    %141 = vmatprep.subr.mxu0 0.0
    %142 = vmatpush1.msra.mxu0 0.0
    %143 = vmatprep.subr.mxu0 0.0
    %144 = vmatpush1.msra.mxu0 0.0
    %145 = vmatprep.subr.mxu0 0.0
    %146 = vmatpush1.msra.mxu0 0.0
    %147 = vmatprep.subr.mxu0 0.0
    %148 = vmatpush1.msra.mxu0 0.0
    %149 = vmatprep.mubr.f32.mxu0 0.0
    %150 = vmatmul.mubr.f32.gmra.mrb[0].mxu0 %v73
    %v151 = vpop.f32.mrb[0].mxu0
    %v152 = vadd.f32 %v69, %v151
    %v153 = vpop.f32.mrb[0].mxu0
    %154 = vmatprep.mubr.f32.mxu0 0.0
    %155 = vmatmul.mubr.f32.gmra.mrb[0].mxu0 %v76
    %v156 = vpop.f32.mrb[0].mxu0
    %v157 = vadd.f32 %v69, %v156
    %v158 = vpop.f32.mrb[0].mxu0
    %159 = vmatprep.mubr.f32.mxu0 0.0
    %160 = vmatmul.mubr.f32.gmra.mrb[0].mxu0 %v79
    %v161 = vpop.f32.mrb[0].mxu0
    %v162 = vadd.f32 %v69, %v161
    %v163 = vpop.f32.mrb[0].mxu0
    %164 = vdwg.mxu0
    %v165 = vld [vmem:[%s5] sm:$0xff]
    %v166 = vld [vmem:[%s5 + $0x8] sm:$0xff]
    %v167 = vld [vmem:[%s5 + $0x10] sm:$0xff]
    %v168 = vld [vmem:[%s5 + $0x18] sm:$0xff]
    %v169 = vld [vmem:[%s5 + $0x20] sm:$0xff]
    %v170 = vld [vmem:[%s5 + $0x28] sm:$0xff]
    %v171 = vld [vmem:[%s5 + $0x30] sm:$0xff]
    %v172 = vld [vmem:[%s5 + $0x38] sm:$0xff]
    %v173 = vld [vmem:[%s5 + $0x40] sm:$0xff]
    %v174 = vld [vmem:[%s5 + $0x48] sm:$0xff]
    %v175 = vld [vmem:[%s5 + $0x50] sm:$0xff]
    %v176 = vld [vmem:[%s5 + $0x58] sm:$0xff]
    %v177 = vld [vmem:[%s5 + $0x60] sm:$0xff]
    %v178 = vld [vmem:[%s5 + $0x68] sm:$0xff]
    %v179 = vld [vmem:[%s5 + $0x70] sm:$0xff]
    %v180 = vld [vmem:[%s5 + $0x78] sm:$0xff]
    %v181 = vld [vmem:[%s6] sm:$0x3]
    %v183 = vlaneseq
    %v184 = vshrl.u32 %v183, 7
    %v185 = vsub.s32 0, %v184
    %v186 = vrot.slane %v181, %v185
    %v187 = vlaneseq
    %v188 = vshrl.u32 %v187, 7
    %v189 = vsub.s32 1, %v188
    %v190 = vrot.slane %v181, %v189
    %vm193 = vcmask 523264
    %v195 = vsel %vm193, %v152, 0
    %v198 = vsel %vm193, %v157, 0
    %v201 = vsel %vm193, %v162, 0
    %203 = vmatprep.subr.mxu0 %v166
    %204 = vmatpush1.msra.mxu0 %v165
    %205 = vmatprep.subr.mxu0 %v168
    %206 = vmatpush1.msra.mxu0 %v167
    %207 = vmatprep.subr.mxu0 %v170
    %208 = vmatpush1.msra.mxu0 %v169
    %209 = vmatprep.subr.mxu0 %v172
    %210 = vmatpush1.msra.mxu0 %v171
    %211 = vmatprep.subr.mxu0 %v174
    %212 = vmatpush1.msra.mxu0 %v173
    %213 = vmatprep.subr.mxu0 %v176
    %214 = vmatpush1.msra.mxu0 %v175
    %215 = vmatprep.subr.mxu0 %v178
    %216 = vmatpush1.msra.mxu0 %v177
    %217 = vmatprep.subr.mxu0 %v180
    %218 = vmatpush1.msra.mxu0 %v179
    %219 = vmatprep.subr.mxu0 0.0
    %220 = vmatpush1.msra.mxu0 0.0
    %221 = vmatprep.subr.mxu0 0.0
    %222 = vmatpush1.msra.mxu0 0.0
    %223 = vmatprep.subr.mxu0 0.0
    %224 = vmatpush1.msra.mxu0 0.0
    %225 = vmatprep.subr.mxu0 0.0
    %226 = vmatpush1.msra.mxu0 0.0
    %227 = vmatprep.subr.mxu0 0.0
    %228 = vmatpush1.msra.mxu0 0.0
    %229 = vmatprep.subr.mxu0 0.0
    %230 = vmatpush1.msra.mxu0 0.0
    %231 = vmatprep.subr.mxu0 0.0
    %232 = vmatpush1.msra.mxu0 0.0
    %233 = vmatprep.subr.mxu0 0.0
    %234 = vmatpush1.msra.mxu0 0.0
    %235 = vmatprep.subr.mxu0 0.0
    %236 = vmatpush1.msra.mxu0 0.0
    %237 = vmatprep.subr.mxu0 0.0
    %238 = vmatpush1.msra.mxu0 0.0
    %239 = vmatprep.subr.mxu0 0.0
    %240 = vmatpush1.msra.mxu0 0.0
    %241 = vmatprep.subr.mxu0 0.0
    %242 = vmatpush1.msra.mxu0 0.0
    %243 = vmatprep.subr.mxu0 0.0
    %244 = vmatpush1.msra.mxu0 0.0
    %245 = vmatprep.subr.mxu0 0.0
    %246 = vmatpush1.msra.mxu0 0.0
    %247 = vmatprep.subr.mxu0 0.0
    %248 = vmatpush1.msra.mxu0 0.0
    %249 = vmatprep.subr.mxu0 0.0
    %250 = vmatpush1.msra.mxu0 0.0
    %251 = vmatprep.subr.mxu0 0.0
    %252 = vmatpush1.msra.mxu0 0.0
    %253 = vmatprep.subr.mxu0 0.0
    %254 = vmatpush1.msra.mxu0 0.0
    %255 = vmatprep.subr.mxu0 0.0
    %256 = vmatpush1.msra.mxu0 0.0
    %257 = vmatprep.subr.mxu0 0.0
    %258 = vmatpush1.msra.mxu0 0.0
    %259 = vmatprep.subr.mxu0 0.0
    %260 = vmatpush1.msra.mxu0 0.0
    %261 = vmatprep.subr.mxu0 0.0
    %262 = vmatpush1.msra.mxu0 0.0
    %263 = vmatprep.subr.mxu0 0.0
    %264 = vmatpush1.msra.mxu0 0.0
    %265 = vmatprep.subr.mxu0 0.0
    %266 = vmatpush1.msra.mxu0 0.0
    %267 = vmatprep.mubr.f32.mxu0 0.0
    %268 = vmatmul.mubr.f32.gmra.mrb[0].mxu0 %v195
    %v269 = vpop.f32.mrb[0].mxu0
    %v270 = vadd.f32 %v186, %v269
    %v271 = vpop.f32.mrb[0].mxu0
    %v272 = vadd.f32 %v190, %v271
    %273 = vmatprep.mubr.f32.mxu0 0.0
    %274 = vmatmul.mubr.f32.gmra.mrb[0].mxu0 %v198
    %v275 = vpop.f32.mrb[0].mxu0
    %v276 = vadd.f32 %v186, %v275
    %v277 = vpop.f32.mrb[0].mxu0
    %v278 = vadd.f32 %v190, %v277
    %279 = vmatprep.mubr.f32.mxu0 0.0
    %280 = vmatmul.mubr.f32.gmra.mrb[0].mxu0 %v201
    %v281 = vpop.f32.mrb[0].mxu0
    %v282 = vadd.f32 %v186, %v281
    %v283 = vpop.f32.mrb[0].mxu0
    %v284 = vadd.f32 %v190, %v283
    %285 = vdwg.mxu0
    %v286 = vmul.f32 %v270, 0.25
    %v287 = vmul.f32 %v276, 0.25
    %v288 = vmul.f32 %v282, 0.25
    %292 = vrot.lane.b32.xlu0 %v270, 64
    %v293 = vpop.permute.xlu0 %292
    %294 = vrot.lane.b32.xlu0 %v276, 64
    %v295 = vpop.permute.xlu0 %294
    %296 = vrot.lane.b32.xlu0 %v282, 64
    %v297 = vpop.permute.xlu0 %296
    %vm298 = vcmask 130048
    %v300 = vsel %vm298, %v286, 0
    %v303 = vsel %vm298, %v287, 0
    %v306 = vsel %vm298, %v288, 0
    %v308 = vsel %vm298, %v293, 0
    %v310 = vsel %vm298, %v295, 0
    %v312 = vsel %vm298, %v297, 0
    %314 = vmatprep.subr.mxu0 0.0
    %315 = vmatpush1.xpose.msra.mxu0 %v308
    %316 = vmatprep.subr.mxu0 0.0
    %317 = vmatpush1.xpose.msra.mxu0 %v310
    %318 = vmatprep.subr.mxu0 0.0
    %319 = vmatpush1.xpose.msra.mxu0 %v312
    %320 = vmatprep.subr.mxu0 0.0
    %321 = vmatpush1.xpose.msra.mxu0 0.0
    %322 = vmatprep.subr.mxu0 0.0
    %323 = vmatpush1.xpose.msra.mxu0 0.0
    %324 = vmatprep.subr.mxu0 0.0
    %325 = vmatpush1.xpose.msra.mxu0 0.0
    %326 = vmatprep.subr.mxu0 0.0
    %327 = vmatpush1.xpose.msra.mxu0 0.0
    %328 = vmatprep.subr.mxu0 0.0
    %329 = vmatpush1.xpose.msra.mxu0 0.0
    %330 = vmatprep.subr.mxu0 0.0
    %331 = vmatpush1.xpose.msra.mxu0 0.0
    %332 = vmatprep.subr.mxu0 0.0
    %333 = vmatpush1.xpose.msra.mxu0 0.0
    %334 = vmatprep.subr.mxu0 0.0
    %335 = vmatpush1.xpose.msra.mxu0 0.0
    %336 = vmatprep.subr.mxu0 0.0
    %337 = vmatpush1.xpose.msra.mxu0 0.0
    %338 = vmatprep.subr.mxu0 0.0
    %339 = vmatpush1.xpose.msra.mxu0 0.0
    %340 = vmatprep.subr.mxu0 0.0
    %341 = vmatpush1.xpose.msra.mxu0 0.0
    %342 = vmatprep.subr.mxu0 0.0
    %343 = vmatpush1.xpose.msra.mxu0 0.0
    %344 = vmatprep.subr.mxu0 0.0
    %345 = vmatpush1.xpose.msra.mxu0 0.0
    %346 = vmatprep.subr.mxu0 0.0
    %347 = vmatpush1.xpose.msra.mxu0 0.0
    %348 = vmatprep.subr.mxu0 0.0
    %349 = vmatpush1.xpose.msra.mxu0 0.0
    %350 = vmatprep.subr.mxu0 0.0
    %351 = vmatpush1.xpose.msra.mxu0 0.0
    %352 = vmatprep.subr.mxu0 0.0
    %353 = vmatpush1.xpose.msra.mxu0 0.0
    %354 = vmatprep.subr.mxu0 0.0
    %355 = vmatpush1.xpose.msra.mxu0 0.0
    %356 = vmatprep.subr.mxu0 0.0
    %357 = vmatpush1.xpose.msra.mxu0 0.0
    %358 = vmatprep.subr.mxu0 0.0
    %359 = vmatpush1.xpose.msra.mxu0 0.0
    %360 = vmatprep.subr.mxu0 0.0
    %361 = vmatpush1.xpose.msra.mxu0 0.0
    %362 = vmatprep.subr.mxu0 0.0
    %363 = vmatpush1.xpose.msra.mxu0 0.0
    %364 = vmatprep.subr.mxu0 0.0
    %365 = vmatpush1.xpose.msra.mxu0 0.0
    %366 = vmatprep.subr.mxu0 0.0
    %367 = vmatpush1.xpose.msra.mxu0 0.0
    %368 = vmatprep.subr.mxu0 0.0
    %369 = vmatpush1.xpose.msra.mxu0 0.0
    %370 = vmatprep.subr.mxu0 0.0
    %371 = vmatpush1.xpose.msra.mxu0 0.0
    %372 = vmatprep.subr.mxu0 0.0
    %373 = vmatpush1.xpose.msra.mxu0 0.0
    %374 = vmatprep.subr.mxu0 0.0
    %375 = vmatpush1.xpose.msra.mxu0 0.0
    %376 = vmatprep.subr.mxu0 0.0
    %377 = vmatpush1.xpose.msra.mxu0 0.0
    %378 = vmatprep.mubr.f32.mxu0 0.0
    %379 = vmatmul.mubr.f32.gmra.mrb[0].mxu0 %v300
    %v380 = vpop.f32.mrb[0].mxu0
    %v381 = vadd.f32 %v60, %v380
    %v382 = vpop.f32.mrb[0].mxu0
    %383 = vmatprep.mubr.f32.mxu0 0.0
    %384 = vmatmul.mubr.f32.gmra.mrb[0].mxu0 %v303
    %v385 = vpop.f32.mrb[0].mxu0
    %v386 = vadd.f32 %v61, %v385
    %v387 = vpop.f32.mrb[0].mxu0
    %388 = vmatprep.mubr.f32.mxu0 0.0
    %389 = vmatmul.mubr.f32.gmra.mrb[0].mxu0 %v306
    %v390 = vpop.f32.mrb[0].mxu0
    %v391 = vadd.f32 %v62, %v390
    %v392 = vpop.f32.mrb[0].mxu0
    %393 = vdwg.mxu0
    %vm394 = vcmask 162816
    %v395 = vsel %vm394, %v381, -inf
    %396 = vmax.xlane.f32.xlu0 %v395
    %v397 = vpop.xlane.xlu0 %396
    %v398 = vsel %vm394, %v386, -inf
    %399 = vmax.xlane.f32.xlu0 %v398
    %v400 = vpop.xlane.xlu0 %399
    %vm401 = vcmask 158720
    %v402 = vsel %vm401, %v391, -inf
    %403 = vmax.xlane.f32.xlu0 %v402
    %v404 = vpop.xlane.xlu0 %403
    %v405 = vsub.f32 %v381, %v397
    %v406 = vsub.f32 %v386, %v400
    %v407 = vsub.f32 %v391, %v404
    %v408 = vmul.f32 %v405, 1.442695
    %v409 = vpow.pop %v408
    %v410 = vmul.f32 %v406, 1.442695
    %v411 = vpow.pop %v410
    %v412 = vmul.f32 %v407, 1.442695
    %v413 = vpow.pop %v412
    %v414 = vsel %vm394, %v409, 0.0
    %415 = vadd.xlane.f32.xlu0 %v414
    %v416 = vpop.xlane.xlu0 %415
    %v417 = vsel %vm394, %v411, 0.0
    %418 = vadd.xlane.f32.xlu0 %v417
    %v419 = vpop.xlane.xlu0 %418
    %v420 = vsel %vm401, %v413, 0.0
    %421 = vadd.xlane.f32.xlu0 %v420
    %v422 = vpop.xlane.xlu0 %421
    %v423 = vrcp.pop %v416
    %v424 = vrcp.pop %v419
    %v425 = vrcp.pop %v422
    %v426 = vmul.f32 %v409, %v423
    %v427 = vmul.f32 %v411, %v424
    %v428 = vmul.f32 %v413, %v425
    %v430 = vsel %vm394, %v426, 0
    %v433 = vsel %vm394, %v427, 0
    %v436 = vsel %vm394, %v428, 0
    %v439 = vsel %vm81, %v284, 0
    %441 = vmatprep.subr.mxu0 0.0
    %442 = vmatpush1.msra.mxu0 %v272
    %443 = vmatprep.subr.mxu0 0.0
    %444 = vmatpush1.msra.mxu0 %v278
    %445 = vmatprep.subr.mxu0 0.0
    %446 = vmatpush1.msra.mxu0 %v439
    %447 = vmatprep.subr.mxu0 0.0
    %448 = vmatpush1.msra.mxu0 0.0
    %449 = vmatprep.subr.mxu0 0.0
    %450 = vmatpush1.msra.mxu0 0.0
    %451 = vmatprep.subr.mxu0 0.0
    %452 = vmatpush1.msra.mxu0 0.0
    %453 = vmatprep.subr.mxu0 0.0
    %454 = vmatpush1.msra.mxu0 0.0
    %455 = vmatprep.subr.mxu0 0.0
    %456 = vmatpush1.msra.mxu0 0.0
    %457 = vmatprep.subr.mxu0 0.0
    %458 = vmatpush1.msra.mxu0 0.0
    %459 = vmatprep.subr.mxu0 0.0
    %460 = vmatpush1.msra.mxu0 0.0
    %461 = vmatprep.subr.mxu0 0.0
    %462 = vmatpush1.msra.mxu0 0.0
    %463 = vmatprep.subr.mxu0 0.0
    %464 = vmatpush1.msra.mxu0 0.0
    %465 = vmatprep.subr.mxu0 0.0
    %466 = vmatpush1.msra.mxu0 0.0
    %467 = vmatprep.subr.mxu0 0.0
    %468 = vmatpush1.msra.mxu0 0.0
    %469 = vmatprep.subr.mxu0 0.0
    %470 = vmatpush1.msra.mxu0 0.0
    %471 = vmatprep.subr.mxu0 0.0
    %472 = vmatpush1.msra.mxu0 0.0
    %473 = vmatprep.subr.mxu0 0.0
    %474 = vmatpush1.msra.mxu0 0.0
    %475 = vmatprep.subr.mxu0 0.0
    %476 = vmatpush1.msra.mxu0 0.0
    %477 = vmatprep.subr.mxu0 0.0
    %478 = vmatpush1.msra.mxu0 0.0
    %479 = vmatprep.subr.mxu0 0.0
    %480 = vmatpush1.msra.mxu0 0.0
    %481 = vmatprep.subr.mxu0 0.0
    %482 = vmatpush1.msra.mxu0 0.0
    %483 = vmatprep.subr.mxu0 0.0
    %484 = vmatpush1.msra.mxu0 0.0
    %485 = vmatprep.subr.mxu0 0.0
    %486 = vmatpush1.msra.mxu0 0.0
    %487 = vmatprep.subr.mxu0 0.0
    %488 = vmatpush1.msra.mxu0 0.0
    %489 = vmatprep.subr.mxu0 0.0
    %490 = vmatpush1.msra.mxu0 0.0
    %491 = vmatprep.subr.mxu0 0.0
    %492 = vmatpush1.msra.mxu0 0.0
    %493 = vmatprep.subr.mxu0 0.0
    %494 = vmatpush1.msra.mxu0 0.0
    %495 = vmatprep.subr.mxu0 0.0
    %496 = vmatpush1.msra.mxu0 0.0
    %497 = vmatprep.subr.mxu0 0.0
    %498 = vmatpush1.msra.mxu0 0.0
    %499 = vmatprep.subr.mxu0 0.0
    %500 = vmatpush1.msra.mxu0 0.0
    %501 = vmatprep.subr.mxu0 0.0
    %502 = vmatpush1.msra.mxu0 0.0
    %503 = vmatprep.subr.mxu0 0.0
    %504 = vmatpush1.msra.mxu0 0.0
    %505 = vmatprep.mubr.f32.mxu0 0.0
    %506 = vmatmul.mubr.f32.gmra.mrb[0].mxu0 %v430
    %v507 = vpop.f32.mrb[0].mxu0
    %v508 = vadd.f32 0.0, %v507
    %v509 = vpop.f32.mrb[0].mxu0
    %510 = vmatprep.mubr.f32.mxu0 0.0
    %511 = vmatmul.mubr.f32.gmra.mrb[0].mxu0 %v433
    %v512 = vpop.f32.mrb[0].mxu0
    %v513 = vadd.f32 0.0, %v512
    %v514 = vpop.f32.mrb[0].mxu0
    %515 = vmatprep.mubr.f32.mxu0 0.0
    %516 = vmatmul.mubr.f32.gmra.mrb[0].mxu0 %v436
    %v517 = vpop.f32.mrb[0].mxu0
    %v518 = vadd.f32 0.0, %v517
    %v519 = vpop.f32.mrb[0].mxu0
    %520 = vdwg.mxu0
    %521 = vrot.lane.b32.xlu0 %v286, 112
    %v522 = vpop.permute.xlu0 %521
    %523 = vrot.lane.b32.xlu0 %v287, 112
    %v524 = vpop.permute.xlu0 %523
    %525 = vrot.lane.b32.xlu0 %v288, 112
    %v526 = vpop.permute.xlu0 %525
    %527 = vrot.lane.b32.xlu0 %v270, 48
    %v528 = vpop.permute.xlu0 %527
    %529 = vrot.lane.b32.xlu0 %v276, 48
    %v530 = vpop.permute.xlu0 %529
    %531 = vrot.lane.b32.xlu0 %v282, 48
    %v532 = vpop.permute.xlu0 %531
    %v533 = vsel %vm298, %v522, 0
    %v535 = vsel %vm298, %v524, 0
    %v537 = vsel %vm298, %v526, 0
    %v539 = vsel %vm298, %v528, 0
    %v541 = vsel %vm298, %v530, 0
    %v543 = vsel %vm298, %v532, 0
    %545 = vmatprep.subr.mxu0 0.0
    %546 = vmatpush1.xpose.msra.mxu0 %v539
    %547 = vmatprep.subr.mxu0 0.0
    %548 = vmatpush1.xpose.msra.mxu0 %v541
    %549 = vmatprep.subr.mxu0 0.0
    %550 = vmatpush1.xpose.msra.mxu0 %v543
    %551 = vmatprep.subr.mxu0 0.0
    %552 = vmatpush1.xpose.msra.mxu0 0.0
    %553 = vmatprep.subr.mxu0 0.0
    %554 = vmatpush1.xpose.msra.mxu0 0.0
    %555 = vmatprep.subr.mxu0 0.0
    %556 = vmatpush1.xpose.msra.mxu0 0.0
    %557 = vmatprep.subr.mxu0 0.0
    %558 = vmatpush1.xpose.msra.mxu0 0.0
    %559 = vmatprep.subr.mxu0 0.0
    %560 = vmatpush1.xpose.msra.mxu0 0.0
    %561 = vmatprep.subr.mxu0 0.0
    %562 = vmatpush1.xpose.msra.mxu0 0.0
    %563 = vmatprep.subr.mxu0 0.0
    %564 = vmatpush1.xpose.msra.mxu0 0.0
    %565 = vmatprep.subr.mxu0 0.0
    %566 = vmatpush1.xpose.msra.mxu0 0.0
    %567 = vmatprep.subr.mxu0 0.0
    %568 = vmatpush1.xpose.msra.mxu0 0.0
    %569 = vmatprep.subr.mxu0 0.0
    %570 = vmatpush1.xpose.msra.mxu0 0.0
    %571 = vmatprep.subr.mxu0 0.0
    %572 = vmatpush1.xpose.msra.mxu0 0.0
    %573 = vmatprep.subr.mxu0 0.0
    %574 = vmatpush1.xpose.msra.mxu0 0.0
    %575 = vmatprep.subr.mxu0 0.0
    %576 = vmatpush1.xpose.msra.mxu0 0.0
    %577 = vmatprep.subr.mxu0 0.0
    %578 = vmatpush1.xpose.msra.mxu0 0.0
    %579 = vmatprep.subr.mxu0 0.0
    %580 = vmatpush1.xpose.msra.mxu0 0.0
    %581 = vmatprep.subr.mxu0 0.0
    %582 = vmatpush1.xpose.msra.mxu0 0.0
    %583 = vmatprep.subr.mxu0 0.0
    %584 = vmatpush1.xpose.msra.mxu0 0.0
    %585 = vmatprep.subr.mxu0 0.0
    %586 = vmatpush1.xpose.msra.mxu0 0.0
    %587 = vmatprep.subr.mxu0 0.0
    %588 = vmatpush1.xpose.msra.mxu0 0.0
    %589 = vmatprep.subr.mxu0 0.0
    %590 = vmatpush1.xpose.msra.mxu0 0.0
    %591 = vmatprep.subr.mxu0 0.0
    %592 = vmatpush1.xpose.msra.mxu0 0.0
    %593 = vmatprep.subr.mxu0 0.0
    %594 = vmatpush1.xpose.msra.mxu0 0.0
    %595 = vmatprep.subr.mxu0 0.0
    %596 = vmatpush1.xpose.msra.mxu0 0.0
    %597 = vmatprep.subr.mxu0 0.0
    %598 = vmatpush1.xpose.msra.mxu0 0.0
    %599 = vmatprep.subr.mxu0 0.0
    %600 = vmatpush1.xpose.msra.mxu0 0.0
    %601 = vmatprep.subr.mxu0 0.0
    %602 = vmatpush1.xpose.msra.mxu0 0.0
    %603 = vmatprep.subr.mxu0 0.0
    %604 = vmatpush1.xpose.msra.mxu0 0.0
    %605 = vmatprep.subr.mxu0 0.0
    %606 = vmatpush1.xpose.msra.mxu0 0.0
    %607 = vmatprep.subr.mxu0 0.0
    %608 = vmatpush1.xpose.msra.mxu0 0.0
    %609 = vmatprep.mubr.f32.mxu0 0.0
    %610 = vmatmul.mubr.f32.gmra.mrb[0].mxu0 %v533
    %v611 = vpop.f32.mrb[0].mxu0
    %v612 = vadd.f32 %v60, %v611
    %v613 = vpop.f32.mrb[0].mxu0
    %614 = vmatprep.mubr.f32.mxu0 0.0
    %615 = vmatmul.mubr.f32.gmra.mrb[0].mxu0 %v535
    %v616 = vpop.f32.mrb[0].mxu0
    %v617 = vadd.f32 %v61, %v616
    %v618 = vpop.f32.mrb[0].mxu0
    %619 = vmatprep.mubr.f32.mxu0 0.0
    %620 = vmatmul.mubr.f32.gmra.mrb[0].mxu0 %v537
    %v621 = vpop.f32.mrb[0].mxu0
    %v622 = vadd.f32 %v62, %v621
    %v623 = vpop.f32.mrb[0].mxu0
    %624 = vdwg.mxu0
    %v625 = vsel %vm394, %v612, -inf
    %626 = vmax.xlane.f32.xlu0 %v625
    %v627 = vpop.xlane.xlu0 %626
    %v628 = vsel %vm394, %v617, -inf
    %629 = vmax.xlane.f32.xlu0 %v628
    %v630 = vpop.xlane.xlu0 %629
    %v631 = vsel %vm401, %v622, -inf
    %632 = vmax.xlane.f32.xlu0 %v631
    %v633 = vpop.xlane.xlu0 %632
    %v634 = vsub.f32 %v612, %v627
    %v635 = vsub.f32 %v617, %v630
    %v636 = vsub.f32 %v622, %v633
    %v637 = vmul.f32 %v634, 1.442695
    %v638 = vpow.pop %v637
    %v639 = vmul.f32 %v635, 1.442695
    %v640 = vpow.pop %v639
    %v641 = vmul.f32 %v636, 1.442695
    %v642 = vpow.pop %v641
    %v643 = vsel %vm394, %v638, 0.0
    %644 = vadd.xlane.f32.xlu0 %v643
    %v645 = vpop.xlane.xlu0 %644
    %v646 = vsel %vm394, %v640, 0.0
    %647 = vadd.xlane.f32.xlu0 %v646
    %v648 = vpop.xlane.xlu0 %647
    %v649 = vsel %vm401, %v642, 0.0
    %650 = vadd.xlane.f32.xlu0 %v649
    %v651 = vpop.xlane.xlu0 %650
    %v652 = vrcp.pop %v645
    %v653 = vrcp.pop %v648
    %v654 = vrcp.pop %v651
    %v655 = vmul.f32 %v638, %v652
    %v656 = vmul.f32 %v640, %v653
    %v657 = vmul.f32 %v642, %v654
    %660 = vrot.lane.b32.xlu0 %v272, 112
    %v661 = vpop.permute.xlu0 %660
    %662 = vrot.lane.b32.xlu0 %v278, 112
    %v663 = vpop.permute.xlu0 %662
    %664 = vrot.lane.b32.xlu0 %v284, 112
    %v665 = vpop.permute.xlu0 %664
    %v669 = vsel %vm394, %v655, 0
    %v672 = vsel %vm394, %v656, 0
    %v675 = vsel %vm394, %v657, 0
    %v677 = vsel %vm81, %v665, 0
    %679 = vmatprep.subr.mxu0 0.0
    %680 = vmatpush1.msra.mxu0 %v661
    %681 = vmatprep.subr.mxu0 0.0
    %682 = vmatpush1.msra.mxu0 %v663
    %683 = vmatprep.subr.mxu0 0.0
    %684 = vmatpush1.msra.mxu0 %v677
    %685 = vmatprep.subr.mxu0 0.0
    %686 = vmatpush1.msra.mxu0 0.0
    %687 = vmatprep.subr.mxu0 0.0
    %688 = vmatpush1.msra.mxu0 0.0
    %689 = vmatprep.subr.mxu0 0.0
    %690 = vmatpush1.msra.mxu0 0.0
    %691 = vmatprep.subr.mxu0 0.0
    %692 = vmatpush1.msra.mxu0 0.0
    %693 = vmatprep.subr.mxu0 0.0
    %694 = vmatpush1.msra.mxu0 0.0
    %695 = vmatprep.subr.mxu0 0.0
    %696 = vmatpush1.msra.mxu0 0.0
    %697 = vmatprep.subr.mxu0 0.0
    %698 = vmatpush1.msra.mxu0 0.0
    %699 = vmatprep.subr.mxu0 0.0
    %700 = vmatpush1.msra.mxu0 0.0
    %701 = vmatprep.subr.mxu0 0.0
    %702 = vmatpush1.msra.mxu0 0.0
    %703 = vmatprep.subr.mxu0 0.0
    %704 = vmatpush1.msra.mxu0 0.0
    %705 = vmatprep.subr.mxu0 0.0
    %706 = vmatpush1.msra.mxu0 0.0
    %707 = vmatprep.subr.mxu0 0.0
    %708 = vmatpush1.msra.mxu0 0.0
    %709 = vmatprep.subr.mxu0 0.0
    %710 = vmatpush1.msra.mxu0 0.0
    %711 = vmatprep.subr.mxu0 0.0
    %712 = vmatpush1.msra.mxu0 0.0
    %713 = vmatprep.subr.mxu0 0.0
    %714 = vmatpush1.msra.mxu0 0.0
    %715 = vmatprep.subr.mxu0 0.0
    %716 = vmatpush1.msra.mxu0 0.0
    %717 = vmatprep.subr.mxu0 0.0
    %718 = vmatpush1.msra.mxu0 0.0
    %719 = vmatprep.subr.mxu0 0.0
    %720 = vmatpush1.msra.mxu0 0.0
    %721 = vmatprep.subr.mxu0 0.0
    %722 = vmatpush1.msra.mxu0 0.0
    %723 = vmatprep.subr.mxu0 0.0
    %724 = vmatpush1.msra.mxu0 0.0
    %725 = vmatprep.subr.mxu0 0.0
    %726 = vmatpush1.msra.mxu0 0.0
    %727 = vmatprep.subr.mxu0 0.0
    %728 = vmatpush1.msra.mxu0 0.0
    %729 = vmatprep.subr.mxu0 0.0
    %730 = vmatpush1.msra.mxu0 0.0
    %731 = vmatprep.subr.mxu0 0.0
    %732 = vmatpush1.msra.mxu0 0.0
    %733 = vmatprep.subr.mxu0 0.0
    %734 = vmatpush1.msra.mxu0 0.0
    %735 = vmatprep.subr.mxu0 0.0
    %736 = vmatpush1.msra.mxu0 0.0
    %737 = vmatprep.subr.mxu0 0.0
    %738 = vmatpush1.msra.mxu0 0.0
    %739 = vmatprep.subr.mxu0 0.0
    %740 = vmatpush1.msra.mxu0 0.0
    %741 = vmatprep.subr.mxu0 0.0
    %742 = vmatpush1.msra.mxu0 0.0
    %743 = vmatprep.mubr.f32.mxu0 0.0
    %744 = vmatmul.mubr.f32.gmra.mrb[0].mxu0 %v669
    %v745 = vpop.f32.mrb[0].mxu0
    %v746 = vadd.f32 0.0, %v745
    %v747 = vpop.f32.mrb[0].mxu0
    %748 = vmatprep.mubr.f32.mxu0 0.0
    %749 = vmatmul.mubr.f32.gmra.mrb[0].mxu0 %v672
    %v750 = vpop.f32.mrb[0].mxu0
    %v751 = vadd.f32 0.0, %v750
    %v752 = vpop.f32.mrb[0].mxu0
    %753 = vmatprep.mubr.f32.mxu0 0.0
    %754 = vmatmul.mubr.f32.gmra.mrb[0].mxu0 %v675
    %v755 = vpop.f32.mrb[0].mxu0
    %v756 = vadd.f32 0.0, %v755
    %v757 = vpop.f32.mrb[0].mxu0
    %758 = vdwg.mxu0
    %759 = vrot.lane.b32.xlu0 %v286, 96
    %v760 = vpop.permute.xlu0 %759
    %761 = vrot.lane.b32.xlu0 %v287, 96
    %v762 = vpop.permute.xlu0 %761
    %763 = vrot.lane.b32.xlu0 %v288, 96
    %v764 = vpop.permute.xlu0 %763
    %765 = vrot.lane.b32.xlu0 %v270, 32
    %v766 = vpop.permute.xlu0 %765
    %767 = vrot.lane.b32.xlu0 %v276, 32
    %v768 = vpop.permute.xlu0 %767
    %769 = vrot.lane.b32.xlu0 %v282, 32
    %v770 = vpop.permute.xlu0 %769
    %v771 = vsel %vm298, %v760, 0
    %v773 = vsel %vm298, %v762, 0
    %v775 = vsel %vm298, %v764, 0
    %v777 = vsel %vm298, %v766, 0
    %v779 = vsel %vm298, %v768, 0
    %v781 = vsel %vm298, %v770, 0
    %783 = vmatprep.subr.mxu0 0.0
    %784 = vmatpush1.xpose.msra.mxu0 %v777
    %785 = vmatprep.subr.mxu0 0.0
    %786 = vmatpush1.xpose.msra.mxu0 %v779
    %787 = vmatprep.subr.mxu0 0.0
    %788 = vmatpush1.xpose.msra.mxu0 %v781
    %789 = vmatprep.subr.mxu0 0.0
    %790 = vmatpush1.xpose.msra.mxu0 0.0
    %791 = vmatprep.subr.mxu0 0.0
    %792 = vmatpush1.xpose.msra.mxu0 0.0
    %793 = vmatprep.subr.mxu0 0.0
    %794 = vmatpush1.xpose.msra.mxu0 0.0
    %795 = vmatprep.subr.mxu0 0.0
    %796 = vmatpush1.xpose.msra.mxu0 0.0
    %797 = vmatprep.subr.mxu0 0.0
    %798 = vmatpush1.xpose.msra.mxu0 0.0
    %799 = vmatprep.subr.mxu0 0.0
    %800 = vmatpush1.xpose.msra.mxu0 0.0
    %801 = vmatprep.subr.mxu0 0.0
    %802 = vmatpush1.xpose.msra.mxu0 0.0
    %803 = vmatprep.subr.mxu0 0.0
    %804 = vmatpush1.xpose.msra.mxu0 0.0
    %805 = vmatprep.subr.mxu0 0.0
    %806 = vmatpush1.xpose.msra.mxu0 0.0
    %807 = vmatprep.subr.mxu0 0.0
    %808 = vmatpush1.xpose.msra.mxu0 0.0
    %809 = vmatprep.subr.mxu0 0.0
    %810 = vmatpush1.xpose.msra.mxu0 0.0
    %811 = vmatprep.subr.mxu0 0.0
    %812 = vmatpush1.xpose.msra.mxu0 0.0
    %813 = vmatprep.subr.mxu0 0.0
    %814 = vmatpush1.xpose.msra.mxu0 0.0
    %815 = vmatprep.subr.mxu0 0.0
    %816 = vmatpush1.xpose.msra.mxu0 0.0
    %817 = vmatprep.subr.mxu0 0.0
    %818 = vmatpush1.xpose.msra.mxu0 0.0
    %819 = vmatprep.subr.mxu0 0.0
    %820 = vmatpush1.xpose.msra.mxu0 0.0
    %821 = vmatprep.subr.mxu0 0.0
    %822 = vmatpush1.xpose.msra.mxu0 0.0
    %823 = vmatprep.subr.mxu0 0.0
    %824 = vmatpush1.xpose.msra.mxu0 0.0
    %825 = vmatprep.subr.mxu0 0.0
    %826 = vmatpush1.xpose.msra.mxu0 0.0
    %827 = vmatprep.subr.mxu0 0.0
    %828 = vmatpush1.xpose.msra.mxu0 0.0
    %829 = vmatprep.subr.mxu0 0.0
    %830 = vmatpush1.xpose.msra.mxu0 0.0
    %831 = vmatprep.subr.mxu0 0.0
    %832 = vmatpush1.xpose.msra.mxu0 0.0
    %833 = vmatprep.subr.mxu0 0.0
    %834 = vmatpush1.xpose.msra.mxu0 0.0
    %835 = vmatprep.subr.mxu0 0.0
    %836 = vmatpush1.xpose.msra.mxu0 0.0
    %837 = vmatprep.subr.mxu0 0.0
    %838 = vmatpush1.xpose.msra.mxu0 0.0
    %839 = vmatprep.subr.mxu0 0.0
    %840 = vmatpush1.xpose.msra.mxu0 0.0
    %841 = vmatprep.subr.mxu0 0.0
    %842 = vmatpush1.xpose.msra.mxu0 0.0
    %843 = vmatprep.subr.mxu0 0.0
    %844 = vmatpush1.xpose.msra.mxu0 0.0
    %845 = vmatprep.subr.mxu0 0.0
    %846 = vmatpush1.xpose.msra.mxu0 0.0
    %847 = vmatprep.mubr.f32.mxu0 0.0
    %848 = vmatmul.mubr.f32.gmra.mrb[0].mxu0 %v771
    %v849 = vpop.f32.mrb[0].mxu0
    %v850 = vadd.f32 %v60, %v849
    %v851 = vpop.f32.mrb[0].mxu0
    %852 = vmatprep.mubr.f32.mxu0 0.0
    %853 = vmatmul.mubr.f32.gmra.mrb[0].mxu0 %v773
    %v854 = vpop.f32.mrb[0].mxu0
    %v855 = vadd.f32 %v61, %v854
    %v856 = vpop.f32.mrb[0].mxu0
    %857 = vmatprep.mubr.f32.mxu0 0.0
    %858 = vmatmul.mubr.f32.gmra.mrb[0].mxu0 %v775
    %v859 = vpop.f32.mrb[0].mxu0
    %v860 = vadd.f32 %v62, %v859
    %v861 = vpop.f32.mrb[0].mxu0
    %862 = vdwg.mxu0
    %v863 = vsel %vm394, %v850, -inf
    %864 = vmax.xlane.f32.xlu0 %v863
    %v865 = vpop.xlane.xlu0 %864
    %v866 = vsel %vm394, %v855, -inf
    %867 = vmax.xlane.f32.xlu0 %v866
    %v868 = vpop.xlane.xlu0 %867
    %v869 = vsel %vm401, %v860, -inf
    %870 = vmax.xlane.f32.xlu0 %v869
    %v871 = vpop.xlane.xlu0 %870
    %v872 = vsub.f32 %v850, %v865
    %v873 = vsub.f32 %v855, %v868
    %v874 = vsub.f32 %v860, %v871
    %v875 = vmul.f32 %v872, 1.442695
    %v876 = vpow.pop %v875
    %v877 = vmul.f32 %v873, 1.442695
    %v878 = vpow.pop %v877
    %v879 = vmul.f32 %v874, 1.442695
    %v880 = vpow.pop %v879
    %v881 = vsel %vm394, %v876, 0.0
    %882 = vadd.xlane.f32.xlu0 %v881
    %v883 = vpop.xlane.xlu0 %882
    %v884 = vsel %vm394, %v878, 0.0
    %885 = vadd.xlane.f32.xlu0 %v884
    %v886 = vpop.xlane.xlu0 %885
    %v887 = vsel %vm401, %v880, 0.0
    %888 = vadd.xlane.f32.xlu0 %v887
    %v889 = vpop.xlane.xlu0 %888
    %v890 = vrcp.pop %v883
    %v891 = vrcp.pop %v886
    %v892 = vrcp.pop %v889
    %v893 = vmul.f32 %v876, %v890
    %v894 = vmul.f32 %v878, %v891
    %v895 = vmul.f32 %v880, %v892
    %896 = vrot.lane.b32.xlu0 %v272, 96
    %v897 = vpop.permute.xlu0 %896
    %898 = vrot.lane.b32.xlu0 %v278, 96
    %v899 = vpop.permute.xlu0 %898
    %900 = vrot.lane.b32.xlu0 %v284, 96
    %v901 = vpop.permute.xlu0 %900
    %v905 = vsel %vm394, %v893, 0
    %v908 = vsel %vm394, %v894, 0
    %v911 = vsel %vm394, %v895, 0
    %v913 = vsel %vm81, %v901, 0
    %915 = vmatprep.subr.mxu0 0.0
    %916 = vmatpush1.msra.mxu0 %v897
    %917 = vmatprep.subr.mxu0 0.0
    %918 = vmatpush1.msra.mxu0 %v899
    %919 = vmatprep.subr.mxu0 0.0
    %920 = vmatpush1.msra.mxu0 %v913
    %921 = vmatprep.subr.mxu0 0.0
    %922 = vmatpush1.msra.mxu0 0.0
    %923 = vmatprep.subr.mxu0 0.0
    %924 = vmatpush1.msra.mxu0 0.0
    %925 = vmatprep.subr.mxu0 0.0
    %926 = vmatpush1.msra.mxu0 0.0
    %927 = vmatprep.subr.mxu0 0.0
    %928 = vmatpush1.msra.mxu0 0.0
    %929 = vmatprep.subr.mxu0 0.0
    %930 = vmatpush1.msra.mxu0 0.0
    %931 = vmatprep.subr.mxu0 0.0
    %932 = vmatpush1.msra.mxu0 0.0
    %933 = vmatprep.subr.mxu0 0.0
    %934 = vmatpush1.msra.mxu0 0.0
    %935 = vmatprep.subr.mxu0 0.0
    %936 = vmatpush1.msra.mxu0 0.0
    %937 = vmatprep.subr.mxu0 0.0
    %938 = vmatpush1.msra.mxu0 0.0
    %939 = vmatprep.subr.mxu0 0.0
    %940 = vmatpush1.msra.mxu0 0.0
    %941 = vmatprep.subr.mxu0 0.0
    %942 = vmatpush1.msra.mxu0 0.0
    %943 = vmatprep.subr.mxu0 0.0
    %944 = vmatpush1.msra.mxu0 0.0
    %945 = vmatprep.subr.mxu0 0.0
    %946 = vmatpush1.msra.mxu0 0.0
    %947 = vmatprep.subr.mxu0 0.0
    %948 = vmatpush1.msra.mxu0 0.0
    %949 = vmatprep.subr.mxu0 0.0
    %950 = vmatpush1.msra.mxu0 0.0
    %951 = vmatprep.subr.mxu0 0.0
    %952 = vmatpush1.msra.mxu0 0.0
    %953 = vmatprep.subr.mxu0 0.0
    %954 = vmatpush1.msra.mxu0 0.0
    %955 = vmatprep.subr.mxu0 0.0
    %956 = vmatpush1.msra.mxu0 0.0
    %957 = vmatprep.subr.mxu0 0.0
    %958 = vmatpush1.msra.mxu0 0.0
    %959 = vmatprep.subr.mxu0 0.0
    %960 = vmatpush1.msra.mxu0 0.0
    %961 = vmatprep.subr.mxu0 0.0
    %962 = vmatpush1.msra.mxu0 0.0
    %963 = vmatprep.subr.mxu0 0.0
    %964 = vmatpush1.msra.mxu0 0.0
    %965 = vmatprep.subr.mxu0 0.0
    %966 = vmatpush1.msra.mxu0 0.0
    %967 = vmatprep.subr.mxu0 0.0
    %968 = vmatpush1.msra.mxu0 0.0
    %969 = vmatprep.subr.mxu0 0.0
    %970 = vmatpush1.msra.mxu0 0.0
    %971 = vmatprep.subr.mxu0 0.0
    %972 = vmatpush1.msra.mxu0 0.0
    %973 = vmatprep.subr.mxu0 0.0
    %974 = vmatpush1.msra.mxu0 0.0
    %975 = vmatprep.subr.mxu0 0.0
    %976 = vmatpush1.msra.mxu0 0.0
    %977 = vmatprep.subr.mxu0 0.0
    %978 = vmatpush1.msra.mxu0 0.0
    %979 = vmatprep.mubr.f32.mxu0 0.0
    %980 = vmatmul.mubr.f32.gmra.mrb[0].mxu0 %v905
    %v981 = vpop.f32.mrb[0].mxu0
    %v982 = vadd.f32 0.0, %v981
    %v983 = vpop.f32.mrb[0].mxu0
    %984 = vmatprep.mubr.f32.mxu0 0.0
    %985 = vmatmul.mubr.f32.gmra.mrb[0].mxu0 %v908
    %v986 = vpop.f32.mrb[0].mxu0
    %v987 = vadd.f32 0.0, %v986
    %v988 = vpop.f32.mrb[0].mxu0
    %989 = vmatprep.mubr.f32.mxu0 0.0
    %990 = vmatmul.mubr.f32.gmra.mrb[0].mxu0 %v911
    %v991 = vpop.f32.mrb[0].mxu0
    %v992 = vadd.f32 0.0, %v991
    %v993 = vpop.f32.mrb[0].mxu0
    %994 = vdwg.mxu0
    %995 = vrot.lane.b32.xlu0 %v286, 80
    %v996 = vpop.permute.xlu0 %995
    %997 = vrot.lane.b32.xlu0 %v287, 80
    %v998 = vpop.permute.xlu0 %997
    %999 = vrot.lane.b32.xlu0 %v288, 80
    %v1000 = vpop.permute.xlu0 %999
    %1001 = vrot.lane.b32.xlu0 %v270, 16
    %v1002 = vpop.permute.xlu0 %1001
    %1003 = vrot.lane.b32.xlu0 %v276, 16
    %v1004 = vpop.permute.xlu0 %1003
    %1005 = vrot.lane.b32.xlu0 %v282, 16
    %v1006 = vpop.permute.xlu0 %1005
    %v1007 = vsel %vm298, %v996, 0
    %v1009 = vsel %vm298, %v998, 0
    %v1011 = vsel %vm298, %v1000, 0
    %v1013 = vsel %vm298, %v1002, 0
    %v1015 = vsel %vm298, %v1004, 0
    %v1017 = vsel %vm298, %v1006, 0
    %1019 = vmatprep.subr.mxu0 0.0
    %1020 = vmatpush1.xpose.msra.mxu0 %v1013
    %1021 = vmatprep.subr.mxu0 0.0
    %1022 = vmatpush1.xpose.msra.mxu0 %v1015
    %1023 = vmatprep.subr.mxu0 0.0
    %1024 = vmatpush1.xpose.msra.mxu0 %v1017
    %1025 = vmatprep.subr.mxu0 0.0
    %1026 = vmatpush1.xpose.msra.mxu0 0.0
    %1027 = vmatprep.subr.mxu0 0.0
    %1028 = vmatpush1.xpose.msra.mxu0 0.0
    %1029 = vmatprep.subr.mxu0 0.0
    %1030 = vmatpush1.xpose.msra.mxu0 0.0
    %1031 = vmatprep.subr.mxu0 0.0
    %1032 = vmatpush1.xpose.msra.mxu0 0.0
    %1033 = vmatprep.subr.mxu0 0.0
    %1034 = vmatpush1.xpose.msra.mxu0 0.0
    %1035 = vmatprep.subr.mxu0 0.0
    %1036 = vmatpush1.xpose.msra.mxu0 0.0
    %1037 = vmatprep.subr.mxu0 0.0
    %1038 = vmatpush1.xpose.msra.mxu0 0.0
    %1039 = vmatprep.subr.mxu0 0.0
    %1040 = vmatpush1.xpose.msra.mxu0 0.0
    %1041 = vmatprep.subr.mxu0 0.0
    %1042 = vmatpush1.xpose.msra.mxu0 0.0
    %1043 = vmatprep.subr.mxu0 0.0
    %1044 = vmatpush1.xpose.msra.mxu0 0.0
    %1045 = vmatprep.subr.mxu0 0.0
    %1046 = vmatpush1.xpose.msra.mxu0 0.0
    %1047 = vmatprep.subr.mxu0 0.0
    %1048 = vmatpush1.xpose.msra.mxu0 0.0
    %1049 = vmatprep.subr.mxu0 0.0
    %1050 = vmatpush1.xpose.msra.mxu0 0.0
    %1051 = vmatprep.subr.mxu0 0.0
    %1052 = vmatpush1.xpose.msra.mxu0 0.0
    %1053 = vmatprep.subr.mxu0 0.0
    %1054 = vmatpush1.xpose.msra.mxu0 0.0
    %1055 = vmatprep.subr.mxu0 0.0
    %1056 = vmatpush1.xpose.msra.mxu0 0.0
    %1057 = vmatprep.subr.mxu0 0.0
    %1058 = vmatpush1.xpose.msra.mxu0 0.0
    %1059 = vmatprep.subr.mxu0 0.0
    %1060 = vmatpush1.xpose.msra.mxu0 0.0
    %1061 = vmatprep.subr.mxu0 0.0
    %1062 = vmatpush1.xpose.msra.mxu0 0.0
    %1063 = vmatprep.subr.mxu0 0.0
    %1064 = vmatpush1.xpose.msra.mxu0 0.0
    %1065 = vmatprep.subr.mxu0 0.0
    %1066 = vmatpush1.xpose.msra.mxu0 0.0
    %1067 = vmatprep.subr.mxu0 0.0
    %1068 = vmatpush1.xpose.msra.mxu0 0.0
    %1069 = vmatprep.subr.mxu0 0.0
    %1070 = vmatpush1.xpose.msra.mxu0 0.0
    %1071 = vmatprep.subr.mxu0 0.0
    %1072 = vmatpush1.xpose.msra.mxu0 0.0
    %1073 = vmatprep.subr.mxu0 0.0
    %1074 = vmatpush1.xpose.msra.mxu0 0.0
    %1075 = vmatprep.subr.mxu0 0.0
    %1076 = vmatpush1.xpose.msra.mxu0 0.0
    %1077 = vmatprep.subr.mxu0 0.0
    %1078 = vmatpush1.xpose.msra.mxu0 0.0
    %1079 = vmatprep.subr.mxu0 0.0
    %1080 = vmatpush1.xpose.msra.mxu0 0.0
    %1081 = vmatprep.subr.mxu0 0.0
    %1082 = vmatpush1.xpose.msra.mxu0 0.0
    %1083 = vmatprep.mubr.f32.mxu0 0.0
    %1084 = vmatmul.mubr.f32.gmra.mrb[0].mxu0 %v1007
    %v1085 = vpop.f32.mrb[0].mxu0
    %v1086 = vadd.f32 %v60, %v1085
    %v1087 = vpop.f32.mrb[0].mxu0
    %1088 = vmatprep.mubr.f32.mxu0 0.0
    %1089 = vmatmul.mubr.f32.gmra.mrb[0].mxu0 %v1009
    %v1090 = vpop.f32.mrb[0].mxu0
    %v1091 = vadd.f32 %v61, %v1090
    %v1092 = vpop.f32.mrb[0].mxu0
    %1093 = vmatprep.mubr.f32.mxu0 0.0
    %1094 = vmatmul.mubr.f32.gmra.mrb[0].mxu0 %v1011
    %v1095 = vpop.f32.mrb[0].mxu0
    %v1096 = vadd.f32 %v62, %v1095
    %v1097 = vpop.f32.mrb[0].mxu0
    %1098 = vdwg.mxu0
    %v1099 = vsel %vm394, %v1086, -inf
    %1100 = vmax.xlane.f32.xlu0 %v1099
    %v1101 = vpop.xlane.xlu0 %1100
    %v1102 = vsel %vm394, %v1091, -inf
    %1103 = vmax.xlane.f32.xlu0 %v1102
    %v1104 = vpop.xlane.xlu0 %1103
    %v1105 = vsel %vm401, %v1096, -inf
    %1106 = vmax.xlane.f32.xlu0 %v1105
    %v1107 = vpop.xlane.xlu0 %1106
    %v1108 = vsub.f32 %v1086, %v1101
    %v1109 = vsub.f32 %v1091, %v1104
    %v1110 = vsub.f32 %v1096, %v1107
    %v1111 = vmul.f32 %v1108, 1.442695
    %v1112 = vpow.pop %v1111
    %v1113 = vmul.f32 %v1109, 1.442695
    %v1114 = vpow.pop %v1113
    %v1115 = vmul.f32 %v1110, 1.442695
    %v1116 = vpow.pop %v1115
    %v1117 = vsel %vm394, %v1112, 0.0
    %1118 = vadd.xlane.f32.xlu0 %v1117
    %v1119 = vpop.xlane.xlu0 %1118
    %v1120 = vsel %vm394, %v1114, 0.0
    %1121 = vadd.xlane.f32.xlu0 %v1120
    %v1122 = vpop.xlane.xlu0 %1121
    %v1123 = vsel %vm401, %v1116, 0.0
    %1124 = vadd.xlane.f32.xlu0 %v1123
    %v1125 = vpop.xlane.xlu0 %1124
    %v1126 = vrcp.pop %v1119
    %v1127 = vrcp.pop %v1122
    %v1128 = vrcp.pop %v1125
    %v1129 = vmul.f32 %v1112, %v1126
    %v1130 = vmul.f32 %v1114, %v1127
    %v1131 = vmul.f32 %v1116, %v1128
    %1132 = vrot.lane.b32.xlu0 %v272, 80
    %v1133 = vpop.permute.xlu0 %1132
    %1134 = vrot.lane.b32.xlu0 %v278, 80
    %v1135 = vpop.permute.xlu0 %1134
    %1136 = vrot.lane.b32.xlu0 %v284, 80
    %v1137 = vpop.permute.xlu0 %1136
    %v1141 = vsel %vm394, %v1129, 0
    %v1144 = vsel %vm394, %v1130, 0
    %v1147 = vsel %vm394, %v1131, 0
    %v1149 = vsel %vm81, %v1137, 0
    %1151 = vmatprep.subr.mxu0 0.0
    %1152 = vmatpush1.msra.mxu0 %v1133
    %1153 = vmatprep.subr.mxu0 0.0
    %1154 = vmatpush1.msra.mxu0 %v1135
    %1155 = vmatprep.subr.mxu0 0.0
    %1156 = vmatpush1.msra.mxu0 %v1149
    %1157 = vmatprep.subr.mxu0 0.0
    %1158 = vmatpush1.msra.mxu0 0.0
    %1159 = vmatprep.subr.mxu0 0.0
    %1160 = vmatpush1.msra.mxu0 0.0
    %1161 = vmatprep.subr.mxu0 0.0
    %1162 = vmatpush1.msra.mxu0 0.0
    %1163 = vmatprep.subr.mxu0 0.0
    %1164 = vmatpush1.msra.mxu0 0.0
    %1165 = vmatprep.subr.mxu0 0.0
    %1166 = vmatpush1.msra.mxu0 0.0
    %1167 = vmatprep.subr.mxu0 0.0
    %1168 = vmatpush1.msra.mxu0 0.0
    %1169 = vmatprep.subr.mxu0 0.0
    %1170 = vmatpush1.msra.mxu0 0.0
    %1171 = vmatprep.subr.mxu0 0.0
    %1172 = vmatpush1.msra.mxu0 0.0
    %1173 = vmatprep.subr.mxu0 0.0
    %1174 = vmatpush1.msra.mxu0 0.0
    %1175 = vmatprep.subr.mxu0 0.0
    %1176 = vmatpush1.msra.mxu0 0.0
    %1177 = vmatprep.subr.mxu0 0.0
    %1178 = vmatpush1.msra.mxu0 0.0
    %1179 = vmatprep.subr.mxu0 0.0
    %1180 = vmatpush1.msra.mxu0 0.0
    %1181 = vmatprep.subr.mxu0 0.0
    %1182 = vmatpush1.msra.mxu0 0.0
    %1183 = vmatprep.subr.mxu0 0.0
    %1184 = vmatpush1.msra.mxu0 0.0
    %1185 = vmatprep.subr.mxu0 0.0
    %1186 = vmatpush1.msra.mxu0 0.0
    %1187 = vmatprep.subr.mxu0 0.0
    %1188 = vmatpush1.msra.mxu0 0.0
    %1189 = vmatprep.subr.mxu0 0.0
    %1190 = vmatpush1.msra.mxu0 0.0
    %1191 = vmatprep.subr.mxu0 0.0
    %1192 = vmatpush1.msra.mxu0 0.0
    %1193 = vmatprep.subr.mxu0 0.0
    %1194 = vmatpush1.msra.mxu0 0.0
    %1195 = vmatprep.subr.mxu0 0.0
    %1196 = vmatpush1.msra.mxu0 0.0
    %1197 = vmatprep.subr.mxu0 0.0
    %1198 = vmatpush1.msra.mxu0 0.0
    %1199 = vmatprep.subr.mxu0 0.0
    %1200 = vmatpush1.msra.mxu0 0.0
    %1201 = vmatprep.subr.mxu0 0.0
    %1202 = vmatpush1.msra.mxu0 0.0
    %1203 = vmatprep.subr.mxu0 0.0
    %1204 = vmatpush1.msra.mxu0 0.0
    %1205 = vmatprep.subr.mxu0 0.0
    %1206 = vmatpush1.msra.mxu0 0.0
    %1207 = vmatprep.subr.mxu0 0.0
    %1208 = vmatpush1.msra.mxu0 0.0
    %1209 = vmatprep.subr.mxu0 0.0
    %1210 = vmatpush1.msra.mxu0 0.0
    %1211 = vmatprep.subr.mxu0 0.0
    %1212 = vmatpush1.msra.mxu0 0.0
    %1213 = vmatprep.subr.mxu0 0.0
    %1214 = vmatpush1.msra.mxu0 0.0
    %1215 = vmatprep.mubr.f32.mxu0 0.0
    %1216 = vmatmul.mubr.f32.gmra.mrb[0].mxu0 %v1141
    %v1217 = vpop.f32.mrb[0].mxu0
    %v1218 = vadd.f32 0.0, %v1217
    %v1219 = vpop.f32.mrb[0].mxu0
    %1220 = vmatprep.mubr.f32.mxu0 0.0
    %1221 = vmatmul.mubr.f32.gmra.mrb[0].mxu0 %v1144
    %v1222 = vpop.f32.mrb[0].mxu0
    %v1223 = vadd.f32 0.0, %v1222
    %v1224 = vpop.f32.mrb[0].mxu0
    %1225 = vmatprep.mubr.f32.mxu0 0.0
    %1226 = vmatmul.mubr.f32.gmra.mrb[0].mxu0 %v1147
    %v1227 = vpop.f32.mrb[0].mxu0
    %v1228 = vadd.f32 0.0, %v1227
    %v1229 = vpop.f32.mrb[0].mxu0
    %1230 = vdwg.mxu0
    %1234 = vrot.lane.b32.xlu0 %v746, 16
    %v1235 = vpop.permute.xlu0 %1234
    %1236 = vrot.lane.b32.xlu0 %v751, 16
    %v1237 = vpop.permute.xlu0 %1236
    %1238 = vrot.lane.b32.xlu0 %v756, 16
    %v1239 = vpop.permute.xlu0 %1238
    %1246 = vrot.lane.b32.xlu0 %v982, 32
    %v1247 = vpop.permute.xlu0 %1246
    %1248 = vrot.lane.b32.xlu0 %v987, 32
    %v1249 = vpop.permute.xlu0 %1248
    %1250 = vrot.lane.b32.xlu0 %v992, 32
    %v1251 = vpop.permute.xlu0 %1250
    %1258 = vrot.lane.b32.xlu0 %v1218, 48
    %v1259 = vpop.permute.xlu0 %1258
    %1260 = vrot.lane.b32.xlu0 %v1223, 48
    %v1261 = vpop.permute.xlu0 %1260
    %1262 = vrot.lane.b32.xlu0 %v1228, 48
    %v1263 = vpop.permute.xlu0 %1262
    %v1267 = vsel %vm298, %v508, %v1235
    %v1268 = vsel %vm298, %v513, %v1237
    %v1269 = vsel %vm298, %v518, %v1239
    %vm1270 = vcmask 261120
    %v1271 = vsel %vm1270, %v1267, %v1247
    %v1272 = vsel %vm1270, %v1268, %v1249
    %v1273 = vsel %vm1270, %v1269, %v1251
    %vm1274 = vcmask 392192
    %v1275 = vsel %vm1274, %v1271, %v1259
    %v1276 = vsel %vm1274, %v1272, %v1261
    %v1277 = vsel %vm1274, %v1273, %v1263
    %v1278 = vld [vmem:[%s7] sm:$0xff]
    %v1279 = vld [vmem:[%s7 + $0x8] sm:$0xff]
    %v1280 = vld [vmem:[%s7 + $0x10] sm:$0xff]
    %v1281 = vld [vmem:[%s7 + $0x18] sm:$0xff]
    %v1282 = vld [vmem:[%s7 + $0x20] sm:$0xff]
    %v1283 = vld [vmem:[%s7 + $0x28] sm:$0xff]
    %v1284 = vld [vmem:[%s7 + $0x30] sm:$0xff]
    %v1285 = vld [vmem:[%s7 + $0x38] sm:$0xff]
    %v1286 = vld [vmem:[%s8] sm:$0x1]
    %v1288 = vlaneseq
    %v1289 = vshrl.u32 %v1288, 7
    %v1290 = vsub.s32 0, %v1289
    %v1291 = vrot.slane %v1286, %v1290
    %v1294 = vsel %vm193, %v1275, 0
    %v1297 = vsel %vm193, %v1276, 0
    %v1300 = vsel %vm193, %v1277, 0
    %1302 = vmatprep.subr.mxu0 0.0
    %1303 = vmatpush1.msra.mxu0 %v1278
    %1304 = vmatprep.subr.mxu0 0.0
    %1305 = vmatpush1.msra.mxu0 %v1279
    %1306 = vmatprep.subr.mxu0 0.0
    %1307 = vmatpush1.msra.mxu0 %v1280
    %1308 = vmatprep.subr.mxu0 0.0
    %1309 = vmatpush1.msra.mxu0 %v1281
    %1310 = vmatprep.subr.mxu0 0.0
    %1311 = vmatpush1.msra.mxu0 %v1282
    %1312 = vmatprep.subr.mxu0 0.0
    %1313 = vmatpush1.msra.mxu0 %v1283
    %1314 = vmatprep.subr.mxu0 0.0
    %1315 = vmatpush1.msra.mxu0 %v1284
    %1316 = vmatprep.subr.mxu0 0.0
    %1317 = vmatpush1.msra.mxu0 %v1285
    %1318 = vmatprep.subr.mxu0 0.0
    %1319 = vmatpush1.msra.mxu0 0.0
    %1320 = vmatprep.subr.mxu0 0.0
    %1321 = vmatpush1.msra.mxu0 0.0
    %1322 = vmatprep.subr.mxu0 0.0
    %1323 = vmatpush1.msra.mxu0 0.0
    %1324 = vmatprep.subr.mxu0 0.0
    %1325 = vmatpush1.msra.mxu0 0.0
    %1326 = vmatprep.subr.mxu0 0.0
    %1327 = vmatpush1.msra.mxu0 0.0
    %1328 = vmatprep.subr.mxu0 0.0
    %1329 = vmatpush1.msra.mxu0 0.0
    %1330 = vmatprep.subr.mxu0 0.0
    %1331 = vmatpush1.msra.mxu0 0.0
    %1332 = vmatprep.subr.mxu0 0.0
    %1333 = vmatpush1.msra.mxu0 0.0
    %1334 = vmatprep.subr.mxu0 0.0
    %1335 = vmatpush1.msra.mxu0 0.0
    %1336 = vmatprep.subr.mxu0 0.0
    %1337 = vmatpush1.msra.mxu0 0.0
    %1338 = vmatprep.subr.mxu0 0.0
    %1339 = vmatpush1.msra.mxu0 0.0
    %1340 = vmatprep.subr.mxu0 0.0
    %1341 = vmatpush1.msra.mxu0 0.0
    %1342 = vmatprep.subr.mxu0 0.0
    %1343 = vmatpush1.msra.mxu0 0.0
    %1344 = vmatprep.subr.mxu0 0.0
    %1345 = vmatpush1.msra.mxu0 0.0
    %1346 = vmatprep.subr.mxu0 0.0
    %1347 = vmatpush1.msra.mxu0 0.0
    %1348 = vmatprep.subr.mxu0 0.0
    %1349 = vmatpush1.msra.mxu0 0.0
    %1350 = vmatprep.subr.mxu0 0.0
    %1351 = vmatpush1.msra.mxu0 0.0
    %1352 = vmatprep.subr.mxu0 0.0
    %1353 = vmatpush1.msra.mxu0 0.0
    %1354 = vmatprep.subr.mxu0 0.0
    %1355 = vmatpush1.msra.mxu0 0.0
    %1356 = vmatprep.subr.mxu0 0.0
    %1357 = vmatpush1.msra.mxu0 0.0
    %1358 = vmatprep.subr.mxu0 0.0
    %1359 = vmatpush1.msra.mxu0 0.0
    %1360 = vmatprep.subr.mxu0 0.0
    %1361 = vmatpush1.msra.mxu0 0.0
    %1362 = vmatprep.subr.mxu0 0.0
    %1363 = vmatpush1.msra.mxu0 0.0
    %1364 = vmatprep.subr.mxu0 0.0
    %1365 = vmatpush1.msra.mxu0 0.0
    %1366 = vmatprep.mubr.f32.mxu0 0.0
    %1367 = vmatmul.mubr.f32.gmra.mrb[0].mxu0 %v1294
    %v1368 = vpop.f32.mrb[0].mxu0
    %v1369 = vadd.f32 %v1291, %v1368
    %v1370 = vpop.f32.mrb[0].mxu0
    %1371 = vmatprep.mubr.f32.mxu0 0.0
    %1372 = vmatmul.mubr.f32.gmra.mrb[0].mxu0 %v1297
    %v1373 = vpop.f32.mrb[0].mxu0
    %v1374 = vadd.f32 %v1291, %v1373
    %v1375 = vpop.f32.mrb[0].mxu0
    %1376 = vmatprep.mubr.f32.mxu0 0.0
    %1377 = vmatmul.mubr.f32.gmra.mrb[0].mxu0 %v1300
    %v1378 = vpop.f32.mrb[0].mxu0
    %v1379 = vadd.f32 %v1291, %v1378
    %v1380 = vpop.f32.mrb[0].mxu0
    %1381 = vdwg.mxu0
    %v1382 = vadd.f32 %v152, %v1369
    %v1383 = vadd.f32 %v157, %v1374
    %v1384 = vadd.f32 %v162, %v1379
    %v1385 = vld [vmem:[%s9] sm:$0x1]
    %v1386 = vld [vmem:[%s10] sm:$0x1]
    %v1387 = vsel %vm193, %v1382, 0.0
    %1388 = vadd.xlane.f32.xlu0 %v1387
    %v1389 = vpop.xlane.xlu0 %1388
    %v1390 = vsel %vm193, %v1383, 0.0
    %1391 = vadd.xlane.f32.xlu0 %v1390
    %v1392 = vpop.xlane.xlu0 %1391
    %vm1393 = vcmask 519168
    %v1394 = vsel %vm1393, %v1384, 0.0
    %1395 = vadd.xlane.f32.xlu0 %v1394
    %v1396 = vpop.xlane.xlu0 %1395
    %v1397 = vrcp.pop 64.0
    %v1398 = vmul.f32 %v1389, %v1397
    %v1399 = vmul.f32 %v1392, %v1397
    %v1400 = vmul.f32 %v1396, %v1397
    %v1401 = vsub.f32 %v1382, %v1398
    %v1402 = vsub.f32 %v1383, %v1399
    %v1403 = vsub.f32 %v1384, %v1400
    %v1404 = vmul.f32 %v1401, %v1401
    %v1405 = vmul.f32 %v1402, %v1402
    %v1406 = vmul.f32 %v1403, %v1403
    %v1407 = vsel %vm193, %v1404, 0.0
    %1408 = vadd.xlane.f32.xlu0 %v1407
    %v1409 = vpop.xlane.xlu0 %1408
    %v1410 = vsel %vm193, %v1405, 0.0
    %1411 = vadd.xlane.f32.xlu0 %v1410
    %v1412 = vpop.xlane.xlu0 %1411
    %v1413 = vsel %vm1393, %v1406, 0.0
    %1414 = vadd.xlane.f32.xlu0 %v1413
    %v1415 = vpop.xlane.xlu0 %1414
    %v1416 = vmul.f32 %v1409, %v1397
    %v1417 = vmul.f32 %v1412, %v1397
    %v1418 = vmul.f32 %v1415, %v1397
    %v1419 = vadd.f32 %v1416, 1e-05
    %v1420 = vadd.f32 %v1417, 1e-05
    %v1421 = vadd.f32 %v1418, 1e-05
    %v1422 = vrsqrt.pop %v1419
    %v1423 = vrsqrt.pop %v1420
    %v1424 = vrsqrt.pop %v1421
    %v1425 = vmul.f32 %v1401, %v1422
    %v1426 = vmul.f32 %v1402, %v1423
    %v1427 = vmul.f32 %v1403, %v1424
    %v1429 = vlaneseq
    %v1430 = vshrl.u32 %v1429, 7
    %v1431 = vsub.s32 0, %v1430
    %v1432 = vrot.slane %v1385, %v1431
    %v1434 = vmul.f32 %v1425, %v1432
    %v1435 = vmul.f32 %v1426, %v1432
    %v1436 = vmul.f32 %v1427, %v1432
    %v1438 = vlaneseq
    %v1439 = vshrl.u32 %v1438, 7
    %v1440 = vsub.s32 0, %v1439
    %v1441 = vrot.slane %v1386, %v1440
    %v1443 = vadd.f32 %v1434, %v1441
    %v1444 = vadd.f32 %v1435, %v1441
    %v1445 = vadd.f32 %v1436, %v1441
    %v1446 = vld [vmem:[%s13] sm:$0xff]
    %v1447 = vld [vmem:[%s13 + $0x8] sm:$0xff]
    %v1448 = vld [vmem:[%s13 + $0x10] sm:$0xff]
    %v1449 = vld [vmem:[%s13 + $0x18] sm:$0xff]
    %v1450 = vld [vmem:[%s13 + $0x20] sm:$0xff]
    %v1451 = vld [vmem:[%s13 + $0x28] sm:$0xff]
    %v1452 = vld [vmem:[%s13 + $0x30] sm:$0xff]
    %v1453 = vld [vmem:[%s13 + $0x38] sm:$0xff]
    %v1454 = vld [vmem:[%s13 + $0x40] sm:$0xff]
    %v1455 = vld [vmem:[%s13 + $0x48] sm:$0xff]
    %v1456 = vld [vmem:[%s13 + $0x50] sm:$0xff]
    %v1457 = vld [vmem:[%s13 + $0x58] sm:$0xff]
    %v1458 = vld [vmem:[%s13 + $0x60] sm:$0xff]
    %v1459 = vld [vmem:[%s13 + $0x68] sm:$0xff]
    %v1460 = vld [vmem:[%s13 + $0x70] sm:$0xff]
    %v1461 = vld [vmem:[%s13 + $0x78] sm:$0xff]
    %v1462 = vld [vmem:[%s14] sm:$0x3]
    %v1464 = vlaneseq
    %v1465 = vshrl.u32 %v1464, 7
    %v1466 = vsub.s32 0, %v1465
    %v1467 = vrot.slane %v1462, %v1466
    %v1468 = vlaneseq
    %v1469 = vshrl.u32 %v1468, 7
    %v1470 = vsub.s32 1, %v1469
    %v1471 = vrot.slane %v1462, %v1470
    %v1475 = vsel %vm193, %v1443, 0
    %v1478 = vsel %vm193, %v1444, 0
    %v1481 = vsel %vm193, %v1445, 0
    %1483 = vmatprep.subr.mxu0 %v1447
    %1484 = vmatpush1.msra.mxu0 %v1446
    %1485 = vmatprep.subr.mxu0 %v1449
    %1486 = vmatpush1.msra.mxu0 %v1448
    %1487 = vmatprep.subr.mxu0 %v1451
    %1488 = vmatpush1.msra.mxu0 %v1450
    %1489 = vmatprep.subr.mxu0 %v1453
    %1490 = vmatpush1.msra.mxu0 %v1452
    %1491 = vmatprep.subr.mxu0 %v1455
    %1492 = vmatpush1.msra.mxu0 %v1454
    %1493 = vmatprep.subr.mxu0 %v1457
    %1494 = vmatpush1.msra.mxu0 %v1456
    %1495 = vmatprep.subr.mxu0 %v1459
    %1496 = vmatpush1.msra.mxu0 %v1458
    %1497 = vmatprep.subr.mxu0 %v1461
    %1498 = vmatpush1.msra.mxu0 %v1460
    %1499 = vmatprep.subr.mxu0 0.0
    %1500 = vmatpush1.msra.mxu0 0.0
    %1501 = vmatprep.subr.mxu0 0.0
    %1502 = vmatpush1.msra.mxu0 0.0
    %1503 = vmatprep.subr.mxu0 0.0
    %1504 = vmatpush1.msra.mxu0 0.0
    %1505 = vmatprep.subr.mxu0 0.0
    %1506 = vmatpush1.msra.mxu0 0.0
    %1507 = vmatprep.subr.mxu0 0.0
    %1508 = vmatpush1.msra.mxu0 0.0
    %1509 = vmatprep.subr.mxu0 0.0
    %1510 = vmatpush1.msra.mxu0 0.0
    %1511 = vmatprep.subr.mxu0 0.0
    %1512 = vmatpush1.msra.mxu0 0.0
    %1513 = vmatprep.subr.mxu0 0.0
    %1514 = vmatpush1.msra.mxu0 0.0
    %1515 = vmatprep.subr.mxu0 0.0
    %1516 = vmatpush1.msra.mxu0 0.0
    %1517 = vmatprep.subr.mxu0 0.0
    %1518 = vmatpush1.msra.mxu0 0.0
    %1519 = vmatprep.subr.mxu0 0.0
    %1520 = vmatpush1.msra.mxu0 0.0
    %1521 = vmatprep.subr.mxu0 0.0
    %1522 = vmatpush1.msra.mxu0 0.0
    %1523 = vmatprep.subr.mxu0 0.0
    %1524 = vmatpush1.msra.mxu0 0.0
    %1525 = vmatprep.subr.mxu0 0.0
    %1526 = vmatpush1.msra.mxu0 0.0
    %1527 = vmatprep.subr.mxu0 0.0
    %1528 = vmatpush1.msra.mxu0 0.0
    %1529 = vmatprep.subr.mxu0 0.0
    %1530 = vmatpush1.msra.mxu0 0.0
    %1531 = vmatprep.subr.mxu0 0.0
    %1532 = vmatpush1.msra.mxu0 0.0
    %1533 = vmatprep.subr.mxu0 0.0
    %1534 = vmatpush1.msra.mxu0 0.0
    %1535 = vmatprep.subr.mxu0 0.0
    %1536 = vmatpush1.msra.mxu0 0.0
    %1537 = vmatprep.subr.mxu0 0.0
    %1538 = vmatpush1.msra.mxu0 0.0
    %1539 = vmatprep.subr.mxu0 0.0
    %1540 = vmatpush1.msra.mxu0 0.0
    %1541 = vmatprep.subr.mxu0 0.0
    %1542 = vmatpush1.msra.mxu0 0.0
    %1543 = vmatprep.subr.mxu0 0.0
    %1544 = vmatpush1.msra.mxu0 0.0
    %1545 = vmatprep.subr.mxu0 0.0
    %1546 = vmatpush1.msra.mxu0 0.0
    %1547 = vmatprep.mubr.f32.mxu0 0.0
    %1548 = vmatmul.mubr.f32.gmra.mrb[0].mxu0 %v1475
    %v1549 = vpop.f32.mrb[0].mxu0
    %v1550 = vadd.f32 %v1467, %v1549
    %v1551 = vpop.f32.mrb[0].mxu0
    %v1552 = vadd.f32 %v1471, %v1551
    %1553 = vmatprep.mubr.f32.mxu0 0.0
    %1554 = vmatmul.mubr.f32.gmra.mrb[0].mxu0 %v1478
    %v1555 = vpop.f32.mrb[0].mxu0
    %v1556 = vadd.f32 %v1467, %v1555
    %v1557 = vpop.f32.mrb[0].mxu0
    %v1558 = vadd.f32 %v1471, %v1557
    %1559 = vmatprep.mubr.f32.mxu0 0.0
    %1560 = vmatmul.mubr.f32.gmra.mrb[0].mxu0 %v1481
    %v1561 = vpop.f32.mrb[0].mxu0
    %v1562 = vadd.f32 %v1467, %v1561
    %v1563 = vpop.f32.mrb[0].mxu0
    %v1564 = vadd.f32 %v1471, %v1563
    %1565 = vdwg.mxu0
    %v1566 = vmax.f32 %v1550, 0.0
    %v1567 = vmax.f32 %v1552, 0.0
    %v1568 = vmax.f32 %v1556, 0.0
    %v1569 = vmax.f32 %v1558, 0.0
    %v1570 = vmax.f32 %v1562, 0.0
    %v1571 = vmax.f32 %v1564, 0.0
    %v1572 = vld [vmem:[%s15] sm:$0xff]
    %v1573 = vld [vmem:[%s15 + $0x8] sm:$0xff]
    %v1574 = vld [vmem:[%s15 + $0x10] sm:$0xff]
    %v1575 = vld [vmem:[%s15 + $0x18] sm:$0xff]
    %v1576 = vld [vmem:[%s15 + $0x20] sm:$0xff]
    %v1577 = vld [vmem:[%s15 + $0x28] sm:$0xff]
    %v1578 = vld [vmem:[%s15 + $0x30] sm:$0xff]
    %v1579 = vld [vmem:[%s15 + $0x38] sm:$0xff]
    %v1580 = vld [vmem:[%s15 + $0x40] sm:$0xff]
    %v1581 = vld [vmem:[%s15 + $0x48] sm:$0xff]
    %v1582 = vld [vmem:[%s15 + $0x50] sm:$0xff]
    %v1583 = vld [vmem:[%s15 + $0x58] sm:$0xff]
    %v1584 = vld [vmem:[%s15 + $0x60] sm:$0xff]
    %v1585 = vld [vmem:[%s15 + $0x68] sm:$0xff]
    %v1586 = vld [vmem:[%s15 + $0x70] sm:$0xff]
    %v1587 = vld [vmem:[%s15 + $0x78] sm:$0xff]
    %v1588 = vld [vmem:[%s15 + $0x80] sm:$0xff]
    %v1589 = vld [vmem:[%s15 + $0x88] sm:$0xff]
    %v1590 = vld [vmem:[%s15 + $0x90] sm:$0xff]
    %v1591 = vld [vmem:[%s15 + $0x98] sm:$0xff]
    %v1592 = vld [vmem:[%s15 + $0xa0] sm:$0xff]
    %v1593 = vld [vmem:[%s15 + $0xa8] sm:$0xff]
    %v1594 = vld [vmem:[%s15 + $0xb0] sm:$0xff]
    %v1595 = vld [vmem:[%s15 + $0xb8] sm:$0xff]
    %v1596 = vld [vmem:[%s15 + $0xc0] sm:$0xff]
    %v1597 = vld [vmem:[%s15 + $0xc8] sm:$0xff]
    %v1598 = vld [vmem:[%s15 + $0xd0] sm:$0xff]
    %v1599 = vld [vmem:[%s15 + $0xd8] sm:$0xff]
    %v1600 = vld [vmem:[%s15 + $0xe0] sm:$0xff]
    %v1601 = vld [vmem:[%s15 + $0xe8] sm:$0xff]
    %v1602 = vld [vmem:[%s15 + $0xf0] sm:$0xff]
    %v1603 = vld [vmem:[%s15 + $0xf8] sm:$0xff]
    %v1604 = vld [vmem:[%s16] sm:$0x1]
    %v1606 = vlaneseq
    %v1607 = vshrl.u32 %v1606, 7
    %v1608 = vsub.s32 0, %v1607
    %v1609 = vrot.slane %v1604, %v1608
    %1611 = vmatprep.subr.mxu0 0.0
    %1612 = vmatpush1.msra.mxu0 %v1572
    %1613 = vmatprep.subr.mxu0 0.0
    %1614 = vmatpush1.msra.mxu0 %v1573
    %1615 = vmatprep.subr.mxu0 0.0
    %1616 = vmatpush1.msra.mxu0 %v1574
    %1617 = vmatprep.subr.mxu0 0.0
    %1618 = vmatpush1.msra.mxu0 %v1575
    %1619 = vmatprep.subr.mxu0 0.0
    %1620 = vmatpush1.msra.mxu0 %v1576
    %1621 = vmatprep.subr.mxu0 0.0
    %1622 = vmatpush1.msra.mxu0 %v1577
    %1623 = vmatprep.subr.mxu0 0.0
    %1624 = vmatpush1.msra.mxu0 %v1578
    %1625 = vmatprep.subr.mxu0 0.0
    %1626 = vmatpush1.msra.mxu0 %v1579
    %1627 = vmatprep.subr.mxu0 0.0
    %1628 = vmatpush1.msra.mxu0 %v1580
    %1629 = vmatprep.subr.mxu0 0.0
    %1630 = vmatpush1.msra.mxu0 %v1581
    %1631 = vmatprep.subr.mxu0 0.0
    %1632 = vmatpush1.msra.mxu0 %v1582
    %1633 = vmatprep.subr.mxu0 0.0
    %1634 = vmatpush1.msra.mxu0 %v1583
    %1635 = vmatprep.subr.mxu0 0.0
    %1636 = vmatpush1.msra.mxu0 %v1584
    %1637 = vmatprep.subr.mxu0 0.0
    %1638 = vmatpush1.msra.mxu0 %v1585
    %1639 = vmatprep.subr.mxu0 0.0
    %1640 = vmatpush1.msra.mxu0 %v1586
    %1641 = vmatprep.subr.mxu0 0.0
    %1642 = vmatpush1.msra.mxu0 %v1587
    %1643 = vmatprep.subr.mxu0 0.0
    %1644 = vmatpush1.msra.mxu0 %v1588
    %1645 = vmatprep.subr.mxu0 0.0
    %1646 = vmatpush1.msra.mxu0 %v1589
    %1647 = vmatprep.subr.mxu0 0.0
    %1648 = vmatpush1.msra.mxu0 %v1590
    %1649 = vmatprep.subr.mxu0 0.0
    %1650 = vmatpush1.msra.mxu0 %v1591
    %1651 = vmatprep.subr.mxu0 0.0
    %1652 = vmatpush1.msra.mxu0 %v1592
    %1653 = vmatprep.subr.mxu0 0.0
    %1654 = vmatpush1.msra.mxu0 %v1593
    %1655 = vmatprep.subr.mxu0 0.0
    %1656 = vmatpush1.msra.mxu0 %v1594
    %1657 = vmatprep.subr.mxu0 0.0
    %1658 = vmatpush1.msra.mxu0 %v1595
    %1659 = vmatprep.subr.mxu0 0.0
    %1660 = vmatpush1.msra.mxu0 %v1596
    %1661 = vmatprep.subr.mxu0 0.0
    %1662 = vmatpush1.msra.mxu0 %v1597
    %1663 = vmatprep.subr.mxu0 0.0
    %1664 = vmatpush1.msra.mxu0 %v1598
    %1665 = vmatprep.subr.mxu0 0.0
    %1666 = vmatpush1.msra.mxu0 %v1599
    %1667 = vmatprep.subr.mxu0 0.0
    %1668 = vmatpush1.msra.mxu0 %v1600
    %1669 = vmatprep.subr.mxu0 0.0
    %1670 = vmatpush1.msra.mxu0 %v1601
    %1671 = vmatprep.subr.mxu0 0.0
    %1672 = vmatpush1.msra.mxu0 %v1602
    %1673 = vmatprep.subr.mxu0 0.0
    %1674 = vmatpush1.msra.mxu0 %v1603
    %1675 = vmatprep.mubr.f32.mxu0 %v1567
    %1676 = vmatmul.mubr.f32.gmra.mrb[0].mxu0 %v1566
    %v1677 = vpop.f32.mrb[0].mxu0
    %v1678 = vadd.f32 %v1609, %v1677
    %v1679 = vpop.f32.mrb[0].mxu0
    %1680 = vmatprep.mubr.f32.mxu0 %v1569
    %1681 = vmatmul.mubr.f32.gmra.mrb[0].mxu0 %v1568
    %v1682 = vpop.f32.mrb[0].mxu0
    %v1683 = vadd.f32 %v1609, %v1682
    %v1684 = vpop.f32.mrb[0].mxu0
    %1685 = vmatprep.mubr.f32.mxu0 %v1571
    %1686 = vmatmul.mubr.f32.gmra.mrb[0].mxu0 %v1570
    %v1687 = vpop.f32.mrb[0].mxu0
    %v1688 = vadd.f32 %v1609, %v1687
    %v1689 = vpop.f32.mrb[0].mxu0
    %1690 = vdwg.mxu0
    %v1691 = vadd.f32 %v1443, %v1678
    %v1692 = vadd.f32 %v1444, %v1683
    %v1693 = vadd.f32 %v1445, %v1688
    %v1694 = vld [vmem:[%s11] sm:$0x1]
    %v1695 = vld [vmem:[%s12] sm:$0x1]
    %v1696 = vsel %vm193, %v1691, 0.0
    %1697 = vadd.xlane.f32.xlu0 %v1696
    %v1698 = vpop.xlane.xlu0 %1697
    %v1699 = vsel %vm193, %v1692, 0.0
    %1700 = vadd.xlane.f32.xlu0 %v1699
    %v1701 = vpop.xlane.xlu0 %1700
    %v1702 = vsel %vm1393, %v1693, 0.0
    %1703 = vadd.xlane.f32.xlu0 %v1702
    %v1704 = vpop.xlane.xlu0 %1703
    %v1705 = vmul.f32 %v1698, %v1397
    %v1706 = vmul.f32 %v1701, %v1397
    %v1707 = vmul.f32 %v1704, %v1397
    %v1708 = vsub.f32 %v1691, %v1705
    %v1709 = vsub.f32 %v1692, %v1706
    %v1710 = vsub.f32 %v1693, %v1707
    %v1711 = vmul.f32 %v1708, %v1708
    %v1712 = vmul.f32 %v1709, %v1709
    %v1713 = vmul.f32 %v1710, %v1710
    %v1714 = vsel %vm193, %v1711, 0.0
    %1715 = vadd.xlane.f32.xlu0 %v1714
    %v1716 = vpop.xlane.xlu0 %1715
    %v1717 = vsel %vm193, %v1712, 0.0
    %1718 = vadd.xlane.f32.xlu0 %v1717
    %v1719 = vpop.xlane.xlu0 %1718
    %v1720 = vsel %vm1393, %v1713, 0.0
    %1721 = vadd.xlane.f32.xlu0 %v1720
    %v1722 = vpop.xlane.xlu0 %1721
    %v1723 = vmul.f32 %v1716, %v1397
    %v1724 = vmul.f32 %v1719, %v1397
    %v1725 = vmul.f32 %v1722, %v1397
    %v1726 = vadd.f32 %v1723, 1e-05
    %v1727 = vadd.f32 %v1724, 1e-05
    %v1728 = vadd.f32 %v1725, 1e-05
    %v1729 = vrsqrt.pop %v1726
    %v1730 = vrsqrt.pop %v1727
    %v1731 = vrsqrt.pop %v1728
    %v1732 = vmul.f32 %v1708, %v1729
    %v1733 = vmul.f32 %v1709, %v1730
    %v1734 = vmul.f32 %v1710, %v1731
    %v1736 = vlaneseq
    %v1737 = vshrl.u32 %v1736, 7
    %v1738 = vsub.s32 0, %v1737
    %v1739 = vrot.slane %v1694, %v1738
    %v1741 = vmul.f32 %v1732, %v1739
    %v1742 = vmul.f32 %v1733, %v1739
    %v1743 = vmul.f32 %v1734, %v1739
    %v1745 = vlaneseq
    %v1746 = vshrl.u32 %v1745, 7
    %v1747 = vsub.s32 0, %v1746
    %v1748 = vrot.slane %v1695, %v1747
    %v1750 = vadd.f32 %v1741, %v1748
    %v1751 = vadd.f32 %v1742, %v1748
    %v1752 = vadd.f32 %v1743, %v1748
    %s1753 = scalar_lea.vmem %s5, 128
    %v1754 = vld [vmem:[%s1753] sm:$0xff]
    %v1755 = vld [vmem:[%s1753 + $0x8] sm:$0xff]
    %v1756 = vld [vmem:[%s1753 + $0x10] sm:$0xff]
    %v1757 = vld [vmem:[%s1753 + $0x18] sm:$0xff]
    %v1758 = vld [vmem:[%s1753 + $0x20] sm:$0xff]
    %v1759 = vld [vmem:[%s1753 + $0x28] sm:$0xff]
    %v1760 = vld [vmem:[%s1753 + $0x30] sm:$0xff]
    %v1761 = vld [vmem:[%s1753 + $0x38] sm:$0xff]
    %v1762 = vld [vmem:[%s1753 + $0x40] sm:$0xff]
    %v1763 = vld [vmem:[%s1753 + $0x48] sm:$0xff]
    %v1764 = vld [vmem:[%s1753 + $0x50] sm:$0xff]
    %v1765 = vld [vmem:[%s1753 + $0x58] sm:$0xff]
    %v1766 = vld [vmem:[%s1753 + $0x60] sm:$0xff]
    %v1767 = vld [vmem:[%s1753 + $0x68] sm:$0xff]
    %v1768 = vld [vmem:[%s1753 + $0x70] sm:$0xff]
    %v1769 = vld [vmem:[%s1753 + $0x78] sm:$0xff]
    %s1770 = scalar_lea.vmem %s6, 2
    %v1771 = vld [vmem:[%s1770] sm:$0x3]
    %v1773 = vlaneseq
    %v1774 = vshrl.u32 %v1773, 7
    %v1775 = vsub.s32 0, %v1774
    %v1776 = vrot.slane %v1771, %v1775
    %v1777 = vlaneseq
    %v1778 = vshrl.u32 %v1777, 7
    %v1779 = vsub.s32 1, %v1778
    %v1780 = vrot.slane %v1771, %v1779
    %v1784 = vsel %vm193, %v1750, 0
    %v1787 = vsel %vm193, %v1751, 0
    %v1790 = vsel %vm193, %v1752, 0
    %1792 = vmatprep.subr.mxu0 %v1755
    %1793 = vmatpush1.msra.mxu0 %v1754
    %1794 = vmatprep.subr.mxu0 %v1757
    %1795 = vmatpush1.msra.mxu0 %v1756
    %1796 = vmatprep.subr.mxu0 %v1759
    %1797 = vmatpush1.msra.mxu0 %v1758
    %1798 = vmatprep.subr.mxu0 %v1761
    %1799 = vmatpush1.msra.mxu0 %v1760
    %1800 = vmatprep.subr.mxu0 %v1763
    %1801 = vmatpush1.msra.mxu0 %v1762
    %1802 = vmatprep.subr.mxu0 %v1765
    %1803 = vmatpush1.msra.mxu0 %v1764
    %1804 = vmatprep.subr.mxu0 %v1767
    %1805 = vmatpush1.msra.mxu0 %v1766
    %1806 = vmatprep.subr.mxu0 %v1769
    %1807 = vmatpush1.msra.mxu0 %v1768
    %1808 = vmatprep.subr.mxu0 0.0
    %1809 = vmatpush1.msra.mxu0 0.0
    %1810 = vmatprep.subr.mxu0 0.0
    %1811 = vmatpush1.msra.mxu0 0.0
    %1812 = vmatprep.subr.mxu0 0.0
    %1813 = vmatpush1.msra.mxu0 0.0
    %1814 = vmatprep.subr.mxu0 0.0
    %1815 = vmatpush1.msra.mxu0 0.0
    %1816 = vmatprep.subr.mxu0 0.0
    %1817 = vmatpush1.msra.mxu0 0.0
    %1818 = vmatprep.subr.mxu0 0.0
    %1819 = vmatpush1.msra.mxu0 0.0
    %1820 = vmatprep.subr.mxu0 0.0
    %1821 = vmatpush1.msra.mxu0 0.0
    %1822 = vmatprep.subr.mxu0 0.0
    %1823 = vmatpush1.msra.mxu0 0.0
    %1824 = vmatprep.subr.mxu0 0.0
    %1825 = vmatpush1.msra.mxu0 0.0
    %1826 = vmatprep.subr.mxu0 0.0
    %1827 = vmatpush1.msra.mxu0 0.0
    %1828 = vmatprep.subr.mxu0 0.0
    %1829 = vmatpush1.msra.mxu0 0.0
    %1830 = vmatprep.subr.mxu0 0.0
    %1831 = vmatpush1.msra.mxu0 0.0
    %1832 = vmatprep.subr.mxu0 0.0
    %1833 = vmatpush1.msra.mxu0 0.0
    %1834 = vmatprep.subr.mxu0 0.0
    %1835 = vmatpush1.msra.mxu0 0.0
    %1836 = vmatprep.subr.mxu0 0.0
    %1837 = vmatpush1.msra.mxu0 0.0
    %1838 = vmatprep.subr.mxu0 0.0
    %1839 = vmatpush1.msra.mxu0 0.0
    %1840 = vmatprep.subr.mxu0 0.0
    %1841 = vmatpush1.msra.mxu0 0.0
    %1842 = vmatprep.subr.mxu0 0.0
    %1843 = vmatpush1.msra.mxu0 0.0
    %1844 = vmatprep.subr.mxu0 0.0
    %1845 = vmatpush1.msra.mxu0 0.0
    %1846 = vmatprep.subr.mxu0 0.0
    %1847 = vmatpush1.msra.mxu0 0.0
    %1848 = vmatprep.subr.mxu0 0.0
    %1849 = vmatpush1.msra.mxu0 0.0
    %1850 = vmatprep.subr.mxu0 0.0
    %1851 = vmatpush1.msra.mxu0 0.0
    %1852 = vmatprep.subr.mxu0 0.0
    %1853 = vmatpush1.msra.mxu0 0.0
    %1854 = vmatprep.subr.mxu0 0.0
    %1855 = vmatpush1.msra.mxu0 0.0
    %1856 = vmatprep.mubr.f32.mxu0 0.0
    %1857 = vmatmul.mubr.f32.gmra.mrb[0].mxu0 %v1784
    %v1858 = vpop.f32.mrb[0].mxu0
    %v1859 = vadd.f32 %v1776, %v1858
    %v1860 = vpop.f32.mrb[0].mxu0
    %v1861 = vadd.f32 %v1780, %v1860
    %1862 = vmatprep.mubr.f32.mxu0 0.0
    %1863 = vmatmul.mubr.f32.gmra.mrb[0].mxu0 %v1787
    %v1864 = vpop.f32.mrb[0].mxu0
    %v1865 = vadd.f32 %v1776, %v1864
    %v1866 = vpop.f32.mrb[0].mxu0
    %v1867 = vadd.f32 %v1780, %v1866
    %1868 = vmatprep.mubr.f32.mxu0 0.0
    %1869 = vmatmul.mubr.f32.gmra.mrb[0].mxu0 %v1790
    %v1870 = vpop.f32.mrb[0].mxu0
    %v1871 = vadd.f32 %v1776, %v1870
    %v1872 = vpop.f32.mrb[0].mxu0
    %v1873 = vadd.f32 %v1780, %v1872
    %1874 = vdwg.mxu0
    %v1875 = vmul.f32 %v1859, 0.25
    %v1876 = vmul.f32 %v1865, 0.25
    %v1877 = vmul.f32 %v1871, 0.25
    %1881 = vrot.lane.b32.xlu0 %v1859, 64
    %v1882 = vpop.permute.xlu0 %1881
    %1883 = vrot.lane.b32.xlu0 %v1865, 64
    %v1884 = vpop.permute.xlu0 %1883
    %1885 = vrot.lane.b32.xlu0 %v1871, 64
    %v1886 = vpop.permute.xlu0 %1885
    %v1888 = vsel %vm298, %v1875, 0
    %v1891 = vsel %vm298, %v1876, 0
    %v1894 = vsel %vm298, %v1877, 0
    %v1896 = vsel %vm298, %v1882, 0
    %v1898 = vsel %vm298, %v1884, 0
    %v1900 = vsel %vm298, %v1886, 0
    %1902 = vmatprep.subr.mxu0 0.0
    %1903 = vmatpush1.xpose.msra.mxu0 %v1896
    %1904 = vmatprep.subr.mxu0 0.0
    %1905 = vmatpush1.xpose.msra.mxu0 %v1898
    %1906 = vmatprep.subr.mxu0 0.0
    %1907 = vmatpush1.xpose.msra.mxu0 %v1900
    %1908 = vmatprep.subr.mxu0 0.0
    %1909 = vmatpush1.xpose.msra.mxu0 0.0
    %1910 = vmatprep.subr.mxu0 0.0
    %1911 = vmatpush1.xpose.msra.mxu0 0.0
    %1912 = vmatprep.subr.mxu0 0.0
    %1913 = vmatpush1.xpose.msra.mxu0 0.0
    %1914 = vmatprep.subr.mxu0 0.0
    %1915 = vmatpush1.xpose.msra.mxu0 0.0
    %1916 = vmatprep.subr.mxu0 0.0
    %1917 = vmatpush1.xpose.msra.mxu0 0.0
    %1918 = vmatprep.subr.mxu0 0.0
    %1919 = vmatpush1.xpose.msra.mxu0 0.0
    %1920 = vmatprep.subr.mxu0 0.0
    %1921 = vmatpush1.xpose.msra.mxu0 0.0
    %1922 = vmatprep.subr.mxu0 0.0
    %1923 = vmatpush1.xpose.msra.mxu0 0.0
    %1924 = vmatprep.subr.mxu0 0.0
    %1925 = vmatpush1.xpose.msra.mxu0 0.0
    %1926 = vmatprep.subr.mxu0 0.0
    %1927 = vmatpush1.xpose.msra.mxu0 0.0
    %1928 = vmatprep.subr.mxu0 0.0
    %1929 = vmatpush1.xpose.msra.mxu0 0.0
    %1930 = vmatprep.subr.mxu0 0.0
    %1931 = vmatpush1.xpose.msra.mxu0 0.0
    %1932 = vmatprep.subr.mxu0 0.0
    %1933 = vmatpush1.xpose.msra.mxu0 0.0
    %1934 = vmatprep.subr.mxu0 0.0
    %1935 = vmatpush1.xpose.msra.mxu0 0.0
    %1936 = vmatprep.subr.mxu0 0.0
    %1937 = vmatpush1.xpose.msra.mxu0 0.0
    %1938 = vmatprep.subr.mxu0 0.0
    %1939 = vmatpush1.xpose.msra.mxu0 0.0
    %1940 = vmatprep.subr.mxu0 0.0
    %1941 = vmatpush1.xpose.msra.mxu0 0.0
    %1942 = vmatprep.subr.mxu0 0.0
    %1943 = vmatpush1.xpose.msra.mxu0 0.0
    %1944 = vmatprep.subr.mxu0 0.0
    %1945 = vmatpush1.xpose.msra.mxu0 0.0
    %1946 = vmatprep.subr.mxu0 0.0
    %1947 = vmatpush1.xpose.msra.mxu0 0.0
    %1948 = vmatprep.subr.mxu0 0.0
    %1949 = vmatpush1.xpose.msra.mxu0 0.0
    %1950 = vmatprep.subr.mxu0 0.0
    %1951 = vmatpush1.xpose.msra.mxu0 0.0
    %1952 = vmatprep.subr.mxu0 0.0
    %1953 = vmatpush1.xpose.msra.mxu0 0.0
    %1954 = vmatprep.subr.mxu0 0.0
    %1955 = vmatpush1.xpose.msra.mxu0 0.0
    %1956 = vmatprep.subr.mxu0 0.0
    %1957 = vmatpush1.xpose.msra.mxu0 0.0
    %1958 = vmatprep.subr.mxu0 0.0
    %1959 = vmatpush1.xpose.msra.mxu0 0.0
    %1960 = vmatprep.subr.mxu0 0.0
    %1961 = vmatpush1.xpose.msra.mxu0 0.0
    %1962 = vmatprep.subr.mxu0 0.0
    %1963 = vmatpush1.xpose.msra.mxu0 0.0
    %1964 = vmatprep.subr.mxu0 0.0
    %1965 = vmatpush1.xpose.msra.mxu0 0.0
    %1966 = vmatprep.mubr.f32.mxu0 0.0
    %1967 = vmatmul.mubr.f32.gmra.mrb[0].mxu0 %v1888
    %v1968 = vpop.f32.mrb[0].mxu0
    %v1969 = vadd.f32 %v60, %v1968
    %v1970 = vpop.f32.mrb[0].mxu0
    %1971 = vmatprep.mubr.f32.mxu0 0.0
    %1972 = vmatmul.mubr.f32.gmra.mrb[0].mxu0 %v1891
    %v1973 = vpop.f32.mrb[0].mxu0
    %v1974 = vadd.f32 %v61, %v1973
    %v1975 = vpop.f32.mrb[0].mxu0
    %1976 = vmatprep.mubr.f32.mxu0 0.0
    %1977 = vmatmul.mubr.f32.gmra.mrb[0].mxu0 %v1894
    %v1978 = vpop.f32.mrb[0].mxu0
    %v1979 = vadd.f32 %v62, %v1978
    %v1980 = vpop.f32.mrb[0].mxu0
    %1981 = vdwg.mxu0
    %v1982 = vsel %vm394, %v1969, -inf
    %1983 = vmax.xlane.f32.xlu0 %v1982
    %v1984 = vpop.xlane.xlu0 %1983
    %v1985 = vsel %vm394, %v1974, -inf
    %1986 = vmax.xlane.f32.xlu0 %v1985
    %v1987 = vpop.xlane.xlu0 %1986
    %v1988 = vsel %vm401, %v1979, -inf
    %1989 = vmax.xlane.f32.xlu0 %v1988
    %v1990 = vpop.xlane.xlu0 %1989
    %v1991 = vsub.f32 %v1969, %v1984
    %v1992 = vsub.f32 %v1974, %v1987
    %v1993 = vsub.f32 %v1979, %v1990
    %v1994 = vmul.f32 %v1991, 1.442695
    %v1995 = vpow.pop %v1994
    %v1996 = vmul.f32 %v1992, 1.442695
    %v1997 = vpow.pop %v1996
    %v1998 = vmul.f32 %v1993, 1.442695
    %v1999 = vpow.pop %v1998
    %v2000 = vsel %vm394, %v1995, 0.0
    %2001 = vadd.xlane.f32.xlu0 %v2000
    %v2002 = vpop.xlane.xlu0 %2001
    %v2003 = vsel %vm394, %v1997, 0.0
    %2004 = vadd.xlane.f32.xlu0 %v2003
    %v2005 = vpop.xlane.xlu0 %2004
    %v2006 = vsel %vm401, %v1999, 0.0
    %2007 = vadd.xlane.f32.xlu0 %v2006
    %v2008 = vpop.xlane.xlu0 %2007
    %v2009 = vrcp.pop %v2002
    %v2010 = vrcp.pop %v2005
    %v2011 = vrcp.pop %v2008
    %v2012 = vmul.f32 %v1995, %v2009
    %v2013 = vmul.f32 %v1997, %v2010
    %v2014 = vmul.f32 %v1999, %v2011
    %v2016 = vsel %vm394, %v2012, 0
    %v2019 = vsel %vm394, %v2013, 0
    %v2022 = vsel %vm394, %v2014, 0
    %v2025 = vsel %vm81, %v1873, 0
    %2027 = vmatprep.subr.mxu0 0.0
    %2028 = vmatpush1.msra.mxu0 %v1861
    %2029 = vmatprep.subr.mxu0 0.0
    %2030 = vmatpush1.msra.mxu0 %v1867
    %2031 = vmatprep.subr.mxu0 0.0
    %2032 = vmatpush1.msra.mxu0 %v2025
    %2033 = vmatprep.subr.mxu0 0.0
    %2034 = vmatpush1.msra.mxu0 0.0
    %2035 = vmatprep.subr.mxu0 0.0
    %2036 = vmatpush1.msra.mxu0 0.0
    %2037 = vmatprep.subr.mxu0 0.0
    %2038 = vmatpush1.msra.mxu0 0.0
    %2039 = vmatprep.subr.mxu0 0.0
    %2040 = vmatpush1.msra.mxu0 0.0
    %2041 = vmatprep.subr.mxu0 0.0
    %2042 = vmatpush1.msra.mxu0 0.0
    %2043 = vmatprep.subr.mxu0 0.0
    %2044 = vmatpush1.msra.mxu0 0.0
    %2045 = vmatprep.subr.mxu0 0.0
    %2046 = vmatpush1.msra.mxu0 0.0
    %2047 = vmatprep.subr.mxu0 0.0
    %2048 = vmatpush1.msra.mxu0 0.0
    %2049 = vmatprep.subr.mxu0 0.0
    %2050 = vmatpush1.msra.mxu0 0.0
    %2051 = vmatprep.subr.mxu0 0.0
    %2052 = vmatpush1.msra.mxu0 0.0
    %2053 = vmatprep.subr.mxu0 0.0
    %2054 = vmatpush1.msra.mxu0 0.0
    %2055 = vmatprep.subr.mxu0 0.0
    %2056 = vmatpush1.msra.mxu0 0.0
    %2057 = vmatprep.subr.mxu0 0.0
    %2058 = vmatpush1.msra.mxu0 0.0
    %2059 = vmatprep.subr.mxu0 0.0
    %2060 = vmatpush1.msra.mxu0 0.0
    %2061 = vmatprep.subr.mxu0 0.0
    %2062 = vmatpush1.msra.mxu0 0.0
    %2063 = vmatprep.subr.mxu0 0.0
    %2064 = vmatpush1.msra.mxu0 0.0
    %2065 = vmatprep.subr.mxu0 0.0
    %2066 = vmatpush1.msra.mxu0 0.0
    %2067 = vmatprep.subr.mxu0 0.0
    %2068 = vmatpush1.msra.mxu0 0.0
    %2069 = vmatprep.subr.mxu0 0.0
    %2070 = vmatpush1.msra.mxu0 0.0
    %2071 = vmatprep.subr.mxu0 0.0
    %2072 = vmatpush1.msra.mxu0 0.0
    %2073 = vmatprep.subr.mxu0 0.0
    %2074 = vmatpush1.msra.mxu0 0.0
    %2075 = vmatprep.subr.mxu0 0.0
    %2076 = vmatpush1.msra.mxu0 0.0
    %2077 = vmatprep.subr.mxu0 0.0
    %2078 = vmatpush1.msra.mxu0 0.0
    %2079 = vmatprep.subr.mxu0 0.0
    %2080 = vmatpush1.msra.mxu0 0.0
    %2081 = vmatprep.subr.mxu0 0.0
    %2082 = vmatpush1.msra.mxu0 0.0
    %2083 = vmatprep.subr.mxu0 0.0
    %2084 = vmatpush1.msra.mxu0 0.0
    %2085 = vmatprep.subr.mxu0 0.0
    %2086 = vmatpush1.msra.mxu0 0.0
    %2087 = vmatprep.subr.mxu0 0.0
    %2088 = vmatpush1.msra.mxu0 0.0
    %2089 = vmatprep.subr.mxu0 0.0
    %2090 = vmatpush1.msra.mxu0 0.0
    %2091 = vmatprep.mubr.f32.mxu0 0.0
    %2092 = vmatmul.mubr.f32.gmra.mrb[0].mxu0 %v2016
    %v2093 = vpop.f32.mrb[0].mxu0
    %v2094 = vadd.f32 0.0, %v2093
    %v2095 = vpop.f32.mrb[0].mxu0
    %2096 = vmatprep.mubr.f32.mxu0 0.0
    %2097 = vmatmul.mubr.f32.gmra.mrb[0].mxu0 %v2019
    %v2098 = vpop.f32.mrb[0].mxu0
    %v2099 = vadd.f32 0.0, %v2098
    %v2100 = vpop.f32.mrb[0].mxu0
    %2101 = vmatprep.mubr.f32.mxu0 0.0
    %2102 = vmatmul.mubr.f32.gmra.mrb[0].mxu0 %v2022
    %v2103 = vpop.f32.mrb[0].mxu0
    %v2104 = vadd.f32 0.0, %v2103
    %v2105 = vpop.f32.mrb[0].mxu0
    %2106 = vdwg.mxu0
    %2107 = vrot.lane.b32.xlu0 %v1875, 112
    %v2108 = vpop.permute.xlu0 %2107
    %2109 = vrot.lane.b32.xlu0 %v1876, 112
    %v2110 = vpop.permute.xlu0 %2109
    %2111 = vrot.lane.b32.xlu0 %v1877, 112
    %v2112 = vpop.permute.xlu0 %2111
    %2113 = vrot.lane.b32.xlu0 %v1859, 48
    %v2114 = vpop.permute.xlu0 %2113
    %2115 = vrot.lane.b32.xlu0 %v1865, 48
    %v2116 = vpop.permute.xlu0 %2115
    %2117 = vrot.lane.b32.xlu0 %v1871, 48
    %v2118 = vpop.permute.xlu0 %2117
    %v2119 = vsel %vm298, %v2108, 0
    %v2121 = vsel %vm298, %v2110, 0
    %v2123 = vsel %vm298, %v2112, 0
    %v2125 = vsel %vm298, %v2114, 0
    %v2127 = vsel %vm298, %v2116, 0
    %v2129 = vsel %vm298, %v2118, 0
    %2131 = vmatprep.subr.mxu0 0.0
    %2132 = vmatpush1.xpose.msra.mxu0 %v2125
    %2133 = vmatprep.subr.mxu0 0.0
    %2134 = vmatpush1.xpose.msra.mxu0 %v2127
    %2135 = vmatprep.subr.mxu0 0.0
    %2136 = vmatpush1.xpose.msra.mxu0 %v2129
    %2137 = vmatprep.subr.mxu0 0.0
    %2138 = vmatpush1.xpose.msra.mxu0 0.0
    %2139 = vmatprep.subr.mxu0 0.0
    %2140 = vmatpush1.xpose.msra.mxu0 0.0
    %2141 = vmatprep.subr.mxu0 0.0
    %2142 = vmatpush1.xpose.msra.mxu0 0.0
    %2143 = vmatprep.subr.mxu0 0.0
    %2144 = vmatpush1.xpose.msra.mxu0 0.0
    %2145 = vmatprep.subr.mxu0 0.0
    %2146 = vmatpush1.xpose.msra.mxu0 0.0
    %2147 = vmatprep.subr.mxu0 0.0
    %2148 = vmatpush1.xpose.msra.mxu0 0.0
    %2149 = vmatprep.subr.mxu0 0.0
    %2150 = vmatpush1.xpose.msra.mxu0 0.0
    %2151 = vmatprep.subr.mxu0 0.0
    %2152 = vmatpush1.xpose.msra.mxu0 0.0
    %2153 = vmatprep.subr.mxu0 0.0
    %2154 = vmatpush1.xpose.msra.mxu0 0.0
    %2155 = vmatprep.subr.mxu0 0.0
    %2156 = vmatpush1.xpose.msra.mxu0 0.0
    %2157 = vmatprep.subr.mxu0 0.0
    %2158 = vmatpush1.xpose.msra.mxu0 0.0
    %2159 = vmatprep.subr.mxu0 0.0
    %2160 = vmatpush1.xpose.msra.mxu0 0.0
    %2161 = vmatprep.subr.mxu0 0.0
    %2162 = vmatpush1.xpose.msra.mxu0 0.0
    %2163 = vmatprep.subr.mxu0 0.0
    %2164 = vmatpush1.xpose.msra.mxu0 0.0
    %2165 = vmatprep.subr.mxu0 0.0
    %2166 = vmatpush1.xpose.msra.mxu0 0.0
    %2167 = vmatprep.subr.mxu0 0.0
    %2168 = vmatpush1.xpose.msra.mxu0 0.0
    %2169 = vmatprep.subr.mxu0 0.0
    %2170 = vmatpush1.xpose.msra.mxu0 0.0
    %2171 = vmatprep.subr.mxu0 0.0
    %2172 = vmatpush1.xpose.msra.mxu0 0.0
    %2173 = vmatprep.subr.mxu0 0.0
    %2174 = vmatpush1.xpose.msra.mxu0 0.0
    %2175 = vmatprep.subr.mxu0 0.0
    %2176 = vmatpush1.xpose.msra.mxu0 0.0
    %2177 = vmatprep.subr.mxu0 0.0
    %2178 = vmatpush1.xpose.msra.mxu0 0.0
    %2179 = vmatprep.subr.mxu0 0.0
    %2180 = vmatpush1.xpose.msra.mxu0 0.0
    %2181 = vmatprep.subr.mxu0 0.0
    %2182 = vmatpush1.xpose.msra.mxu0 0.0
    %2183 = vmatprep.subr.mxu0 0.0
    %2184 = vmatpush1.xpose.msra.mxu0 0.0
    %2185 = vmatprep.subr.mxu0 0.0
    %2186 = vmatpush1.xpose.msra.mxu0 0.0
    %2187 = vmatprep.subr.mxu0 0.0
    %2188 = vmatpush1.xpose.msra.mxu0 0.0
    %2189 = vmatprep.subr.mxu0 0.0
    %2190 = vmatpush1.xpose.msra.mxu0 0.0
    %2191 = vmatprep.subr.mxu0 0.0
    %2192 = vmatpush1.xpose.msra.mxu0 0.0
    %2193 = vmatprep.subr.mxu0 0.0
    %2194 = vmatpush1.xpose.msra.mxu0 0.0
    %2195 = vmatprep.mubr.f32.mxu0 0.0
    %2196 = vmatmul.mubr.f32.gmra.mrb[0].mxu0 %v2119
    %v2197 = vpop.f32.mrb[0].mxu0
    %v2198 = vadd.f32 %v60, %v2197
    %v2199 = vpop.f32.mrb[0].mxu0
    %2200 = vmatprep.mubr.f32.mxu0 0.0
    %2201 = vmatmul.mubr.f32.gmra.mrb[0].mxu0 %v2121
    %v2202 = vpop.f32.mrb[0].mxu0
    %v2203 = vadd.f32 %v61, %v2202
    %v2204 = vpop.f32.mrb[0].mxu0
    %2205 = vmatprep.mubr.f32.mxu0 0.0
    %2206 = vmatmul.mubr.f32.gmra.mrb[0].mxu0 %v2123
    %v2207 = vpop.f32.mrb[0].mxu0
    %v2208 = vadd.f32 %v62, %v2207
    %v2209 = vpop.f32.mrb[0].mxu0
    %2210 = vdwg.mxu0
    %v2211 = vsel %vm394, %v2198, -inf
    %2212 = vmax.xlane.f32.xlu0 %v2211
    %v2213 = vpop.xlane.xlu0 %2212
    %v2214 = vsel %vm394, %v2203, -inf
    %2215 = vmax.xlane.f32.xlu0 %v2214
    %v2216 = vpop.xlane.xlu0 %2215
    %v2217 = vsel %vm401, %v2208, -inf
    %2218 = vmax.xlane.f32.xlu0 %v2217
    %v2219 = vpop.xlane.xlu0 %2218
    %v2220 = vsub.f32 %v2198, %v2213
    %v2221 = vsub.f32 %v2203, %v2216
    %v2222 = vsub.f32 %v2208, %v2219
    %v2223 = vmul.f32 %v2220, 1.442695
    %v2224 = vpow.pop %v2223
    %v2225 = vmul.f32 %v2221, 1.442695
    %v2226 = vpow.pop %v2225
    %v2227 = vmul.f32 %v2222, 1.442695
    %v2228 = vpow.pop %v2227
    %v2229 = vsel %vm394, %v2224, 0.0
    %2230 = vadd.xlane.f32.xlu0 %v2229
    %v2231 = vpop.xlane.xlu0 %2230
    %v2232 = vsel %vm394, %v2226, 0.0
    %2233 = vadd.xlane.f32.xlu0 %v2232
    %v2234 = vpop.xlane.xlu0 %2233
    %v2235 = vsel %vm401, %v2228, 0.0
    %2236 = vadd.xlane.f32.xlu0 %v2235
    %v2237 = vpop.xlane.xlu0 %2236
    %v2238 = vrcp.pop %v2231
    %v2239 = vrcp.pop %v2234
    %v2240 = vrcp.pop %v2237
    %v2241 = vmul.f32 %v2224, %v2238
    %v2242 = vmul.f32 %v2226, %v2239
    %v2243 = vmul.f32 %v2228, %v2240
    %2246 = vrot.lane.b32.xlu0 %v1861, 112
    %v2247 = vpop.permute.xlu0 %2246
    %2248 = vrot.lane.b32.xlu0 %v1867, 112
    %v2249 = vpop.permute.xlu0 %2248
    %2250 = vrot.lane.b32.xlu0 %v1873, 112
    %v2251 = vpop.permute.xlu0 %2250
    %v2255 = vsel %vm394, %v2241, 0
    %v2258 = vsel %vm394, %v2242, 0
    %v2261 = vsel %vm394, %v2243, 0
    %v2263 = vsel %vm81, %v2251, 0
    %2265 = vmatprep.subr.mxu0 0.0
    %2266 = vmatpush1.msra.mxu0 %v2247
    %2267 = vmatprep.subr.mxu0 0.0
    %2268 = vmatpush1.msra.mxu0 %v2249
    %2269 = vmatprep.subr.mxu0 0.0
    %2270 = vmatpush1.msra.mxu0 %v2263
    %2271 = vmatprep.subr.mxu0 0.0
    %2272 = vmatpush1.msra.mxu0 0.0
    %2273 = vmatprep.subr.mxu0 0.0
    %2274 = vmatpush1.msra.mxu0 0.0
    %2275 = vmatprep.subr.mxu0 0.0
    %2276 = vmatpush1.msra.mxu0 0.0
    %2277 = vmatprep.subr.mxu0 0.0
    %2278 = vmatpush1.msra.mxu0 0.0
    %2279 = vmatprep.subr.mxu0 0.0
    %2280 = vmatpush1.msra.mxu0 0.0
    %2281 = vmatprep.subr.mxu0 0.0
    %2282 = vmatpush1.msra.mxu0 0.0
    %2283 = vmatprep.subr.mxu0 0.0
    %2284 = vmatpush1.msra.mxu0 0.0
    %2285 = vmatprep.subr.mxu0 0.0
    %2286 = vmatpush1.msra.mxu0 0.0
    %2287 = vmatprep.subr.mxu0 0.0
    %2288 = vmatpush1.msra.mxu0 0.0
    %2289 = vmatprep.subr.mxu0 0.0
    %2290 = vmatpush1.msra.mxu0 0.0
    %2291 = vmatprep.subr.mxu0 0.0
    %2292 = vmatpush1.msra.mxu0 0.0
    %2293 = vmatprep.subr.mxu0 0.0
    %2294 = vmatpush1.msra.mxu0 0.0
    %2295 = vmatprep.subr.mxu0 0.0
    %2296 = vmatpush1.msra.mxu0 0.0
    %2297 = vmatprep.subr.mxu0 0.0
    %2298 = vmatpush1.msra.mxu0 0.0
    %2299 = vmatprep.subr.mxu0 0.0
    %2300 = vmatpush1.msra.mxu0 0.0
    %2301 = vmatprep.subr.mxu0 0.0
    %2302 = vmatpush1.msra.mxu0 0.0
    %2303 = vmatprep.subr.mxu0 0.0
    %2304 = vmatpush1.msra.mxu0 0.0
    %2305 = vmatprep.subr.mxu0 0.0
    %2306 = vmatpush1.msra.mxu0 0.0
    %2307 = vmatprep.subr.mxu0 0.0
    %2308 = vmatpush1.msra.mxu0 0.0
    %2309 = vmatprep.subr.mxu0 0.0
    %2310 = vmatpush1.msra.mxu0 0.0
    %2311 = vmatprep.subr.mxu0 0.0
    %2312 = vmatpush1.msra.mxu0 0.0
    %2313 = vmatprep.subr.mxu0 0.0
    %2314 = vmatpush1.msra.mxu0 0.0
    %2315 = vmatprep.subr.mxu0 0.0
    %2316 = vmatpush1.msra.mxu0 0.0
    %2317 = vmatprep.subr.mxu0 0.0
    %2318 = vmatpush1.msra.mxu0 0.0
    %2319 = vmatprep.subr.mxu0 0.0
    %2320 = vmatpush1.msra.mxu0 0.0
    %2321 = vmatprep.subr.mxu0 0.0
    %2322 = vmatpush1.msra.mxu0 0.0
    %2323 = vmatprep.subr.mxu0 0.0
    %2324 = vmatpush1.msra.mxu0 0.0
    %2325 = vmatprep.subr.mxu0 0.0
    %2326 = vmatpush1.msra.mxu0 0.0
    %2327 = vmatprep.subr.mxu0 0.0
    %2328 = vmatpush1.msra.mxu0 0.0
    %2329 = vmatprep.mubr.f32.mxu0 0.0
    %2330 = vmatmul.mubr.f32.gmra.mrb[0].mxu0 %v2255
    %v2331 = vpop.f32.mrb[0].mxu0
    %v2332 = vadd.f32 0.0, %v2331
    %v2333 = vpop.f32.mrb[0].mxu0
    %2334 = vmatprep.mubr.f32.mxu0 0.0
    %2335 = vmatmul.mubr.f32.gmra.mrb[0].mxu0 %v2258
    %v2336 = vpop.f32.mrb[0].mxu0
    %v2337 = vadd.f32 0.0, %v2336
    %v2338 = vpop.f32.mrb[0].mxu0
    %2339 = vmatprep.mubr.f32.mxu0 0.0
    %2340 = vmatmul.mubr.f32.gmra.mrb[0].mxu0 %v2261
    %v2341 = vpop.f32.mrb[0].mxu0
    %v2342 = vadd.f32 0.0, %v2341
    %v2343 = vpop.f32.mrb[0].mxu0
    %2344 = vdwg.mxu0
    %2345 = vrot.lane.b32.xlu0 %v1875, 96
    %v2346 = vpop.permute.xlu0 %2345
    %2347 = vrot.lane.b32.xlu0 %v1876, 96
    %v2348 = vpop.permute.xlu0 %2347
    %2349 = vrot.lane.b32.xlu0 %v1877, 96
    %v2350 = vpop.permute.xlu0 %2349
    %2351 = vrot.lane.b32.xlu0 %v1859, 32
    %v2352 = vpop.permute.xlu0 %2351
    %2353 = vrot.lane.b32.xlu0 %v1865, 32
    %v2354 = vpop.permute.xlu0 %2353
    %2355 = vrot.lane.b32.xlu0 %v1871, 32
    %v2356 = vpop.permute.xlu0 %2355
    %v2357 = vsel %vm298, %v2346, 0
    %v2359 = vsel %vm298, %v2348, 0
    %v2361 = vsel %vm298, %v2350, 0
    %v2363 = vsel %vm298, %v2352, 0
    %v2365 = vsel %vm298, %v2354, 0
    %v2367 = vsel %vm298, %v2356, 0
    %2369 = vmatprep.subr.mxu0 0.0
    %2370 = vmatpush1.xpose.msra.mxu0 %v2363
    %2371 = vmatprep.subr.mxu0 0.0
    %2372 = vmatpush1.xpose.msra.mxu0 %v2365
    %2373 = vmatprep.subr.mxu0 0.0
    %2374 = vmatpush1.xpose.msra.mxu0 %v2367
    %2375 = vmatprep.subr.mxu0 0.0
    %2376 = vmatpush1.xpose.msra.mxu0 0.0
    %2377 = vmatprep.subr.mxu0 0.0
    %2378 = vmatpush1.xpose.msra.mxu0 0.0
    %2379 = vmatprep.subr.mxu0 0.0
    %2380 = vmatpush1.xpose.msra.mxu0 0.0
    %2381 = vmatprep.subr.mxu0 0.0
    %2382 = vmatpush1.xpose.msra.mxu0 0.0
    %2383 = vmatprep.subr.mxu0 0.0
    %2384 = vmatpush1.xpose.msra.mxu0 0.0
    %2385 = vmatprep.subr.mxu0 0.0
    %2386 = vmatpush1.xpose.msra.mxu0 0.0
    %2387 = vmatprep.subr.mxu0 0.0
    %2388 = vmatpush1.xpose.msra.mxu0 0.0
    %2389 = vmatprep.subr.mxu0 0.0
    %2390 = vmatpush1.xpose.msra.mxu0 0.0
    %2391 = vmatprep.subr.mxu0 0.0
    %2392 = vmatpush1.xpose.msra.mxu0 0.0
    %2393 = vmatprep.subr.mxu0 0.0
    %2394 = vmatpush1.xpose.msra.mxu0 0.0
    %2395 = vmatprep.subr.mxu0 0.0
    %2396 = vmatpush1.xpose.msra.mxu0 0.0
    %2397 = vmatprep.subr.mxu0 0.0
    %2398 = vmatpush1.xpose.msra.mxu0 0.0
    %2399 = vmatprep.subr.mxu0 0.0
    %2400 = vmatpush1.xpose.msra.mxu0 0.0
    %2401 = vmatprep.subr.mxu0 0.0
    %2402 = vmatpush1.xpose.msra.mxu0 0.0
    %2403 = vmatprep.subr.mxu0 0.0
    %2404 = vmatpush1.xpose.msra.mxu0 0.0
    %2405 = vmatprep.subr.mxu0 0.0
    %2406 = vmatpush1.xpose.msra.mxu0 0.0
    %2407 = vmatprep.subr.mxu0 0.0
    %2408 = vmatpush1.xpose.msra.mxu0 0.0
    %2409 = vmatprep.subr.mxu0 0.0
    %2410 = vmatpush1.xpose.msra.mxu0 0.0
    %2411 = vmatprep.subr.mxu0 0.0
    %2412 = vmatpush1.xpose.msra.mxu0 0.0
    %2413 = vmatprep.subr.mxu0 0.0
    %2414 = vmatpush1.xpose.msra.mxu0 0.0
    %2415 = vmatprep.subr.mxu0 0.0
    %2416 = vmatpush1.xpose.msra.mxu0 0.0
    %2417 = vmatprep.subr.mxu0 0.0
    %2418 = vmatpush1.xpose.msra.mxu0 0.0
    %2419 = vmatprep.subr.mxu0 0.0
    %2420 = vmatpush1.xpose.msra.mxu0 0.0
    %2421 = vmatprep.subr.mxu0 0.0
    %2422 = vmatpush1.xpose.msra.mxu0 0.0
    %2423 = vmatprep.subr.mxu0 0.0
    %2424 = vmatpush1.xpose.msra.mxu0 0.0
    %2425 = vmatprep.subr.mxu0 0.0
    %2426 = vmatpush1.xpose.msra.mxu0 0.0
    %2427 = vmatprep.subr.mxu0 0.0
    %2428 = vmatpush1.xpose.msra.mxu0 0.0
    %2429 = vmatprep.subr.mxu0 0.0
    %2430 = vmatpush1.xpose.msra.mxu0 0.0
    %2431 = vmatprep.subr.mxu0 0.0
    %2432 = vmatpush1.xpose.msra.mxu0 0.0
    %2433 = vmatprep.mubr.f32.mxu0 0.0
    %2434 = vmatmul.mubr.f32.gmra.mrb[0].mxu0 %v2357
    %v2435 = vpop.f32.mrb[0].mxu0
    %v2436 = vadd.f32 %v60, %v2435
    %v2437 = vpop.f32.mrb[0].mxu0
    %2438 = vmatprep.mubr.f32.mxu0 0.0
    %2439 = vmatmul.mubr.f32.gmra.mrb[0].mxu0 %v2359
    %v2440 = vpop.f32.mrb[0].mxu0
    %v2441 = vadd.f32 %v61, %v2440
    %v2442 = vpop.f32.mrb[0].mxu0
    %2443 = vmatprep.mubr.f32.mxu0 0.0
    %2444 = vmatmul.mubr.f32.gmra.mrb[0].mxu0 %v2361
    %v2445 = vpop.f32.mrb[0].mxu0
    %v2446 = vadd.f32 %v62, %v2445
    %v2447 = vpop.f32.mrb[0].mxu0
    %2448 = vdwg.mxu0
    %v2449 = vsel %vm394, %v2436, -inf
    %2450 = vmax.xlane.f32.xlu0 %v2449
    %v2451 = vpop.xlane.xlu0 %2450
    %v2452 = vsel %vm394, %v2441, -inf
    %2453 = vmax.xlane.f32.xlu0 %v2452
    %v2454 = vpop.xlane.xlu0 %2453
    %v2455 = vsel %vm401, %v2446, -inf
    %2456 = vmax.xlane.f32.xlu0 %v2455
    %v2457 = vpop.xlane.xlu0 %2456
    %v2458 = vsub.f32 %v2436, %v2451
    %v2459 = vsub.f32 %v2441, %v2454
    %v2460 = vsub.f32 %v2446, %v2457
    %v2461 = vmul.f32 %v2458, 1.442695
    %v2462 = vpow.pop %v2461
    %v2463 = vmul.f32 %v2459, 1.442695
    %v2464 = vpow.pop %v2463
    %v2465 = vmul.f32 %v2460, 1.442695
    %v2466 = vpow.pop %v2465
    %v2467 = vsel %vm394, %v2462, 0.0
    %2468 = vadd.xlane.f32.xlu0 %v2467
    %v2469 = vpop.xlane.xlu0 %2468
    %v2470 = vsel %vm394, %v2464, 0.0
    %2471 = vadd.xlane.f32.xlu0 %v2470
    %v2472 = vpop.xlane.xlu0 %2471
    %v2473 = vsel %vm401, %v2466, 0.0
    %2474 = vadd.xlane.f32.xlu0 %v2473
    %v2475 = vpop.xlane.xlu0 %2474
    %v2476 = vrcp.pop %v2469
    %v2477 = vrcp.pop %v2472
    %v2478 = vrcp.pop %v2475
    %v2479 = vmul.f32 %v2462, %v2476
    %v2480 = vmul.f32 %v2464, %v2477
    %v2481 = vmul.f32 %v2466, %v2478
    %2482 = vrot.lane.b32.xlu0 %v1861, 96
    %v2483 = vpop.permute.xlu0 %2482
    %2484 = vrot.lane.b32.xlu0 %v1867, 96
    %v2485 = vpop.permute.xlu0 %2484
    %2486 = vrot.lane.b32.xlu0 %v1873, 96
    %v2487 = vpop.permute.xlu0 %2486
    %v2491 = vsel %vm394, %v2479, 0
    %v2494 = vsel %vm394, %v2480, 0
    %v2497 = vsel %vm394, %v2481, 0
    %v2499 = vsel %vm81, %v2487, 0
    %2501 = vmatprep.subr.mxu0 0.0
    %2502 = vmatpush1.msra.mxu0 %v2483
    %2503 = vmatprep.subr.mxu0 0.0
    %2504 = vmatpush1.msra.mxu0 %v2485
    %2505 = vmatprep.subr.mxu0 0.0
    %2506 = vmatpush1.msra.mxu0 %v2499
    %2507 = vmatprep.subr.mxu0 0.0
    %2508 = vmatpush1.msra.mxu0 0.0
    %2509 = vmatprep.subr.mxu0 0.0
    %2510 = vmatpush1.msra.mxu0 0.0
    %2511 = vmatprep.subr.mxu0 0.0
    %2512 = vmatpush1.msra.mxu0 0.0
    %2513 = vmatprep.subr.mxu0 0.0
    %2514 = vmatpush1.msra.mxu0 0.0
    %2515 = vmatprep.subr.mxu0 0.0
    %2516 = vmatpush1.msra.mxu0 0.0
    %2517 = vmatprep.subr.mxu0 0.0
    %2518 = vmatpush1.msra.mxu0 0.0
    %2519 = vmatprep.subr.mxu0 0.0
    %2520 = vmatpush1.msra.mxu0 0.0
    %2521 = vmatprep.subr.mxu0 0.0
    %2522 = vmatpush1.msra.mxu0 0.0
    %2523 = vmatprep.subr.mxu0 0.0
    %2524 = vmatpush1.msra.mxu0 0.0
    %2525 = vmatprep.subr.mxu0 0.0
    %2526 = vmatpush1.msra.mxu0 0.0
    %2527 = vmatprep.subr.mxu0 0.0
    %2528 = vmatpush1.msra.mxu0 0.0
    %2529 = vmatprep.subr.mxu0 0.0
    %2530 = vmatpush1.msra.mxu0 0.0
    %2531 = vmatprep.subr.mxu0 0.0
    %2532 = vmatpush1.msra.mxu0 0.0
    %2533 = vmatprep.subr.mxu0 0.0
    %2534 = vmatpush1.msra.mxu0 0.0
    %2535 = vmatprep.subr.mxu0 0.0
    %2536 = vmatpush1.msra.mxu0 0.0
    %2537 = vmatprep.subr.mxu0 0.0
    %2538 = vmatpush1.msra.mxu0 0.0
    %2539 = vmatprep.subr.mxu0 0.0
    %2540 = vmatpush1.msra.mxu0 0.0
    %2541 = vmatprep.subr.mxu0 0.0
    %2542 = vmatpush1.msra.mxu0 0.0
    %2543 = vmatprep.subr.mxu0 0.0
    %2544 = vmatpush1.msra.mxu0 0.0
    %2545 = vmatprep.subr.mxu0 0.0
    %2546 = vmatpush1.msra.mxu0 0.0
    %2547 = vmatprep.subr.mxu0 0.0
    %2548 = vmatpush1.msra.mxu0 0.0
    %2549 = vmatprep.subr.mxu0 0.0
    %2550 = vmatpush1.msra.mxu0 0.0
    %2551 = vmatprep.subr.mxu0 0.0
    %2552 = vmatpush1.msra.mxu0 0.0
    %2553 = vmatprep.subr.mxu0 0.0
    %2554 = vmatpush1.msra.mxu0 0.0
    %2555 = vmatprep.subr.mxu0 0.0
    %2556 = vmatpush1.msra.mxu0 0.0
    %2557 = vmatprep.subr.mxu0 0.0
    %2558 = vmatpush1.msra.mxu0 0.0
    %2559 = vmatprep.subr.mxu0 0.0
    %2560 = vmatpush1.msra.mxu0 0.0
    %2561 = vmatprep.subr.mxu0 0.0
    %2562 = vmatpush1.msra.mxu0 0.0
    %2563 = vmatprep.subr.mxu0 0.0
    %2564 = vmatpush1.msra.mxu0 0.0
    %2565 = vmatprep.mubr.f32.mxu0 0.0
    %2566 = vmatmul.mubr.f32.gmra.mrb[0].mxu0 %v2491
    %v2567 = vpop.f32.mrb[0].mxu0
    %v2568 = vadd.f32 0.0, %v2567
    %v2569 = vpop.f32.mrb[0].mxu0
    %2570 = vmatprep.mubr.f32.mxu0 0.0
    %2571 = vmatmul.mubr.f32.gmra.mrb[0].mxu0 %v2494
    %v2572 = vpop.f32.mrb[0].mxu0
    %v2573 = vadd.f32 0.0, %v2572
    %v2574 = vpop.f32.mrb[0].mxu0
    %2575 = vmatprep.mubr.f32.mxu0 0.0
    %2576 = vmatmul.mubr.f32.gmra.mrb[0].mxu0 %v2497
    %v2577 = vpop.f32.mrb[0].mxu0
    %v2578 = vadd.f32 0.0, %v2577
    %v2579 = vpop.f32.mrb[0].mxu0
    %2580 = vdwg.mxu0
    %2581 = vrot.lane.b32.xlu0 %v1875, 80
    %v2582 = vpop.permute.xlu0 %2581
    %2583 = vrot.lane.b32.xlu0 %v1876, 80
    %v2584 = vpop.permute.xlu0 %2583
    %2585 = vrot.lane.b32.xlu0 %v1877, 80
    %v2586 = vpop.permute.xlu0 %2585
    %2587 = vrot.lane.b32.xlu0 %v1859, 16
    %v2588 = vpop.permute.xlu0 %2587
    %2589 = vrot.lane.b32.xlu0 %v1865, 16
    %v2590 = vpop.permute.xlu0 %2589
    %2591 = vrot.lane.b32.xlu0 %v1871, 16
    %v2592 = vpop.permute.xlu0 %2591
    %v2593 = vsel %vm298, %v2582, 0
    %v2595 = vsel %vm298, %v2584, 0
    %v2597 = vsel %vm298, %v2586, 0
    %v2599 = vsel %vm298, %v2588, 0
    %v2601 = vsel %vm298, %v2590, 0
    %v2603 = vsel %vm298, %v2592, 0
    %2605 = vmatprep.subr.mxu0 0.0
    %2606 = vmatpush1.xpose.msra.mxu0 %v2599
    %2607 = vmatprep.subr.mxu0 0.0
    %2608 = vmatpush1.xpose.msra.mxu0 %v2601
    %2609 = vmatprep.subr.mxu0 0.0
    %2610 = vmatpush1.xpose.msra.mxu0 %v2603
    %2611 = vmatprep.subr.mxu0 0.0
    %2612 = vmatpush1.xpose.msra.mxu0 0.0
    %2613 = vmatprep.subr.mxu0 0.0
    %2614 = vmatpush1.xpose.msra.mxu0 0.0
    %2615 = vmatprep.subr.mxu0 0.0
    %2616 = vmatpush1.xpose.msra.mxu0 0.0
    %2617 = vmatprep.subr.mxu0 0.0
    %2618 = vmatpush1.xpose.msra.mxu0 0.0
    %2619 = vmatprep.subr.mxu0 0.0
    %2620 = vmatpush1.xpose.msra.mxu0 0.0
    %2621 = vmatprep.subr.mxu0 0.0
    %2622 = vmatpush1.xpose.msra.mxu0 0.0
    %2623 = vmatprep.subr.mxu0 0.0
    %2624 = vmatpush1.xpose.msra.mxu0 0.0
    %2625 = vmatprep.subr.mxu0 0.0
    %2626 = vmatpush1.xpose.msra.mxu0 0.0
    %2627 = vmatprep.subr.mxu0 0.0
    %2628 = vmatpush1.xpose.msra.mxu0 0.0
    %2629 = vmatprep.subr.mxu0 0.0
    %2630 = vmatpush1.xpose.msra.mxu0 0.0
    %2631 = vmatprep.subr.mxu0 0.0
    %2632 = vmatpush1.xpose.msra.mxu0 0.0
    %2633 = vmatprep.subr.mxu0 0.0
    %2634 = vmatpush1.xpose.msra.mxu0 0.0
    %2635 = vmatprep.subr.mxu0 0.0
    %2636 = vmatpush1.xpose.msra.mxu0 0.0
    %2637 = vmatprep.subr.mxu0 0.0
    %2638 = vmatpush1.xpose.msra.mxu0 0.0
    %2639 = vmatprep.subr.mxu0 0.0
    %2640 = vmatpush1.xpose.msra.mxu0 0.0
    %2641 = vmatprep.subr.mxu0 0.0
    %2642 = vmatpush1.xpose.msra.mxu0 0.0
    %2643 = vmatprep.subr.mxu0 0.0
    %2644 = vmatpush1.xpose.msra.mxu0 0.0
    %2645 = vmatprep.subr.mxu0 0.0
    %2646 = vmatpush1.xpose.msra.mxu0 0.0
    %2647 = vmatprep.subr.mxu0 0.0
    %2648 = vmatpush1.xpose.msra.mxu0 0.0
    %2649 = vmatprep.subr.mxu0 0.0
    %2650 = vmatpush1.xpose.msra.mxu0 0.0
    %2651 = vmatprep.subr.mxu0 0.0
    %2652 = vmatpush1.xpose.msra.mxu0 0.0
    %2653 = vmatprep.subr.mxu0 0.0
    %2654 = vmatpush1.xpose.msra.mxu0 0.0
    %2655 = vmatprep.subr.mxu0 0.0
    %2656 = vmatpush1.xpose.msra.mxu0 0.0
    %2657 = vmatprep.subr.mxu0 0.0
    %2658 = vmatpush1.xpose.msra.mxu0 0.0
    %2659 = vmatprep.subr.mxu0 0.0
    %2660 = vmatpush1.xpose.msra.mxu0 0.0
    %2661 = vmatprep.subr.mxu0 0.0
    %2662 = vmatpush1.xpose.msra.mxu0 0.0
    %2663 = vmatprep.subr.mxu0 0.0
    %2664 = vmatpush1.xpose.msra.mxu0 0.0
    %2665 = vmatprep.subr.mxu0 0.0
    %2666 = vmatpush1.xpose.msra.mxu0 0.0
    %2667 = vmatprep.subr.mxu0 0.0
    %2668 = vmatpush1.xpose.msra.mxu0 0.0
    %2669 = vmatprep.mubr.f32.mxu0 0.0
    %2670 = vmatmul.mubr.f32.gmra.mrb[0].mxu0 %v2593
    %v2671 = vpop.f32.mrb[0].mxu0
    %v2672 = vadd.f32 %v60, %v2671
    %v2673 = vpop.f32.mrb[0].mxu0
    %2674 = vmatprep.mubr.f32.mxu0 0.0
    %2675 = vmatmul.mubr.f32.gmra.mrb[0].mxu0 %v2595
    %v2676 = vpop.f32.mrb[0].mxu0
    %v2677 = vadd.f32 %v61, %v2676
    %v2678 = vpop.f32.mrb[0].mxu0
    %2679 = vmatprep.mubr.f32.mxu0 0.0
    %2680 = vmatmul.mubr.f32.gmra.mrb[0].mxu0 %v2597
    %v2681 = vpop.f32.mrb[0].mxu0
    %v2682 = vadd.f32 %v62, %v2681
    %v2683 = vpop.f32.mrb[0].mxu0
    %2684 = vdwg.mxu0
    %v2685 = vsel %vm394, %v2672, -inf
    %2686 = vmax.xlane.f32.xlu0 %v2685
    %v2687 = vpop.xlane.xlu0 %2686
    %v2688 = vsel %vm394, %v2677, -inf
    %2689 = vmax.xlane.f32.xlu0 %v2688
    %v2690 = vpop.xlane.xlu0 %2689
    %v2691 = vsel %vm401, %v2682, -inf
    %2692 = vmax.xlane.f32.xlu0 %v2691
    %v2693 = vpop.xlane.xlu0 %2692
    %v2694 = vsub.f32 %v2672, %v2687
    %v2695 = vsub.f32 %v2677, %v2690
    %v2696 = vsub.f32 %v2682, %v2693
    %v2697 = vmul.f32 %v2694, 1.442695
    %v2698 = vpow.pop %v2697
    %v2699 = vmul.f32 %v2695, 1.442695
    %v2700 = vpow.pop %v2699
    %v2701 = vmul.f32 %v2696, 1.442695
    %v2702 = vpow.pop %v2701
    %v2703 = vsel %vm394, %v2698, 0.0
    %2704 = vadd.xlane.f32.xlu0 %v2703
    %v2705 = vpop.xlane.xlu0 %2704
    %v2706 = vsel %vm394, %v2700, 0.0
    %2707 = vadd.xlane.f32.xlu0 %v2706
    %v2708 = vpop.xlane.xlu0 %2707
    %v2709 = vsel %vm401, %v2702, 0.0
    %2710 = vadd.xlane.f32.xlu0 %v2709
    %v2711 = vpop.xlane.xlu0 %2710
    %v2712 = vrcp.pop %v2705
    %v2713 = vrcp.pop %v2708
    %v2714 = vrcp.pop %v2711
    %v2715 = vmul.f32 %v2698, %v2712
    %v2716 = vmul.f32 %v2700, %v2713
    %v2717 = vmul.f32 %v2702, %v2714
    %2718 = vrot.lane.b32.xlu0 %v1861, 80
    %v2719 = vpop.permute.xlu0 %2718
    %2720 = vrot.lane.b32.xlu0 %v1867, 80
    %v2721 = vpop.permute.xlu0 %2720
    %2722 = vrot.lane.b32.xlu0 %v1873, 80
    %v2723 = vpop.permute.xlu0 %2722
    %v2727 = vsel %vm394, %v2715, 0
    %v2730 = vsel %vm394, %v2716, 0
    %v2733 = vsel %vm394, %v2717, 0
    %v2735 = vsel %vm81, %v2723, 0
    %2737 = vmatprep.subr.mxu0 0.0
    %2738 = vmatpush1.msra.mxu0 %v2719
    %2739 = vmatprep.subr.mxu0 0.0
    %2740 = vmatpush1.msra.mxu0 %v2721
    %2741 = vmatprep.subr.mxu0 0.0
    %2742 = vmatpush1.msra.mxu0 %v2735
    %2743 = vmatprep.subr.mxu0 0.0
    %2744 = vmatpush1.msra.mxu0 0.0
    %2745 = vmatprep.subr.mxu0 0.0
    %2746 = vmatpush1.msra.mxu0 0.0
    %2747 = vmatprep.subr.mxu0 0.0
    %2748 = vmatpush1.msra.mxu0 0.0
    %2749 = vmatprep.subr.mxu0 0.0
    %2750 = vmatpush1.msra.mxu0 0.0
    %2751 = vmatprep.subr.mxu0 0.0
    %2752 = vmatpush1.msra.mxu0 0.0
    %2753 = vmatprep.subr.mxu0 0.0
    %2754 = vmatpush1.msra.mxu0 0.0
    %2755 = vmatprep.subr.mxu0 0.0
    %2756 = vmatpush1.msra.mxu0 0.0
    %2757 = vmatprep.subr.mxu0 0.0
    %2758 = vmatpush1.msra.mxu0 0.0
    %2759 = vmatprep.subr.mxu0 0.0
    %2760 = vmatpush1.msra.mxu0 0.0
    %2761 = vmatprep.subr.mxu0 0.0
    %2762 = vmatpush1.msra.mxu0 0.0
    %2763 = vmatprep.subr.mxu0 0.0
    %2764 = vmatpush1.msra.mxu0 0.0
    %2765 = vmatprep.subr.mxu0 0.0
    %2766 = vmatpush1.msra.mxu0 0.0
    %2767 = vmatprep.subr.mxu0 0.0
    %2768 = vmatpush1.msra.mxu0 0.0
    %2769 = vmatprep.subr.mxu0 0.0
    %2770 = vmatpush1.msra.mxu0 0.0
    %2771 = vmatprep.subr.mxu0 0.0
    %2772 = vmatpush1.msra.mxu0 0.0
    %2773 = vmatprep.subr.mxu0 0.0
    %2774 = vmatpush1.msra.mxu0 0.0
    %2775 = vmatprep.subr.mxu0 0.0
    %2776 = vmatpush1.msra.mxu0 0.0
    %2777 = vmatprep.subr.mxu0 0.0
    %2778 = vmatpush1.msra.mxu0 0.0
    %2779 = vmatprep.subr.mxu0 0.0
    %2780 = vmatpush1.msra.mxu0 0.0
    %2781 = vmatprep.subr.mxu0 0.0
    %2782 = vmatpush1.msra.mxu0 0.0
    %2783 = vmatprep.subr.mxu0 0.0
    %2784 = vmatpush1.msra.mxu0 0.0
    %2785 = vmatprep.subr.mxu0 0.0
    %2786 = vmatpush1.msra.mxu0 0.0
    %2787 = vmatprep.subr.mxu0 0.0
    %2788 = vmatpush1.msra.mxu0 0.0
    %2789 = vmatprep.subr.mxu0 0.0
    %2790 = vmatpush1.msra.mxu0 0.0
    %2791 = vmatprep.subr.mxu0 0.0
    %2792 = vmatpush1.msra.mxu0 0.0
    %2793 = vmatprep.subr.mxu0 0.0
    %2794 = vmatpush1.msra.mxu0 0.0
    %2795 = vmatprep.subr.mxu0 0.0
    %2796 = vmatpush1.msra.mxu0 0.0
    %2797 = vmatprep.subr.mxu0 0.0
    %2798 = vmatpush1.msra.mxu0 0.0
    %2799 = vmatprep.subr.mxu0 0.0
    %2800 = vmatpush1.msra.mxu0 0.0
    %2801 = vmatprep.mubr.f32.mxu0 0.0
    %2802 = vmatmul.mubr.f32.gmra.mrb[0].mxu0 %v2727
    %v2803 = vpop.f32.mrb[0].mxu0
    %v2804 = vadd.f32 0.0, %v2803
    %v2805 = vpop.f32.mrb[0].mxu0
    %2806 = vmatprep.mubr.f32.mxu0 0.0
    %2807 = vmatmul.mubr.f32.gmra.mrb[0].mxu0 %v2730
    %v2808 = vpop.f32.mrb[0].mxu0
    %v2809 = vadd.f32 0.0, %v2808
    %v2810 = vpop.f32.mrb[0].mxu0
    %2811 = vmatprep.mubr.f32.mxu0 0.0
    %2812 = vmatmul.mubr.f32.gmra.mrb[0].mxu0 %v2733
    %v2813 = vpop.f32.mrb[0].mxu0
    %v2814 = vadd.f32 0.0, %v2813
    %v2815 = vpop.f32.mrb[0].mxu0
    %2816 = vdwg.mxu0
    %2820 = vrot.lane.b32.xlu0 %v2332, 16
    %v2821 = vpop.permute.xlu0 %2820
    %2822 = vrot.lane.b32.xlu0 %v2337, 16
    %v2823 = vpop.permute.xlu0 %2822
    %2824 = vrot.lane.b32.xlu0 %v2342, 16
    %v2825 = vpop.permute.xlu0 %2824
    %2832 = vrot.lane.b32.xlu0 %v2568, 32
    %v2833 = vpop.permute.xlu0 %2832
    %2834 = vrot.lane.b32.xlu0 %v2573, 32
    %v2835 = vpop.permute.xlu0 %2834
    %2836 = vrot.lane.b32.xlu0 %v2578, 32
    %v2837 = vpop.permute.xlu0 %2836
    %2844 = vrot.lane.b32.xlu0 %v2804, 48
    %v2845 = vpop.permute.xlu0 %2844
    %2846 = vrot.lane.b32.xlu0 %v2809, 48
    %v2847 = vpop.permute.xlu0 %2846
    %2848 = vrot.lane.b32.xlu0 %v2814, 48
    %v2849 = vpop.permute.xlu0 %2848
    %v2853 = vsel %vm298, %v2094, %v2821
    %v2854 = vsel %vm298, %v2099, %v2823
    %v2855 = vsel %vm298, %v2104, %v2825
    %v2856 = vsel %vm1270, %v2853, %v2833
    %v2857 = vsel %vm1270, %v2854, %v2835
    %v2858 = vsel %vm1270, %v2855, %v2837
    %v2859 = vsel %vm1274, %v2856, %v2845
    %v2860 = vsel %vm1274, %v2857, %v2847
    %v2861 = vsel %vm1274, %v2858, %v2849
    %s2862 = scalar_lea.vmem %s7, 64
    %v2863 = vld [vmem:[%s2862] sm:$0xff]
    %v2864 = vld [vmem:[%s2862 + $0x8] sm:$0xff]
    %v2865 = vld [vmem:[%s2862 + $0x10] sm:$0xff]
    %v2866 = vld [vmem:[%s2862 + $0x18] sm:$0xff]
    %v2867 = vld [vmem:[%s2862 + $0x20] sm:$0xff]
    %v2868 = vld [vmem:[%s2862 + $0x28] sm:$0xff]
    %v2869 = vld [vmem:[%s2862 + $0x30] sm:$0xff]
    %v2870 = vld [vmem:[%s2862 + $0x38] sm:$0xff]
    %s2871 = scalar_lea.vmem %s8, 1
    %v2872 = vld [vmem:[%s2871] sm:$0x1]
    %v2874 = vlaneseq
    %v2875 = vshrl.u32 %v2874, 7
    %v2876 = vsub.s32 0, %v2875
    %v2877 = vrot.slane %v2872, %v2876
    %v2880 = vsel %vm193, %v2859, 0
    %v2883 = vsel %vm193, %v2860, 0
    %v2886 = vsel %vm193, %v2861, 0
    %2888 = vmatprep.subr.mxu0 0.0
    %2889 = vmatpush1.msra.mxu0 %v2863
    %2890 = vmatprep.subr.mxu0 0.0
    %2891 = vmatpush1.msra.mxu0 %v2864
    %2892 = vmatprep.subr.mxu0 0.0
    %2893 = vmatpush1.msra.mxu0 %v2865
    %2894 = vmatprep.subr.mxu0 0.0
    %2895 = vmatpush1.msra.mxu0 %v2866
    %2896 = vmatprep.subr.mxu0 0.0
    %2897 = vmatpush1.msra.mxu0 %v2867
    %2898 = vmatprep.subr.mxu0 0.0
    %2899 = vmatpush1.msra.mxu0 %v2868
    %2900 = vmatprep.subr.mxu0 0.0
    %2901 = vmatpush1.msra.mxu0 %v2869
    %2902 = vmatprep.subr.mxu0 0.0
    %2903 = vmatpush1.msra.mxu0 %v2870
    %2904 = vmatprep.subr.mxu0 0.0
    %2905 = vmatpush1.msra.mxu0 0.0
    %2906 = vmatprep.subr.mxu0 0.0
    %2907 = vmatpush1.msra.mxu0 0.0
    %2908 = vmatprep.subr.mxu0 0.0
    %2909 = vmatpush1.msra.mxu0 0.0
    %2910 = vmatprep.subr.mxu0 0.0
    %2911 = vmatpush1.msra.mxu0 0.0
    %2912 = vmatprep.subr.mxu0 0.0
    %2913 = vmatpush1.msra.mxu0 0.0
    %2914 = vmatprep.subr.mxu0 0.0
    %2915 = vmatpush1.msra.mxu0 0.0
    %2916 = vmatprep.subr.mxu0 0.0
    %2917 = vmatpush1.msra.mxu0 0.0
    %2918 = vmatprep.subr.mxu0 0.0
    %2919 = vmatpush1.msra.mxu0 0.0
    %2920 = vmatprep.subr.mxu0 0.0
    %2921 = vmatpush1.msra.mxu0 0.0
    %2922 = vmatprep.subr.mxu0 0.0
    %2923 = vmatpush1.msra.mxu0 0.0
    %2924 = vmatprep.subr.mxu0 0.0
    %2925 = vmatpush1.msra.mxu0 0.0
    %2926 = vmatprep.subr.mxu0 0.0
    %2927 = vmatpush1.msra.mxu0 0.0
    %2928 = vmatprep.subr.mxu0 0.0
    %2929 = vmatpush1.msra.mxu0 0.0
    %2930 = vmatprep.subr.mxu0 0.0
    %2931 = vmatpush1.msra.mxu0 0.0
    %2932 = vmatprep.subr.mxu0 0.0
    %2933 = vmatpush1.msra.mxu0 0.0
    %2934 = vmatprep.subr.mxu0 0.0
    %2935 = vmatpush1.msra.mxu0 0.0
    %2936 = vmatprep.subr.mxu0 0.0
    %2937 = vmatpush1.msra.mxu0 0.0
    %2938 = vmatprep.subr.mxu0 0.0
    %2939 = vmatpush1.msra.mxu0 0.0
    %2940 = vmatprep.subr.mxu0 0.0
    %2941 = vmatpush1.msra.mxu0 0.0
    %2942 = vmatprep.subr.mxu0 0.0
    %2943 = vmatpush1.msra.mxu0 0.0
    %2944 = vmatprep.subr.mxu0 0.0
    %2945 = vmatpush1.msra.mxu0 0.0
    %2946 = vmatprep.subr.mxu0 0.0
    %2947 = vmatpush1.msra.mxu0 0.0
    %2948 = vmatprep.subr.mxu0 0.0
    %2949 = vmatpush1.msra.mxu0 0.0
    %2950 = vmatprep.subr.mxu0 0.0
    %2951 = vmatpush1.msra.mxu0 0.0
    %2952 = vmatprep.mubr.f32.mxu0 0.0
    %2953 = vmatmul.mubr.f32.gmra.mrb[0].mxu0 %v2880
    %v2954 = vpop.f32.mrb[0].mxu0
    %v2955 = vadd.f32 %v2877, %v2954
    %v2956 = vpop.f32.mrb[0].mxu0
    %2957 = vmatprep.mubr.f32.mxu0 0.0
    %2958 = vmatmul.mubr.f32.gmra.mrb[0].mxu0 %v2883
    %v2959 = vpop.f32.mrb[0].mxu0
    %v2960 = vadd.f32 %v2877, %v2959
    %v2961 = vpop.f32.mrb[0].mxu0
    %2962 = vmatprep.mubr.f32.mxu0 0.0
    %2963 = vmatmul.mubr.f32.gmra.mrb[0].mxu0 %v2886
    %v2964 = vpop.f32.mrb[0].mxu0
    %v2965 = vadd.f32 %v2877, %v2964
    %v2966 = vpop.f32.mrb[0].mxu0
    %2967 = vdwg.mxu0
    %v2968 = vadd.f32 %v1750, %v2955
    %v2969 = vadd.f32 %v1751, %v2960
    %v2970 = vadd.f32 %v1752, %v2965
    %s2971 = scalar_lea.vmem %s9, 1
    %v2972 = vld [vmem:[%s2971] sm:$0x1]
    %s2973 = scalar_lea.vmem %s10, 1
    %v2974 = vld [vmem:[%s2973] sm:$0x1]
    %v2975 = vsel %vm193, %v2968, 0.0
    %2976 = vadd.xlane.f32.xlu0 %v2975
    %v2977 = vpop.xlane.xlu0 %2976
    %v2978 = vsel %vm193, %v2969, 0.0
    %2979 = vadd.xlane.f32.xlu0 %v2978
    %v2980 = vpop.xlane.xlu0 %2979
    %v2981 = vsel %vm1393, %v2970, 0.0
    %2982 = vadd.xlane.f32.xlu0 %v2981
    %v2983 = vpop.xlane.xlu0 %2982
    %v2984 = vmul.f32 %v2977, %v1397
    %v2985 = vmul.f32 %v2980, %v1397
    %v2986 = vmul.f32 %v2983, %v1397
    %v2987 = vsub.f32 %v2968, %v2984
    %v2988 = vsub.f32 %v2969, %v2985
    %v2989 = vsub.f32 %v2970, %v2986
    %v2990 = vmul.f32 %v2987, %v2987
    %v2991 = vmul.f32 %v2988, %v2988
    %v2992 = vmul.f32 %v2989, %v2989
    %v2993 = vsel %vm193, %v2990, 0.0
    %2994 = vadd.xlane.f32.xlu0 %v2993
    %v2995 = vpop.xlane.xlu0 %2994
    %v2996 = vsel %vm193, %v2991, 0.0
    %2997 = vadd.xlane.f32.xlu0 %v2996
    %v2998 = vpop.xlane.xlu0 %2997
    %v2999 = vsel %vm1393, %v2992, 0.0
    %3000 = vadd.xlane.f32.xlu0 %v2999
    %v3001 = vpop.xlane.xlu0 %3000
    %v3002 = vmul.f32 %v2995, %v1397
    %v3003 = vmul.f32 %v2998, %v1397
    %v3004 = vmul.f32 %v3001, %v1397
    %v3005 = vadd.f32 %v3002, 1e-05
    %v3006 = vadd.f32 %v3003, 1e-05
    %v3007 = vadd.f32 %v3004, 1e-05
    %v3008 = vrsqrt.pop %v3005
    %v3009 = vrsqrt.pop %v3006
    %v3010 = vrsqrt.pop %v3007
    %v3011 = vmul.f32 %v2987, %v3008
    %v3012 = vmul.f32 %v2988, %v3009
    %v3013 = vmul.f32 %v2989, %v3010
    %v3015 = vlaneseq
    %v3016 = vshrl.u32 %v3015, 7
    %v3017 = vsub.s32 0, %v3016
    %v3018 = vrot.slane %v2972, %v3017
    %v3020 = vmul.f32 %v3011, %v3018
    %v3021 = vmul.f32 %v3012, %v3018
    %v3022 = vmul.f32 %v3013, %v3018
    %v3024 = vlaneseq
    %v3025 = vshrl.u32 %v3024, 7
    %v3026 = vsub.s32 0, %v3025
    %v3027 = vrot.slane %v2974, %v3026
    %v3029 = vadd.f32 %v3020, %v3027
    %v3030 = vadd.f32 %v3021, %v3027
    %v3031 = vadd.f32 %v3022, %v3027
    %s3032 = scalar_lea.vmem %s13, 128
    %v3033 = vld [vmem:[%s3032] sm:$0xff]
    %v3034 = vld [vmem:[%s3032 + $0x8] sm:$0xff]
    %v3035 = vld [vmem:[%s3032 + $0x10] sm:$0xff]
    %v3036 = vld [vmem:[%s3032 + $0x18] sm:$0xff]
    %v3037 = vld [vmem:[%s3032 + $0x20] sm:$0xff]
    %v3038 = vld [vmem:[%s3032 + $0x28] sm:$0xff]
    %v3039 = vld [vmem:[%s3032 + $0x30] sm:$0xff]
    %v3040 = vld [vmem:[%s3032 + $0x38] sm:$0xff]
    %v3041 = vld [vmem:[%s3032 + $0x40] sm:$0xff]
    %v3042 = vld [vmem:[%s3032 + $0x48] sm:$0xff]
    %v3043 = vld [vmem:[%s3032 + $0x50] sm:$0xff]
    %v3044 = vld [vmem:[%s3032 + $0x58] sm:$0xff]
    %v3045 = vld [vmem:[%s3032 + $0x60] sm:$0xff]
    %v3046 = vld [vmem:[%s3032 + $0x68] sm:$0xff]
    %v3047 = vld [vmem:[%s3032 + $0x70] sm:$0xff]
    %v3048 = vld [vmem:[%s3032 + $0x78] sm:$0xff]
    %s3049 = scalar_lea.vmem %s14, 2
    %v3050 = vld [vmem:[%s3049] sm:$0x3]
    %v3052 = vlaneseq
    %v3053 = vshrl.u32 %v3052, 7
    %v3054 = vsub.s32 0, %v3053
    %v3055 = vrot.slane %v3050, %v3054
    %v3056 = vlaneseq
    %v3057 = vshrl.u32 %v3056, 7
    %v3058 = vsub.s32 1, %v3057
    %v3059 = vrot.slane %v3050, %v3058
    %v3063 = vsel %vm193, %v3029, 0
    %v3066 = vsel %vm193, %v3030, 0
    %v3069 = vsel %vm193, %v3031, 0
    %3071 = vmatprep.subr.mxu0 %v3034
    %3072 = vmatpush1.msra.mxu0 %v3033
    %3073 = vmatprep.subr.mxu0 %v3036
    %3074 = vmatpush1.msra.mxu0 %v3035
    %3075 = vmatprep.subr.mxu0 %v3038
    %3076 = vmatpush1.msra.mxu0 %v3037
    %3077 = vmatprep.subr.mxu0 %v3040
    %3078 = vmatpush1.msra.mxu0 %v3039
    %3079 = vmatprep.subr.mxu0 %v3042
    %3080 = vmatpush1.msra.mxu0 %v3041
    %3081 = vmatprep.subr.mxu0 %v3044
    %3082 = vmatpush1.msra.mxu0 %v3043
    %3083 = vmatprep.subr.mxu0 %v3046
    %3084 = vmatpush1.msra.mxu0 %v3045
    %3085 = vmatprep.subr.mxu0 %v3048
    %3086 = vmatpush1.msra.mxu0 %v3047
    %3087 = vmatprep.subr.mxu0 0.0
    %3088 = vmatpush1.msra.mxu0 0.0
    %3089 = vmatprep.subr.mxu0 0.0
    %3090 = vmatpush1.msra.mxu0 0.0
    %3091 = vmatprep.subr.mxu0 0.0
    %3092 = vmatpush1.msra.mxu0 0.0
    %3093 = vmatprep.subr.mxu0 0.0
    %3094 = vmatpush1.msra.mxu0 0.0
    %3095 = vmatprep.subr.mxu0 0.0
    %3096 = vmatpush1.msra.mxu0 0.0
    %3097 = vmatprep.subr.mxu0 0.0
    %3098 = vmatpush1.msra.mxu0 0.0
    %3099 = vmatprep.subr.mxu0 0.0
    %3100 = vmatpush1.msra.mxu0 0.0
    %3101 = vmatprep.subr.mxu0 0.0
    %3102 = vmatpush1.msra.mxu0 0.0
    %3103 = vmatprep.subr.mxu0 0.0
    %3104 = vmatpush1.msra.mxu0 0.0
    %3105 = vmatprep.subr.mxu0 0.0
    %3106 = vmatpush1.msra.mxu0 0.0
    %3107 = vmatprep.subr.mxu0 0.0
    %3108 = vmatpush1.msra.mxu0 0.0
    %3109 = vmatprep.subr.mxu0 0.0
    %3110 = vmatpush1.msra.mxu0 0.0
    %3111 = vmatprep.subr.mxu0 0.0
    %3112 = vmatpush1.msra.mxu0 0.0
    %3113 = vmatprep.subr.mxu0 0.0
    %3114 = vmatpush1.msra.mxu0 0.0
    %3115 = vmatprep.subr.mxu0 0.0
    %3116 = vmatpush1.msra.mxu0 0.0
    %3117 = vmatprep.subr.mxu0 0.0
    %3118 = vmatpush1.msra.mxu0 0.0
    %3119 = vmatprep.subr.mxu0 0.0
    %3120 = vmatpush1.msra.mxu0 0.0
    %3121 = vmatprep.subr.mxu0 0.0
    %3122 = vmatpush1.msra.mxu0 0.0
    %3123 = vmatprep.subr.mxu0 0.0
    %3124 = vmatpush1.msra.mxu0 0.0
    %3125 = vmatprep.subr.mxu0 0.0
    %3126 = vmatpush1.msra.mxu0 0.0
    %3127 = vmatprep.subr.mxu0 0.0
    %3128 = vmatpush1.msra.mxu0 0.0
    %3129 = vmatprep.subr.mxu0 0.0
    %3130 = vmatpush1.msra.mxu0 0.0
    %3131 = vmatprep.subr.mxu0 0.0
    %3132 = vmatpush1.msra.mxu0 0.0
    %3133 = vmatprep.subr.mxu0 0.0
    %3134 = vmatpush1.msra.mxu0 0.0
    %3135 = vmatprep.mubr.f32.mxu0 0.0
    %3136 = vmatmul.mubr.f32.gmra.mrb[0].mxu0 %v3063
    %v3137 = vpop.f32.mrb[0].mxu0
    %v3138 = vadd.f32 %v3055, %v3137
    %v3139 = vpop.f32.mrb[0].mxu0
    %v3140 = vadd.f32 %v3059, %v3139
    %3141 = vmatprep.mubr.f32.mxu0 0.0
    %3142 = vmatmul.mubr.f32.gmra.mrb[0].mxu0 %v3066
    %v3143 = vpop.f32.mrb[0].mxu0
    %v3144 = vadd.f32 %v3055, %v3143
    %v3145 = vpop.f32.mrb[0].mxu0
    %v3146 = vadd.f32 %v3059, %v3145
    %3147 = vmatprep.mubr.f32.mxu0 0.0
    %3148 = vmatmul.mubr.f32.gmra.mrb[0].mxu0 %v3069
    %v3149 = vpop.f32.mrb[0].mxu0
    %v3150 = vadd.f32 %v3055, %v3149
    %v3151 = vpop.f32.mrb[0].mxu0
    %v3152 = vadd.f32 %v3059, %v3151
    %3153 = vdwg.mxu0
    %v3154 = vmax.f32 %v3138, 0.0
    %v3155 = vmax.f32 %v3140, 0.0
    %v3156 = vmax.f32 %v3144, 0.0
    %v3157 = vmax.f32 %v3146, 0.0
    %v3158 = vmax.f32 %v3150, 0.0
    %v3159 = vmax.f32 %v3152, 0.0
    %s3160 = scalar_lea.vmem %s15, 256
    %v3161 = vld [vmem:[%s3160] sm:$0xff]
    %v3162 = vld [vmem:[%s3160 + $0x8] sm:$0xff]
    %v3163 = vld [vmem:[%s3160 + $0x10] sm:$0xff]
    %v3164 = vld [vmem:[%s3160 + $0x18] sm:$0xff]
    %v3165 = vld [vmem:[%s3160 + $0x20] sm:$0xff]
    %v3166 = vld [vmem:[%s3160 + $0x28] sm:$0xff]
    %v3167 = vld [vmem:[%s3160 + $0x30] sm:$0xff]
    %v3168 = vld [vmem:[%s3160 + $0x38] sm:$0xff]
    %v3169 = vld [vmem:[%s3160 + $0x40] sm:$0xff]
    %v3170 = vld [vmem:[%s3160 + $0x48] sm:$0xff]
    %v3171 = vld [vmem:[%s3160 + $0x50] sm:$0xff]
    %v3172 = vld [vmem:[%s3160 + $0x58] sm:$0xff]
    %v3173 = vld [vmem:[%s3160 + $0x60] sm:$0xff]
    %v3174 = vld [vmem:[%s3160 + $0x68] sm:$0xff]
    %v3175 = vld [vmem:[%s3160 + $0x70] sm:$0xff]
    %v3176 = vld [vmem:[%s3160 + $0x78] sm:$0xff]
    %v3177 = vld [vmem:[%s3160 + $0x80] sm:$0xff]
    %v3178 = vld [vmem:[%s3160 + $0x88] sm:$0xff]
    %v3179 = vld [vmem:[%s3160 + $0x90] sm:$0xff]
    %v3180 = vld [vmem:[%s3160 + $0x98] sm:$0xff]
    %v3181 = vld [vmem:[%s3160 + $0xa0] sm:$0xff]
    %v3182 = vld [vmem:[%s3160 + $0xa8] sm:$0xff]
    %v3183 = vld [vmem:[%s3160 + $0xb0] sm:$0xff]
    %v3184 = vld [vmem:[%s3160 + $0xb8] sm:$0xff]
    %v3185 = vld [vmem:[%s3160 + $0xc0] sm:$0xff]
    %v3186 = vld [vmem:[%s3160 + $0xc8] sm:$0xff]
    %v3187 = vld [vmem:[%s3160 + $0xd0] sm:$0xff]
    %v3188 = vld [vmem:[%s3160 + $0xd8] sm:$0xff]
    %v3189 = vld [vmem:[%s3160 + $0xe0] sm:$0xff]
    %v3190 = vld [vmem:[%s3160 + $0xe8] sm:$0xff]
    %v3191 = vld [vmem:[%s3160 + $0xf0] sm:$0xff]
    %v3192 = vld [vmem:[%s3160 + $0xf8] sm:$0xff]
    %s3193 = scalar_lea.vmem %s16, 1
    %v3194 = vld [vmem:[%s3193] sm:$0x1]
    %v3196 = vlaneseq
    %v3197 = vshrl.u32 %v3196, 7
    %v3198 = vsub.s32 0, %v3197
    %v3199 = vrot.slane %v3194, %v3198
    %3201 = vmatprep.subr.mxu0 0.0
    %3202 = vmatpush1.msra.mxu0 %v3161
    %3203 = vmatprep.subr.mxu0 0.0
    %3204 = vmatpush1.msra.mxu0 %v3162
    %3205 = vmatprep.subr.mxu0 0.0
    %3206 = vmatpush1.msra.mxu0 %v3163
    %3207 = vmatprep.subr.mxu0 0.0
    %3208 = vmatpush1.msra.mxu0 %v3164
    %3209 = vmatprep.subr.mxu0 0.0
    %3210 = vmatpush1.msra.mxu0 %v3165
    %3211 = vmatprep.subr.mxu0 0.0
    %3212 = vmatpush1.msra.mxu0 %v3166
    %3213 = vmatprep.subr.mxu0 0.0
    %3214 = vmatpush1.msra.mxu0 %v3167
    %3215 = vmatprep.subr.mxu0 0.0
    %3216 = vmatpush1.msra.mxu0 %v3168
    %3217 = vmatprep.subr.mxu0 0.0
    %3218 = vmatpush1.msra.mxu0 %v3169
    %3219 = vmatprep.subr.mxu0 0.0
    %3220 = vmatpush1.msra.mxu0 %v3170
    %3221 = vmatprep.subr.mxu0 0.0
    %3222 = vmatpush1.msra.mxu0 %v3171
    %3223 = vmatprep.subr.mxu0 0.0
    %3224 = vmatpush1.msra.mxu0 %v3172
    %3225 = vmatprep.subr.mxu0 0.0
    %3226 = vmatpush1.msra.mxu0 %v3173
    %3227 = vmatprep.subr.mxu0 0.0
    %3228 = vmatpush1.msra.mxu0 %v3174
    %3229 = vmatprep.subr.mxu0 0.0
    %3230 = vmatpush1.msra.mxu0 %v3175
    %3231 = vmatprep.subr.mxu0 0.0
    %3232 = vmatpush1.msra.mxu0 %v3176
    %3233 = vmatprep.subr.mxu0 0.0
    %3234 = vmatpush1.msra.mxu0 %v3177
    %3235 = vmatprep.subr.mxu0 0.0
    %3236 = vmatpush1.msra.mxu0 %v3178
    %3237 = vmatprep.subr.mxu0 0.0
    %3238 = vmatpush1.msra.mxu0 %v3179
    %3239 = vmatprep.subr.mxu0 0.0
    %3240 = vmatpush1.msra.mxu0 %v3180
    %3241 = vmatprep.subr.mxu0 0.0
    %3242 = vmatpush1.msra.mxu0 %v3181
    %3243 = vmatprep.subr.mxu0 0.0
    %3244 = vmatpush1.msra.mxu0 %v3182
    %3245 = vmatprep.subr.mxu0 0.0
    %3246 = vmatpush1.msra.mxu0 %v3183
    %3247 = vmatprep.subr.mxu0 0.0
    %3248 = vmatpush1.msra.mxu0 %v3184
    %3249 = vmatprep.subr.mxu0 0.0
    %3250 = vmatpush1.msra.mxu0 %v3185
    %3251 = vmatprep.subr.mxu0 0.0
    %3252 = vmatpush1.msra.mxu0 %v3186
    %3253 = vmatprep.subr.mxu0 0.0
    %3254 = vmatpush1.msra.mxu0 %v3187
    %3255 = vmatprep.subr.mxu0 0.0
    %3256 = vmatpush1.msra.mxu0 %v3188
    %3257 = vmatprep.subr.mxu0 0.0
    %3258 = vmatpush1.msra.mxu0 %v3189
    %3259 = vmatprep.subr.mxu0 0.0
    %3260 = vmatpush1.msra.mxu0 %v3190
    %3261 = vmatprep.subr.mxu0 0.0
    %3262 = vmatpush1.msra.mxu0 %v3191
    %3263 = vmatprep.subr.mxu0 0.0
    %3264 = vmatpush1.msra.mxu0 %v3192
    %3265 = vmatprep.mubr.f32.mxu0 %v3155
    %3266 = vmatmul.mubr.f32.gmra.mrb[0].mxu0 %v3154
    %v3267 = vpop.f32.mrb[0].mxu0
    %v3268 = vadd.f32 %v3199, %v3267
    %v3269 = vpop.f32.mrb[0].mxu0
    %3270 = vmatprep.mubr.f32.mxu0 %v3157
    %3271 = vmatmul.mubr.f32.gmra.mrb[0].mxu0 %v3156
    %v3272 = vpop.f32.mrb[0].mxu0
    %v3273 = vadd.f32 %v3199, %v3272
    %v3274 = vpop.f32.mrb[0].mxu0
    %3275 = vmatprep.mubr.f32.mxu0 %v3159
    %3276 = vmatmul.mubr.f32.gmra.mrb[0].mxu0 %v3158
    %v3277 = vpop.f32.mrb[0].mxu0
    %v3278 = vadd.f32 %v3199, %v3277
    %v3279 = vpop.f32.mrb[0].mxu0
    %3280 = vdwg.mxu0
    %v3281 = vadd.f32 %v3029, %v3268
    %v3282 = vadd.f32 %v3030, %v3273
    %v3283 = vadd.f32 %v3031, %v3278
    %s3284 = scalar_lea.vmem %s11, 1
    %v3285 = vld [vmem:[%s3284] sm:$0x1]
    %s3286 = scalar_lea.vmem %s12, 1
    %v3287 = vld [vmem:[%s3286] sm:$0x1]
    %v3288 = vsel %vm193, %v3281, 0.0
    %3289 = vadd.xlane.f32.xlu0 %v3288
    %v3290 = vpop.xlane.xlu0 %3289
    %v3291 = vsel %vm193, %v3282, 0.0
    %3292 = vadd.xlane.f32.xlu0 %v3291
    %v3293 = vpop.xlane.xlu0 %3292
    %v3294 = vsel %vm1393, %v3283, 0.0
    %3295 = vadd.xlane.f32.xlu0 %v3294
    %v3296 = vpop.xlane.xlu0 %3295
    %v3297 = vmul.f32 %v3290, %v1397
    %v3298 = vmul.f32 %v3293, %v1397
    %v3299 = vmul.f32 %v3296, %v1397
    %v3300 = vsub.f32 %v3281, %v3297
    %v3301 = vsub.f32 %v3282, %v3298
    %v3302 = vsub.f32 %v3283, %v3299
    %v3303 = vmul.f32 %v3300, %v3300
    %v3304 = vmul.f32 %v3301, %v3301
    %v3305 = vmul.f32 %v3302, %v3302
    %v3306 = vsel %vm193, %v3303, 0.0
    %3307 = vadd.xlane.f32.xlu0 %v3306
    %v3308 = vpop.xlane.xlu0 %3307
    %v3309 = vsel %vm193, %v3304, 0.0
    %3310 = vadd.xlane.f32.xlu0 %v3309
    %v3311 = vpop.xlane.xlu0 %3310
    %v3312 = vsel %vm1393, %v3305, 0.0
    %3313 = vadd.xlane.f32.xlu0 %v3312
    %v3314 = vpop.xlane.xlu0 %3313
    %v3315 = vmul.f32 %v3308, %v1397
    %v3316 = vmul.f32 %v3311, %v1397
    %v3317 = vmul.f32 %v3314, %v1397
    %v3318 = vadd.f32 %v3315, 1e-05
    %v3319 = vadd.f32 %v3316, 1e-05
    %v3320 = vadd.f32 %v3317, 1e-05
    %v3321 = vrsqrt.pop %v3318
    %v3322 = vrsqrt.pop %v3319
    %v3323 = vrsqrt.pop %v3320
    %v3324 = vmul.f32 %v3300, %v3321
    %v3325 = vmul.f32 %v3301, %v3322
    %v3326 = vmul.f32 %v3302, %v3323
    %v3328 = vlaneseq
    %v3329 = vshrl.u32 %v3328, 7
    %v3330 = vsub.s32 0, %v3329
    %v3331 = vrot.slane %v3285, %v3330
    %v3333 = vmul.f32 %v3324, %v3331
    %v3334 = vmul.f32 %v3325, %v3331
    %v3335 = vmul.f32 %v3326, %v3331
    %v3337 = vlaneseq
    %v3338 = vshrl.u32 %v3337, 7
    %v3339 = vsub.s32 0, %v3338
    %v3340 = vrot.slane %v3287, %v3339
    %v3342 = vadd.f32 %v3333, %v3340
    %v3343 = vadd.f32 %v3334, %v3340
    %v3344 = vadd.f32 %v3335, %v3340
    %v3345 = vld [vmem:[%s2] sm:$0x3]
    %v3347 = vsel %vm394, %v3345, 0
    %v3350 = vsel %vm81, %v3344, 0
    %3352 = vmatprep.subr.mxu0 0.0
    %3353 = vmatpush1.msra.mxu0 %v3342
    %3354 = vmatprep.subr.mxu0 0.0
    %3355 = vmatpush1.msra.mxu0 %v3343
    %3356 = vmatprep.subr.mxu0 0.0
    %3357 = vmatpush1.msra.mxu0 %v3350
    %3358 = vmatprep.subr.mxu0 0.0
    %3359 = vmatpush1.msra.mxu0 0.0
    %3360 = vmatprep.subr.mxu0 0.0
    %3361 = vmatpush1.msra.mxu0 0.0
    %3362 = vmatprep.subr.mxu0 0.0
    %3363 = vmatpush1.msra.mxu0 0.0
    %3364 = vmatprep.subr.mxu0 0.0
    %3365 = vmatpush1.msra.mxu0 0.0
    %3366 = vmatprep.subr.mxu0 0.0
    %3367 = vmatpush1.msra.mxu0 0.0
    %3368 = vmatprep.subr.mxu0 0.0
    %3369 = vmatpush1.msra.mxu0 0.0
    %3370 = vmatprep.subr.mxu0 0.0
    %3371 = vmatpush1.msra.mxu0 0.0
    %3372 = vmatprep.subr.mxu0 0.0
    %3373 = vmatpush1.msra.mxu0 0.0
    %3374 = vmatprep.subr.mxu0 0.0
    %3375 = vmatpush1.msra.mxu0 0.0
    %3376 = vmatprep.subr.mxu0 0.0
    %3377 = vmatpush1.msra.mxu0 0.0
    %3378 = vmatprep.subr.mxu0 0.0
    %3379 = vmatpush1.msra.mxu0 0.0
    %3380 = vmatprep.subr.mxu0 0.0
    %3381 = vmatpush1.msra.mxu0 0.0
    %3382 = vmatprep.subr.mxu0 0.0
    %3383 = vmatpush1.msra.mxu0 0.0
    %3384 = vmatprep.subr.mxu0 0.0
    %3385 = vmatpush1.msra.mxu0 0.0
    %3386 = vmatprep.subr.mxu0 0.0
    %3387 = vmatpush1.msra.mxu0 0.0
    %3388 = vmatprep.subr.mxu0 0.0
    %3389 = vmatpush1.msra.mxu0 0.0
    %3390 = vmatprep.subr.mxu0 0.0
    %3391 = vmatpush1.msra.mxu0 0.0
    %3392 = vmatprep.subr.mxu0 0.0
    %3393 = vmatpush1.msra.mxu0 0.0
    %3394 = vmatprep.subr.mxu0 0.0
    %3395 = vmatpush1.msra.mxu0 0.0
    %3396 = vmatprep.subr.mxu0 0.0
    %3397 = vmatpush1.msra.mxu0 0.0
    %3398 = vmatprep.subr.mxu0 0.0
    %3399 = vmatpush1.msra.mxu0 0.0
    %3400 = vmatprep.subr.mxu0 0.0
    %3401 = vmatpush1.msra.mxu0 0.0
    %3402 = vmatprep.subr.mxu0 0.0
    %3403 = vmatpush1.msra.mxu0 0.0
    %3404 = vmatprep.subr.mxu0 0.0
    %3405 = vmatpush1.msra.mxu0 0.0
    %3406 = vmatprep.subr.mxu0 0.0
    %3407 = vmatpush1.msra.mxu0 0.0
    %3408 = vmatprep.subr.mxu0 0.0
    %3409 = vmatpush1.msra.mxu0 0.0
    %3410 = vmatprep.subr.mxu0 0.0
    %3411 = vmatpush1.msra.mxu0 0.0
    %3412 = vmatprep.subr.mxu0 0.0
    %3413 = vmatpush1.msra.mxu0 0.0
    %3414 = vmatprep.subr.mxu0 0.0
    %3415 = vmatpush1.msra.mxu0 0.0
    %3416 = vmatprep.mubr.f32.mxu0 0.0
    %3417 = vmatmul.mubr.f32.gmra.mrb[0].mxu0 %v3347
    %v3418 = vpop.f32.mrb[0].mxu0
    %v3419 = vadd.f32 0.0, %v3418
    %v3420 = vpop.f32.mrb[0].mxu0
    %3421 = vdwg.mxu0
    %vm3422 = vcmask 517120
    %3423 = vst.msk [vmem:[#allocation2] sm:$0x3] %vm3422, %v3419
    // Predicated region
    $region70: #{tpu_custom_call.1} parent=1 // pred_check
      _
    $region71: #{tpu_custom_call.1} parent=1 // pred_check_branch
      %3425 = sbr.rel (0) target = $region73
    $region72: #{tpu_custom_call.1} parent=1 // pred_region
      %s3427 = ssub.s32 32, 32
      %3428 = vsyncadd [#allocation3], %s3427
      %s3430 = sshll.u32 [#allocation2], 4
      %s3431 = int_to_ptr.vmem [resolvable:$true] %s3430
      %3433 = dma.vmem_to_hbm [thread:$0]  %s3431, 32, %s17, [#allocation3]
    $region73: #{tpu_custom_call.1} parent=1 // pred_fallthru
      _
    // Predicated region
    $region74: #{tpu_custom_call.1} parent=1 // pred_check
      _
    $region75: #{tpu_custom_call.1} parent=1 // pred_check_branch
      %3435 = sbr.rel (0) target = $region77
    $region76: #{tpu_custom_call.1} parent=1 // pred_region
      %3436 = dma.done [#allocation3], 32
    $region77: #{tpu_custom_call.1} parent=1 // pred_fallthru
      _
    %3437 = vsyncpa [#allocation3], 1

</llo_original>
